<compile_context>
chip_gen: v5e
topology: v5e:2x2
jax: 0.10.0
libtpu: 0.0.40
codegen_flags: <defaults>
</compile_context>

<pallas_src>
import functools

import jax
import jax.numpy as jnp
from jax.experimental import pallas as pl
from jax.experimental.pallas import tpu as pltpu


def _fused_backbone_kernel(p1_ref, w1_ref, b1_ref, w2_ref, b2_ref, o_ref,
                           p2_ref, hpad_ref, *, H, W, CH, K2):
    """Fused conv3x3 -> ReLU -> conv3x3 for one batch element.

    p1_ref  : (1, H*W, 128)      bf16, layer-1 im2col patches (built in wrapper)
    w1_ref  : (128, CH)          bf16, layer-1 weights (rows >= 9*Cin are zero)
    b1_ref  : (1, CH)            f32 bias, layer 1
    w2_ref  : (K2, 128)          bf16, layer-2 weights (rows >= 9*CH are zero)
    b2_ref  : (1, 128)           f32 bias, layer 2 (cols >= Cout are zero)
    o_ref   : (1, H*W, 128)      bf16 output (lane-dense, unmasked stores)
    p2_ref  : (H*W, K2)          bf16 VMEM scratch: layer-2 im2col patches
    hpad_ref: (H+2, W+2, CH)     bf16 VMEM scratch: halo-padded hidden activation
    """
    # ---- layer 1: wrapper already did the im2col -> ONE deep-K MXU matmul ----
    h = jnp.dot(p1_ref[0], w1_ref[...], preferred_element_type=jnp.float32)
    h = jnp.maximum(h + b1_ref[...], 0.0)          # f32 elementwise (v5e-safe)

    # ---- stage hidden activation in VMEM (never touches HBM) -----------------
    # Zero only the 1-px halo border; interior is fully overwritten below.
    # Re-done every step because the grid axis is megacore-"parallel" (scratch
    # is per-core and the other core never runs pid 0).  ~4 KiB of stores.
    zrow = jnp.zeros((1, W + 2, CH), hpad_ref.dtype)
    zcol = jnp.zeros((H + 2, 1, CH), hpad_ref.dtype)
    hpad_ref[0:1, :, :] = zrow
    hpad_ref[H + 1:H + 2, :, :] = zrow
    hpad_ref[:, 0:1, :] = zcol
    hpad_ref[:, W + 1:W + 2, :] = zcol
    hpad_ref[1:H + 1, 1:W + 1, :] = h.reshape(H, W, CH).astype(hpad_ref.dtype)

    # ---- layer 2: compact-K im2col (9*CH real columns) + one deep-K matmul ---
    for kh in range(3):
        for kw in range(3):
            t = kh * 3 + kw
            p2_ref[:, t * CH:(t + 1) * CH] = (
                hpad_ref[kh:kh + H, kw:kw + W, :].reshape(H * W, CH))
    if K2 > 9 * CH:
        # Keep the K-padding columns finite (stale VMEM could be NaN; NaN*0=NaN).
        p2_ref[:, 9 * CH:] = jnp.zeros((H * W, K2 - 9 * CH), p2_ref.dtype)

    y = jnp.dot(p2_ref[...], w2_ref[...], preferred_element_type=jnp.float32)
    o_ref[0] = (y + b2_ref[...]).astype(o_ref.dtype)   # lane-dense bf16 store


def init_params(key, c_geo, c_reg, c_hidden, c_out):
    """Deterministic synthetic parameters for the backbone `net`."""
    k1, k2, k3, k4 = jax.random.split(key, 4)
    c_in = c_geo + c_reg
    w1 = jax.random.normal(k1, (3, 3, c_in, c_hidden), jnp.float32) * 0.1
    b1 = jax.random.normal(k2, (c_hidden,), jnp.float32) * 0.01
    w2 = jax.random.normal(k3, (3, 3, c_hidden, c_out), jnp.float32) * 0.1
    b2 = jax.random.normal(k4, (c_out,), jnp.float32) * 0.01
    return {"w1": w1, "b1": b1, "w2": w2, "b2": b2}


def bpure_sparse_backbone_geo_forward(params, btsdf_geo, breg):
    """forward(bdscan) == net(bdscan.btsdf_geo_sparse, bdscan.breg_sparse).

    btsdf_geo, breg : NCHW float32 tensors (densified sparse features).
    Returns NCHW float32.
    """
    w1, b1, w2, b2 = params["w1"], params["b1"], params["w2"], params["b2"]
    B, _, H, W = btsdf_geo.shape
    Cin = btsdf_geo.shape[1] + breg.shape[1]
    Chid = w1.shape[-1]
    Cout = w2.shape[-1]

    K1 = 128                               # 9*Cin = 72  -> one MXU K-tile
    K2 = ((9 * Chid + 127) // 128) * 128   # 9*Chid = 288 -> 384 (3 K-tiles)
    NOUT = 128                             # lane-dense output (Cout real cols)
    assert 9 * Cin <= K1 and Cout <= NOUT and Chid <= 128
    assert (H * W) % 8 == 0

    # --- fused XLA layout pass: NCHW->NHWC + concat + halo pad + layer-1 im2col
    #     + K-pad to 128 + bf16 cast (XLA fuses these into one pass) -----------
    geo = jnp.transpose(btsdf_geo, (0, 2, 3, 1))
    reg = jnp.transpose(breg, (0, 2, 3, 1))
    x = jnp.concatenate([geo, reg], axis=-1).astype(jnp.bfloat16)
    xp = jnp.pad(x, ((0, 0), (1, 1), (1, 1), (0, 0)))
    p1 = jnp.concatenate(
        [xp[:, kh:kh + H, kw:kw + W, :] for kh in range(3) for kw in range(3)],
        axis=-1)                                          # (B, H, W, 9*Cin)
    p1 = jnp.pad(p1, ((0, 0), (0, 0), (0, 0), (0, K1 - 9 * Cin)))
    p1 = p1.reshape(B, H * W, K1)

    # --- MXU-layout weights with compact K (no 9x128 inflation) ---------------
    w1p = (jnp.zeros((K1, Chid), jnp.float32)
           .at[:9 * Cin, :].set(w1.reshape(9 * Cin, Chid))
           .astype(jnp.bfloat16))
    w2p = (jnp.zeros((K2, NOUT), jnp.float32)
           .at[:9 * Chid, :Cout].set(w2.reshape(9 * Chid, Cout))
           .astype(jnp.bfloat16))
    b1p = b1.reshape(1, Chid).astype(jnp.float32)
    b2p = jnp.zeros((1, NOUT), jnp.float32).at[0, :Cout].set(b2)

    kernel = functools.partial(_fused_backbone_kernel, H=H, W=W, CH=Chid, K2=K2)

    flops = 2 * B * H * W * (K1 * Chid + K2 * NOUT)
    bytes_accessed = (B * H * W * K1 * 2          # p1 in (bf16)
                      + K1 * Chid * 2 + K2 * NOUT * 2   # weights (bf16)
                      + (Chid + NOUT) * 4               # biases (f32)
                      + B * H * W * NOUT * 2)           # out (bf16)

    y = pl.pallas_call(
        kernel,
        out_shape=jax.ShapeDtypeStruct((B, H * W, NOUT), jnp.bfloat16),
        grid=(B,),
        in_specs=[
            pl.BlockSpec((1, H * W, K1), lambda b: (b, 0, 0)),
            pl.BlockSpec((K1, Chid), lambda b: (0, 0)),   # constant index_map:
            pl.BlockSpec((1, Chid), lambda b: (0, 0)),    # weights stay resident
            pl.BlockSpec((K2, NOUT), lambda b: (0, 0)),
            pl.BlockSpec((1, NOUT), lambda b: (0, 0)),
        ],
        out_specs=pl.BlockSpec((1, H * W, NOUT), lambda b: (b, 0, 0)),
        scratch_shapes=[
            pltpu.VMEM((H * W, K2), jnp.bfloat16),          # layer-2 im2col
            pltpu.VMEM((H + 2, W + 2, Chid), jnp.bfloat16),  # padded hidden act
        ],
        compiler_params=pltpu.CompilerParams(
            dimension_semantics=("parallel",)),             # 2 TCs on v7x
        cost_estimate=pl.CostEstimate(
            flops=flops, transcendentals=0, bytes_accessed=bytes_accessed),
    )(p1, w1p, b1p, w2p, b2p)

    # Strip channel padding, cast to f32, restore NCHW (fused XLA epilogue).
    y = y.reshape(B, H, W, NOUT)[..., :Cout].astype(jnp.float32)
    return jnp.transpose(y, (0, 3, 1, 2))


def _reference_forward(params, btsdf_geo, breg):
    """Pure-JAX reference (lax conv) mirroring the kernel's bf16 casts."""
    geo = jnp.transpose(btsdf_geo, (0, 2, 3, 1))
    reg = jnp.transpose(breg, (0, 2, 3, 1))
    x = jnp.concatenate([geo, reg], axis=-1).astype(jnp.bfloat16).astype(jnp.float32)
    w1 = params["w1"].astype(jnp.bfloat16).astype(jnp.float32)
    w2 = params["w2"].astype(jnp.bfloat16).astype(jnp.float32)

    def conv(x, w, b):
        y = jax.lax.conv_general_dilated(
            x, w, window_strides=(1, 1), padding="SAME",
            dimension_numbers=("NHWC", "HWIO", "NHWC"))
        return y + b

    h = jnp.maximum(conv(x, w1, params["b1"]), 0.0)
    h = h.astype(jnp.bfloat16).astype(jnp.float32)
    y = conv(h, w2, params["b2"])
    return jnp.transpose(y, (0, 3, 1, 2))


if __name__ == "__main__":
    B, C_FEAT, H, W = 2, 4, 16, 16
    C_HIDDEN, C_OUT = 32, 16

    key = jax.random.PRNGKey(0)
    k_geo, k_reg, k_par = jax.random.split(key, 3)
    btsdf_geo_sparse = jax.random.normal(k_geo, (B, C_FEAT, H, W), jnp.float32)
    breg_sparse = jax.random.normal(k_reg, (B, C_FEAT, H, W), jnp.float32)
    params = init_params(k_par, C_FEAT, C_FEAT, C_HIDDEN, C_OUT)

    fwd = jax.jit(bpure_sparse_backbone_geo_forward)
    out = jax.block_until_ready(fwd(params, btsdf_geo_sparse, breg_sparse))

    ref = jax.block_until_ready(
        _reference_forward(params, btsdf_geo_sparse, breg_sparse))
    assert out.shape == (B, C_OUT, H, W), out.shape
    max_err = float(jnp.max(jnp.abs(out - ref)))
    assert jnp.allclose(out, ref, atol=1e-2, rtol=1e-2), f"mismatch: {max_err}"

    print("KERNEL_OK")
</pallas_src>

<mosaic_0001>
module attributes {stable_mosaic.version = 11 : i64} {
  func.func @_fused_backbone_kernel(%arg0: i32, %arg1: memref<1x256x128xbf16, #tpu.memory_space<vmem>>, %arg2: memref<128x32xbf16, #tpu.memory_space<vmem>>, %arg3: memref<1x32xf32, #tpu.memory_space<vmem>>, %arg4: memref<384x128xbf16, #tpu.memory_space<vmem>>, %arg5: memref<1x128xf32, #tpu.memory_space<vmem>>, %arg6: memref<1x256x128xbf16, #tpu.memory_space<vmem>>, %arg7: memref<256x384xbf16, #tpu.memory_space<vmem>>, %arg8: memref<18x18x32xbf16, #tpu.memory_space<vmem>>) attributes {dimension_semantics = [#tpu.dimension_semantics<parallel>], iteration_bounds = array<i64: 2>, scalar_prefetch = 0 : i64, scratch_operands = 2 : i64, tpu.core_type = #tpu.core_type<tc>, window_params = [{transform_indices = @transform_0, window_bounds = array<i64: 1, 256, 128>}, {pipeline_mode = #tpu.pipeline_mode<synchronous>, transform_indices = @transform_1, window_bounds = array<i64: 128, 32>}, {pipeline_mode = #tpu.pipeline_mode<synchronous>, transform_indices = @transform_2, window_bounds = array<i64: 1, 32>}, {pipeline_mode = #tpu.pipeline_mode<synchronous>, transform_indices = @transform_3, window_bounds = array<i64: 384, 128>}, {pipeline_mode = #tpu.pipeline_mode<synchronous>, transform_indices = @transform_4, window_bounds = array<i64: 1, 128>}, {transform_indices = @transform_5, window_bounds = array<i64: 1, 256, 128>}]} {
    %c0 = arith.constant 0 : index
    %c0_0 = arith.constant 0 : index
    %c0_1 = arith.constant 0 : index
    %0 = vector.load %arg1[%c0, %c0_0, %c0_1] : memref<1x256x128xbf16, #tpu.memory_space<vmem>>, vector<1x256x128xbf16>
    %1 = vector.shape_cast %0 : vector<1x256x128xbf16> to vector<256x128xbf16>
    %c0_2 = arith.constant 0 : index
    %c0_3 = arith.constant 0 : index
    %2 = vector.load %arg2[%c0_2, %c0_3] : memref<128x32xbf16, #tpu.memory_space<vmem>>, vector<128x32xbf16>
    %cst = arith.constant dense<0.000000e+00> : vector<256x32xf32>
    %3 = tpu.matmul %1, %2, %cst {dimension_numbers = #tpu.dot_dimension_numbers<[1], [0], [0], [1], [0, 0, 1, 1], [], []>} : vector<256x128xbf16>, vector<128x32xbf16>, vector<256x32xf32> -> vector<256x32xf32>
    %c0_4 = arith.constant 0 : index
    %c0_5 = arith.constant 0 : index
    %4 = vector.load %arg3[%c0_4, %c0_5] : memref<1x32xf32, #tpu.memory_space<vmem>>, vector<1x32xf32>
    %5 = vector.broadcast %4 : vector<1x32xf32> to vector<256x32xf32>
    %6 = arith.addf %3, %5 : vector<256x32xf32>
    %cst_6 = arith.constant 0.000000e+00 : f32
    %7 = vector.broadcast %cst_6 : f32 to vector<256x32xf32>
    %8 = arith.maximumf %6, %7 : vector<256x32xf32>
    %cst_7 = arith.constant 0.000000e+00 : bf16
    %9 = vector.broadcast %cst_7 : bf16 to vector<1x18x32xbf16>
    %cst_8 = arith.constant 0.000000e+00 : bf16
    %10 = vector.broadcast %cst_8 : bf16 to vector<18x1x32xbf16>
    %c0_9 = arith.constant 0 : index
    %c0_10 = arith.constant 0 : index
    %c0_11 = arith.constant 0 : index
    %11 = vector.load %arg8[%c0_9, %c0_10, %c0_11] : memref<18x18x32xbf16, #tpu.memory_space<vmem>>, vector<1x18x32xbf16>
    tpu.vector_store %arg8[%c0_9, %c0_10, %c0_11], %9 {strides = array<i32>} : memref<18x18x32xbf16, #tpu.memory_space<vmem>>, vector<1x18x32xbf16>,
    %c17 = arith.constant 17 : index
    %c0_12 = arith.constant 0 : index
    %c0_13 = arith.constant 0 : index
    %12 = vector.load %arg8[%c17, %c0_12, %c0_13] : memref<18x18x32xbf16, #tpu.memory_space<vmem>>, vector<1x18x32xbf16>
    tpu.vector_store %arg8[%c17, %c0_12, %c0_13], %9 {strides = array<i32>} : memref<18x18x32xbf16, #tpu.memory_space<vmem>>, vector<1x18x32xbf16>,
    %c0_14 = arith.constant 0 : index
    %c0_15 = arith.constant 0 : index
    %c0_16 = arith.constant 0 : index
    %13 = vector.load %arg8[%c0_14, %c0_15, %c0_16] : memref<18x18x32xbf16, #tpu.memory_space<vmem>>, vector<18x1x32xbf16>
    tpu.vector_store %arg8[%c0_14, %c0_15, %c0_16], %10 {strides = array<i32>} : memref<18x18x32xbf16, #tpu.memory_space<vmem>>, vector<18x1x32xbf16>,
    %c0_17 = arith.constant 0 : index
    %c17_18 = arith.constant 17 : index
    %c0_19 = arith.constant 0 : index
    %14 = vector.load %arg8[%c0_17, %c17_18, %c0_19] : memref<18x18x32xbf16, #tpu.memory_space<vmem>>, vector<18x1x32xbf16>
    tpu.vector_store %arg8[%c0_17, %c17_18, %c0_19], %10 {strides = array<i32>} : memref<18x18x32xbf16, #tpu.memory_space<vmem>>, vector<18x1x32xbf16>,
    %15 = vector.shape_cast %8 : vector<256x32xf32> to vector<16x16x32xf32>
    %16 = arith.truncf %15 : vector<16x16x32xf32> to vector<16x16x32xbf16>
    %c1 = arith.constant 1 : index
    %c1_20 = arith.constant 1 : index
    %c0_21 = arith.constant 0 : index
    %17 = vector.load %arg8[%c1, %c1_20, %c0_21] : memref<18x18x32xbf16, #tpu.memory_space<vmem>>, vector<16x16x32xbf16>
    tpu.vector_store %arg8[%c1, %c1_20, %c0_21], %16 {strides = array<i32>} : memref<18x18x32xbf16, #tpu.memory_space<vmem>>, vector<16x16x32xbf16>,
    %c0_22 = arith.constant 0 : index
    %c0_23 = arith.constant 0 : index
    %c0_24 = arith.constant 0 : index
    %18 = vector.load %arg8[%c0_22, %c0_23, %c0_24] : memref<18x18x32xbf16, #tpu.memory_space<vmem>>, vector<16x16x32xbf16>
    %19 = vector.shape_cast %18 : vector<16x16x32xbf16> to vector<256x32xbf16>
    %c0_25 = arith.constant 0 : index
    %c0_26 = arith.constant 0 : index
    %20 = vector.load %arg7[%c0_25, %c0_26] : memref<256x384xbf16, #tpu.memory_space<vmem>>, vector<256x32xbf16>
    tpu.vector_store %arg7[%c0_25, %c0_26], %19 {strides = array<i32>} : memref<256x384xbf16, #tpu.memory_space<vmem>>, vector<256x32xbf16>,
    %c0_27 = arith.constant 0 : index
    %c1_28 = arith.constant 1 : index
    %c0_29 = arith.constant 0 : index
    %21 = vector.load %arg8[%c0_27, %c1_28, %c0_29] : memref<18x18x32xbf16, #tpu.memory_space<vmem>>, vector<16x16x32xbf16>
    %22 = vector.shape_cast %21 : vector<16x16x32xbf16> to vector<256x32xbf16>
    %c0_30 = arith.constant 0 : index
    %c32 = arith.constant 32 : index
    %23 = vector.load %arg7[%c0_30, %c32] : memref<256x384xbf16, #tpu.memory_space<vmem>>, vector<256x32xbf16>
    tpu.vector_store %arg7[%c0_30, %c32], %22 {strides = array<i32>} : memref<256x384xbf16, #tpu.memory_space<vmem>>, vector<256x32xbf16>,
    %c0_31 = arith.constant 0 : index
    %c2 = arith.constant 2 : index
    %c0_32 = arith.constant 0 : index
    %24 = vector.load %arg8[%c0_31, %c2, %c0_32] : memref<18x18x32xbf16, #tpu.memory_space<vmem>>, vector<16x16x32xbf16>
    %25 = vector.shape_cast %24 : vector<16x16x32xbf16> to vector<256x32xbf16>
    %c0_33 = arith.constant 0 : index
    %c64 = arith.constant 64 : index
    %26 = vector.load %arg7[%c0_33, %c64] : memref<256x384xbf16, #tpu.memory_space<vmem>>, vector<256x32xbf16>
    tpu.vector_store %arg7[%c0_33, %c64], %25 {strides = array<i32>} : memref<256x384xbf16, #tpu.memory_space<vmem>>, vector<256x32xbf16>,
    %c1_34 = arith.constant 1 : index
    %c0_35 = arith.constant 0 : index
    %c0_36 = arith.constant 0 : index
    %27 = vector.load %arg8[%c1_34, %c0_35, %c0_36] : memref<18x18x32xbf16, #tpu.memory_space<vmem>>, vector<16x16x32xbf16>
    %28 = vector.shape_cast %27 : vector<16x16x32xbf16> to vector<256x32xbf16>
    %c0_37 = arith.constant 0 : index
    %c96 = arith.constant 96 : index
    %29 = vector.load %arg7[%c0_37, %c96] : memref<256x384xbf16, #tpu.memory_space<vmem>>, vector<256x32xbf16>
    tpu.vector_store %arg7[%c0_37, %c96], %28 {strides = array<i32>} : memref<256x384xbf16, #tpu.memory_space<vmem>>, vector<256x32xbf16>,
    %c1_38 = arith.constant 1 : index
    %c1_39 = arith.constant 1 : index
    %c0_40 = arith.constant 0 : index
    %30 = vector.load %arg8[%c1_38, %c1_39, %c0_40] : memref<18x18x32xbf16, #tpu.memory_space<vmem>>, vector<16x16x32xbf16>
    %31 = vector.shape_cast %30 : vector<16x16x32xbf16> to vector<256x32xbf16>
    %c0_41 = arith.constant 0 : index
    %c128 = arith.constant 128 : index
    %32 = vector.load %arg7[%c0_41, %c128] : memref<256x384xbf16, #tpu.memory_space<vmem>>, vector<256x32xbf16>
    tpu.vector_store %arg7[%c0_41, %c128], %31 {strides = array<i32>} : memref<256x384xbf16, #tpu.memory_space<vmem>>, vector<256x32xbf16>,
    %c1_42 = arith.constant 1 : index
    %c2_43 = arith.constant 2 : index
    %c0_44 = arith.constant 0 : index
    %33 = vector.load %arg8[%c1_42, %c2_43, %c0_44] : memref<18x18x32xbf16, #tpu.memory_space<vmem>>, vector<16x16x32xbf16>
    %34 = vector.shape_cast %33 : vector<16x16x32xbf16> to vector<256x32xbf16>
    %c0_45 = arith.constant 0 : index
    %c160 = arith.constant 160 : index
    %35 = vector.load %arg7[%c0_45, %c160] : memref<256x384xbf16, #tpu.memory_space<vmem>>, vector<256x32xbf16>
    tpu.vector_store %arg7[%c0_45, %c160], %34 {strides = array<i32>} : memref<256x384xbf16, #tpu.memory_space<vmem>>, vector<256x32xbf16>,
    %c2_46 = arith.constant 2 : index
    %c0_47 = arith.constant 0 : index
    %c0_48 = arith.constant 0 : index
    %36 = vector.load %arg8[%c2_46, %c0_47, %c0_48] : memref<18x18x32xbf16, #tpu.memory_space<vmem>>, vector<16x16x32xbf16>
    %37 = vector.shape_cast %36 : vector<16x16x32xbf16> to vector<256x32xbf16>
    %c0_49 = arith.constant 0 : index
    %c192 = arith.constant 192 : index
    %38 = vector.load %arg7[%c0_49, %c192] : memref<256x384xbf16, #tpu.memory_space<vmem>>, vector<256x32xbf16>
    tpu.vector_store %arg7[%c0_49, %c192], %37 {strides = array<i32>} : memref<256x384xbf16, #tpu.memory_space<vmem>>, vector<256x32xbf16>,
    %c2_50 = arith.constant 2 : index
    %c1_51 = arith.constant 1 : index
    %c0_52 = arith.constant 0 : index
    %39 = vector.load %arg8[%c2_50, %c1_51, %c0_52] : memref<18x18x32xbf16, #tpu.memory_space<vmem>>, vector<16x16x32xbf16>
    %40 = vector.shape_cast %39 : vector<16x16x32xbf16> to vector<256x32xbf16>
    %c0_53 = arith.constant 0 : index
    %c224 = arith.constant 224 : index
    %41 = vector.load %arg7[%c0_53, %c224] : memref<256x384xbf16, #tpu.memory_space<vmem>>, vector<256x32xbf16>
    tpu.vector_store %arg7[%c0_53, %c224], %40 {strides = array<i32>} : memref<256x384xbf16, #tpu.memory_space<vmem>>, vector<256x32xbf16>,
    %c2_54 = arith.constant 2 : index
    %c2_55 = arith.constant 2 : index
    %c0_56 = arith.constant 0 : index
    %42 = vector.load %arg8[%c2_54, %c2_55, %c0_56] : memref<18x18x32xbf16, #tpu.memory_space<vmem>>, vector<16x16x32xbf16>
    %43 = vector.shape_cast %42 : vector<16x16x32xbf16> to vector<256x32xbf16>
    %c0_57 = arith.constant 0 : index
    %c256 = arith.constant 256 : index
    %44 = vector.load %arg7[%c0_57, %c256] : memref<256x384xbf16, #tpu.memory_space<vmem>>, vector<256x32xbf16>
    tpu.vector_store %arg7[%c0_57, %c256], %43 {strides = array<i32>} : memref<256x384xbf16, #tpu.memory_space<vmem>>, vector<256x32xbf16>,
    %cst_58 = arith.constant 0.000000e+00 : bf16
    %45 = vector.broadcast %cst_58 : bf16 to vector<256x96xbf16>
    %c0_59 = arith.constant 0 : index
    %c288 = arith.constant 288 : index
    %46 = vector.load %arg7[%c0_59, %c288] : memref<256x384xbf16, #tpu.memory_space<vmem>>, vector<256x96xbf16>
    tpu.vector_store %arg7[%c0_59, %c288], %45 {strides = array<i32>} : memref<256x384xbf16, #tpu.memory_space<vmem>>, vector<256x96xbf16>,
    %c0_60 = arith.constant 0 : index
    %c0_61 = arith.constant 0 : index
    %47 = vector.load %arg7[%c0_60, %c0_61] : memref<256x384xbf16, #tpu.memory_space<vmem>>, vector<256x384xbf16>
    %c0_62 = arith.constant 0 : index
    %c0_63 = arith.constant 0 : index
    %48 = vector.load %arg4[%c0_62, %c0_63] : memref<384x128xbf16, #tpu.memory_space<vmem>>, vector<384x128xbf16>
    %cst_64 = arith.constant dense<0.000000e+00> : vector<256x128xf32>
    %49 = tpu.matmul %47, %48, %cst_64 {dimension_numbers = #tpu.dot_dimension_numbers<[1], [0], [0], [1], [0, 0, 1, 1], [], []>} : vector<256x384xbf16>, vector<384x128xbf16>, vector<256x128xf32> -> vector<256x128xf32>
    %c0_65 = arith.constant 0 : index
    %c0_66 = arith.constant 0 : index
    %50 = vector.load %arg5[%c0_65, %c0_66] : memref<1x128xf32, #tpu.memory_space<vmem>>, vector<1x128xf32>
    %51 = vector.broadcast %50 : vector<1x128xf32> to vector<256x128xf32>
    %52 = arith.addf %49, %51 : vector<256x128xf32>
    %53 = arith.truncf %52 : vector<256x128xf32> to vector<256x128xbf16>
    %c0_67 = arith.constant 0 : index
    %c0_68 = arith.constant 0 : index
    %c0_69 = arith.constant 0 : index
    %54 = vector.load %arg6[%c0_67, %c0_68, %c0_69] : memref<1x256x128xbf16, #tpu.memory_space<vmem>>, vector<1x256x128xbf16>
    %55 = vector.shape_cast %54 : vector<1x256x128xbf16> to vector<256x128xbf16>
    %56 = vector.shape_cast %53 : vector<256x128xbf16> to vector<1x256x128xbf16>
    tpu.vector_store %arg6[%c0_67, %c0_68, %c0_69], %56 {strides = array<i32>} : memref<1x256x128xbf16, #tpu.memory_space<vmem>>, vector<1x256x128xbf16>,
    return
  }
  func.func @transform_0(%arg0: i32) -> (i32, i32, i32) {
    %c0_i32 = arith.constant 0 : i32
    %c0_i32_0 = arith.constant 0 : i32
    %c0_i32_1 = arith.constant 0 : i32
    return %arg0, %c0_i32, %c0_i32_0 : i32, i32, i32
  }
  func.func @transform_1(%arg0: i32) -> (i32, i32) {
    %c0_i32 = arith.constant 0 : i32
    %c0_i32_0 = arith.constant 0 : i32
    %c0_i32_1 = arith.constant 0 : i32
    return %c0_i32, %c0_i32_0 : i32, i32
  }
  func.func @transform_2(%arg0: i32) -> (i32, i32) {
    %c0_i32 = arith.constant 0 : i32
    %c0_i32_0 = arith.constant 0 : i32
    %c0_i32_1 = arith.constant 0 : i32
    return %c0_i32, %c0_i32_0 : i32, i32
  }
  func.func @transform_3(%arg0: i32) -> (i32, i32) {
    %c0_i32 = arith.constant 0 : i32
    %c0_i32_0 = arith.constant 0 : i32
    %c0_i32_1 = arith.constant 0 : i32
    return %c0_i32, %c0_i32_0 : i32, i32
  }
  func.func @transform_4(%arg0: i32) -> (i32, i32) {
    %c0_i32 = arith.constant 0 : i32
    %c0_i32_0 = arith.constant 0 : i32
    %c0_i32_1 = arith.constant 0 : i32
    return %c0_i32, %c0_i32_0 : i32, i32
  }
  func.func @transform_5(%arg0: i32) -> (i32, i32, i32) {
    %c0_i32 = arith.constant 0 : i32
    %c0_i32_0 = arith.constant 0 : i32
    %c0_i32_1 = arith.constant 0 : i32
    return %arg0, %c0_i32, %c0_i32_0 : i32, i32, i32
  }
}

</mosaic_0001>

<llo_original>
// kernel: bpure_sparse_backbone_geo_forward.1
$region0: #{bpure_sparse_backbone_geo_forward.1}
  #allocation0 [shape = 'u32[]', space=smem, size = 0x4, offset = 0x4, fixed_abs, tag = 'smem constant byte address 0x4 - core index']
  #allocation1 [shape = 'u32[72,128]{1,0:T(1,128)}', space=vmem, size = 0x9000, scoped, tag = 'internal scratch']
  #allocation2 [shape = 'bf16[256,384]{1,0:T(8,128)(2,1)}', space=vmem, size = 0x30000, scoped, tag = 'scratch operand']
  #allocation3 [shape = 'bf16[18,18,32]{2,1,0:T(8,128)(2,1)}', space=vmem, size = 0x1b000, scoped, tag = 'scratch operand']
  %s0 = inlined_call_operand.vmem [shape: bf16[2,256,128], index: 0, kind: input, shape index: {}]
  %s1 = inlined_call_operand.vmem [shape: bf16[128,32], index: 1, kind: input, shape index: {}]
  %s2 = inlined_call_operand.vmem [shape: f32[1,32], index: 2, kind: input, shape index: {}]
  %s3 = inlined_call_operand.vmem [shape: bf16[384,128], index: 3, kind: input, shape index: {}]
  %s4 = inlined_call_operand.vmem [shape: f32[1,128], index: 4, kind: input, shape index: {}]
  %s5 = inlined_call_operand.vmem [shape: bf16[2,256,128], index: 5, kind: output, shape index: {}]
  %s6 = sld [smem:[#allocation0]]
  $region53: #{bpure_sparse_backbone_geo_forward.1} parent=0
    _
  %s8 = ssub.s32 1, %s6
  %s9 = scalar_select 0, %s8, %s6
  loop: start=0, step=1, limit=4
  $region2: #{bpure_sparse_backbone_geo_forward.1} parent=0 // loop_pre_header
    _
  $region3: #{bpure_sparse_backbone_geo_forward.1} parent=0 // loop_header
    %s11 = sphi 0, %s15
    %p12 = scmp.ge.s32.totalorder %s11, 4
    %s21 = sphi 0, %s23
    %s24 = sphi 0, %s21
    %s25 = sphi 0, %s24
    %s41 = sphi 0, %s25
    %s45 = sphi 0, %s45
    %s47 = sphi 0, %s45
    %s48 = sphi 0, %s47
    %s62 = sphi 0, %s48
    %s66 = sphi 0, %s66
    %s68 = sphi 0, %s66
    %s69 = sphi 0, %s68
    %s83 = sphi 0, %s69
    %s87 = sphi 0, %s87
    %s89 = sphi 0, %s87
    %s90 = sphi 0, %s89
    %s104 = sphi 0, %s90
    %s108 = sphi 0, %s108
    %s110 = sphi 0, %s108
    %s111 = sphi 0, %s110
    %s125 = sphi 0, %s111
    %s131 = sphi 0, %s133
    %s134 = sphi 0, %s131
    %s135 = sphi 0, %s134
    %s151 = sphi 0, %s135
  $region4: #{bpure_sparse_backbone_geo_forward.1} parent=0 // loop_header_branch
    %14 = sbr.rel (%p12) target = $region8
  $region5: #{bpure_sparse_backbone_geo_forward.1} parent=0 // loop_body
    %s16 = ssub.s32 %s11, 1
    %s17 = ssub.s32 %s11, 2
    %s18 = sadd.s32 %s11, 1
    %s19 = ssub.s32 %s11, %s18
    %p20 = scmp.eq.s32.totalorder %s19, 0
    %s22 = sadd.s32 %s21, 1
    %s23 = scalar_select %p20, %s21, %s22
    %p26 = pneg %p20
    %p27 = scmp.eq.s32.totalorder %s11, 1
    %p28 = por %p26, %p27
    %p29 = scmp.ne.s32.totalorder %s21, %s24
    %p30 = scmp.eq.s32.totalorder %s11, 0
    %p31 = por %p29, %p30
    %p32 = scmp.ne.s32.totalorder %s21, %s24
    %p33 = scmp.eq.s32.totalorder %s16, 1
    %p34 = por %p32, %p33
    %p35 = scmp.ne.s32.totalorder %s24, %s25
    %p36 = scmp.eq.s32.totalorder %s16, 0
    %p37 = por %p35, %p36
    %p38 = scmp.ne.s32.totalorder %s24, %s25
    %p39 = scmp.eq.s32.totalorder %s17, 1
    %p40 = por %p38, %p39
    %p42 = scmp.ne.s32.totalorder %s25, %s41
    %p43 = scmp.eq.s32.totalorder %s17, 0
    %p44 = por %p42, %p43
    %s46 = sadd.s32 %s45, 1
    %p49 = scmp.eq.s32.totalorder %s11, 1
    %p50 = scmp.ne.s32.totalorder %s45, %s47
    %p51 = scmp.eq.s32.totalorder %s11, 0
    %p52 = por %p50, %p51
    %p53 = scmp.ne.s32.totalorder %s45, %s47
    %p54 = scmp.eq.s32.totalorder %s16, 1
    %p55 = por %p53, %p54
    %p56 = scmp.ne.s32.totalorder %s47, %s48
    %p57 = scmp.eq.s32.totalorder %s16, 0
    %p58 = por %p56, %p57
    %p59 = scmp.ne.s32.totalorder %s47, %s48
    %p60 = scmp.eq.s32.totalorder %s17, 1
    %p61 = por %p59, %p60
    %p63 = scmp.ne.s32.totalorder %s48, %s62
    %p64 = scmp.eq.s32.totalorder %s17, 0
    %p65 = por %p63, %p64
    %s67 = sadd.s32 %s66, 1
    %p70 = scmp.eq.s32.totalorder %s11, 1
    %p71 = scmp.ne.s32.totalorder %s66, %s68
    %p72 = scmp.eq.s32.totalorder %s11, 0
    %p73 = por %p71, %p72
    %p74 = scmp.ne.s32.totalorder %s66, %s68
    %p75 = scmp.eq.s32.totalorder %s16, 1
    %p76 = por %p74, %p75
    %p77 = scmp.ne.s32.totalorder %s68, %s69
    %p78 = scmp.eq.s32.totalorder %s16, 0
    %p79 = por %p77, %p78
    %p80 = scmp.ne.s32.totalorder %s68, %s69
    %p81 = scmp.eq.s32.totalorder %s17, 1
    %p82 = por %p80, %p81
    %p84 = scmp.ne.s32.totalorder %s69, %s83
    %p85 = scmp.eq.s32.totalorder %s17, 0
    %p86 = por %p84, %p85
    %s88 = sadd.s32 %s87, 1
    %p91 = scmp.eq.s32.totalorder %s11, 1
    %p92 = scmp.ne.s32.totalorder %s87, %s89
    %p93 = scmp.eq.s32.totalorder %s11, 0
    %p94 = por %p92, %p93
    %p95 = scmp.ne.s32.totalorder %s87, %s89
    %p96 = scmp.eq.s32.totalorder %s16, 1
    %p97 = por %p95, %p96
    %p98 = scmp.ne.s32.totalorder %s89, %s90
    %p99 = scmp.eq.s32.totalorder %s16, 0
    %p100 = por %p98, %p99
    %p101 = scmp.ne.s32.totalorder %s89, %s90
    %p102 = scmp.eq.s32.totalorder %s17, 1
    %p103 = por %p101, %p102
    %p105 = scmp.ne.s32.totalorder %s90, %s104
    %p106 = scmp.eq.s32.totalorder %s17, 0
    %p107 = por %p105, %p106
    %s109 = sadd.s32 %s108, 1
    %p112 = scmp.eq.s32.totalorder %s11, 1
    %p113 = scmp.ne.s32.totalorder %s108, %s110
    %p114 = scmp.eq.s32.totalorder %s11, 0
    %p115 = por %p113, %p114
    %p116 = scmp.ne.s32.totalorder %s108, %s110
    %p117 = scmp.eq.s32.totalorder %s16, 1
    %p118 = por %p116, %p117
    %p119 = scmp.ne.s32.totalorder %s110, %s111
    %p120 = scmp.eq.s32.totalorder %s16, 0
    %p121 = por %p119, %p120
    %p122 = scmp.ne.s32.totalorder %s110, %s111
    %p123 = scmp.eq.s32.totalorder %s17, 1
    %p124 = por %p122, %p123
    %p126 = scmp.ne.s32.totalorder %s111, %s125
    %p127 = scmp.eq.s32.totalorder %s17, 0
    %p128 = por %p126, %p127
    %s129 = ssub.s32 %s11, %s18
    %p130 = scmp.eq.s32.totalorder %s129, 0
    %s132 = sadd.s32 %s131, 1
    %s133 = scalar_select %p130, %s131, %s132
    %p136 = pneg %p130
    %p137 = scmp.eq.s32.totalorder %s11, 1
    %p138 = por %p136, %p137
    %p139 = scmp.ne.s32.totalorder %s131, %s134
    %p140 = scmp.eq.s32.totalorder %s11, 0
    %p141 = por %p139, %p140
    %p142 = scmp.ne.s32.totalorder %s131, %s134
    %p143 = scmp.eq.s32.totalorder %s16, 1
    %p144 = por %p142, %p143
    %p145 = scmp.ne.s32.totalorder %s134, %s135
    %p146 = scmp.eq.s32.totalorder %s16, 0
    %p147 = por %p145, %p146
    %p148 = scmp.ne.s32.totalorder %s134, %s135
    %p149 = scmp.eq.s32.totalorder %s17, 1
    %p150 = por %p148, %p149
    %p152 = scmp.ne.s32.totalorder %s135, %s151
    %p153 = scmp.eq.s32.totalorder %s17, 0
    %p154 = por %p152, %p153
    %p155 = scmp.le.s32.totalorder 1, %s11
    %p156 = scmp.lt.s32.totalorder %s11, 3
    %p157 = pnand %p155, %p156
    %p158 = pneg %p157
    // Predicated region
    $region9: #{bpure_sparse_backbone_geo_forward.1} parent=5 // pred_check
      _
    $region10: #{bpure_sparse_backbone_geo_forward.1} parent=5 // pred_check_branch
      %160 = sbr.rel (%p157) target = $region12
    $region11: #{bpure_sparse_backbone_geo_forward.1} parent=5 // pred_region
      %s161 = ssub.s32 %s11, 1
      // Predicated region
      $region13: #{bpure_sparse_backbone_geo_forward.1} parent=11 // pred_check
        %p162 = pneg %p58
      $region14: #{bpure_sparse_backbone_geo_forward.1} parent=11 // pred_check_branch
        %164 = sbr.rel (%p162) target = $region16
      $region15: #{bpure_sparse_backbone_geo_forward.1} parent=11 // pred_region
        _
      $region16: #{bpure_sparse_backbone_geo_forward.1} parent=11 // pred_fallthru
        _
      // Predicated region
      $region17: #{bpure_sparse_backbone_geo_forward.1} parent=11 // pred_check
        %p165 = pneg %p79
      $region18: #{bpure_sparse_backbone_geo_forward.1} parent=11 // pred_check_branch
        %167 = sbr.rel (%p165) target = $region20
      $region19: #{bpure_sparse_backbone_geo_forward.1} parent=11 // pred_region
        _
      $region20: #{bpure_sparse_backbone_geo_forward.1} parent=11 // pred_fallthru
        _
      // Predicated region
      $region21: #{bpure_sparse_backbone_geo_forward.1} parent=11 // pred_check
        %p168 = pneg %p100
      $region22: #{bpure_sparse_backbone_geo_forward.1} parent=11 // pred_check_branch
        %170 = sbr.rel (%p168) target = $region24
      $region23: #{bpure_sparse_backbone_geo_forward.1} parent=11 // pred_region
        _
      $region24: #{bpure_sparse_backbone_geo_forward.1} parent=11 // pred_fallthru
        _
      // Predicated region
      $region25: #{bpure_sparse_backbone_geo_forward.1} parent=11 // pred_check
        %p171 = pneg %p121
      $region26: #{bpure_sparse_backbone_geo_forward.1} parent=11 // pred_check_branch
        %173 = sbr.rel (%p171) target = $region28
      $region27: #{bpure_sparse_backbone_geo_forward.1} parent=11 // pred_region
        _
      $region28: #{bpure_sparse_backbone_geo_forward.1} parent=11 // pred_fallthru
        _
    $region12: #{bpure_sparse_backbone_geo_forward.1} parent=5 // pred_fallthru
      _
    %p174 = scmp.lt.s32.totalorder %s11, 2
    // Predicated region
    $region29: #{bpure_sparse_backbone_geo_forward.1} parent=5 // pred_check
      %p175 = pneg %p174
    $region30: #{bpure_sparse_backbone_geo_forward.1} parent=5 // pred_check_branch
      %177 = sbr.rel (%p175) target = $region32
    $region31: #{bpure_sparse_backbone_geo_forward.1} parent=5 // pred_region
      // Predicated region
      $region33: #{bpure_sparse_backbone_geo_forward.1} parent=31 // pred_check
        %p178 = pneg %p31
      $region34: #{bpure_sparse_backbone_geo_forward.1} parent=31 // pred_check_branch
        %180 = sbr.rel (%p178) target = $region36
      $region35: #{bpure_sparse_backbone_geo_forward.1} parent=31 // pred_region
        %p181 = scmp.lt.s32.totalorder %s11, 1
        %s182 = scalar_select %p181, %s11, 1
        %s183 = smul.addr %s182, 32
        %s184 = smul.addr %s183, 4
        %s185 = scalar_lea.vmem %s0, %s184
      $region36: #{bpure_sparse_backbone_geo_forward.1} parent=31 // pred_fallthru
        _
    $region32: #{bpure_sparse_backbone_geo_forward.1} parent=5 // pred_fallthru
      _
    %p186 = scmp.le.s32.totalorder 1, %s11
    %p187 = scmp.lt.s32.totalorder %s11, 3
    %p188 = pnand %p186, %p187
    %p189 = pneg %p188
    // Predicated region
    $region37: #{bpure_sparse_backbone_geo_forward.1} parent=5 // pred_check
      _
    $region38: #{bpure_sparse_backbone_geo_forward.1} parent=5 // pred_check_branch
      %191 = sbr.rel (%p188) target = $region40
    $region39: #{bpure_sparse_backbone_geo_forward.1} parent=5 // pred_region
      %s192 = ssub.s32 %s11, 1
      %p193 = scmp.lt.s32.totalorder %s16, 1
      %s194 = scalar_select %p193, %s16, 1
      %s195 = smul.addr %s194, 32
      %s196 = smul.addr %s195, 4
      %s197 = scalar_lea.vmem %s0, %s196
      %p198 = pneg %p37
      %p199 = pneg %p34
      %p200 = pneg %p58
      %p201 = pneg %p55
      %p202 = pneg %p79
      %p203 = pneg %p76
      %p204 = pneg %p100
      %p205 = pneg %p97
      %p206 = pneg %p121
      %p207 = pneg %p118
      %p208 = pneg %p147
      %p209 = pneg %p144
      %p210 = scmp.lt.s32.totalorder %s16, 1
      %s211 = scalar_select %p210, %s16, 1
      %s212 = smul.addr %s211, 32
      %s213 = smul.addr %s212, 4
      %s214 = scalar_lea.vmem %s5, %s213
      %p215 = scmp.lt.s32.totalorder %s16, 1
      %s216 = scalar_select %p215, %s16, 1
      %s217 = smul.addr %s216, 32
      %s218 = smul.addr %s217, 4
      %s219 = scalar_lea.vmem %s0, %s218
      %p220 = scmp.lt.s32.totalorder %s16, 1
      %s221 = scalar_select %p220, %s16, 1
      %s222 = smul.addr %s221, 32
      %s223 = smul.addr %s222, 4
      %s224 = scalar_lea.vmem %s5, %s223
      %v226 = vld [vmem:[%s219] sm:$0xf]
      %v227 = vld [vmem:[%s219 + $0x4] sm:$0xf]
      %v228 = vld [vmem:[%s219 + $0x8] sm:$0xf]
      %v229 = vld [vmem:[%s219 + $0xc] sm:$0xf]
      %v230 = vld [vmem:[%s219 + $0x10] sm:$0xf]
      %v231 = vld [vmem:[%s219 + $0x14] sm:$0xf]
      %v232 = vld [vmem:[%s219 + $0x18] sm:$0xf]
      %v233 = vld [vmem:[%s219 + $0x1c] sm:$0xf]
      %v234 = vld [vmem:[%s219 + $0x20] sm:$0xf]
      %v235 = vld [vmem:[%s219 + $0x24] sm:$0xf]
      %v236 = vld [vmem:[%s219 + $0x28] sm:$0xf]
      %v237 = vld [vmem:[%s219 + $0x2c] sm:$0xf]
      %v238 = vld [vmem:[%s219 + $0x30] sm:$0xf]
      %v239 = vld [vmem:[%s219 + $0x34] sm:$0xf]
      %v240 = vld [vmem:[%s219 + $0x38] sm:$0xf]
      %v241 = vld [vmem:[%s219 + $0x3c] sm:$0xf]
      %v242 = vld [vmem:[%s219 + $0x40] sm:$0xf]
      %v243 = vld [vmem:[%s219 + $0x44] sm:$0xf]
      %v244 = vld [vmem:[%s219 + $0x48] sm:$0xf]
      %v245 = vld [vmem:[%s219 + $0x4c] sm:$0xf]
      %v246 = vld [vmem:[%s219 + $0x50] sm:$0xf]
      %v247 = vld [vmem:[%s219 + $0x54] sm:$0xf]
      %v248 = vld [vmem:[%s219 + $0x58] sm:$0xf]
      %v249 = vld [vmem:[%s219 + $0x5c] sm:$0xf]
      %v250 = vld [vmem:[%s219 + $0x60] sm:$0xf]
      %v251 = vld [vmem:[%s219 + $0x64] sm:$0xf]
      %v252 = vld [vmem:[%s219 + $0x68] sm:$0xf]
      %v253 = vld [vmem:[%s219 + $0x6c] sm:$0xf]
      %v254 = vld [vmem:[%s219 + $0x70] sm:$0xf]
      %v255 = vld [vmem:[%s219 + $0x74] sm:$0xf]
      %v256 = vld [vmem:[%s219 + $0x78] sm:$0xf]
      %v257 = vld [vmem:[%s219 + $0x7c] sm:$0xf]
      %v258 = vld [vmem:[%s1] sm:$0xf]
      %v259 = vld [vmem:[%s1 + $0x4] sm:$0xf]
      %v260 = vld [vmem:[%s1 + $0x8] sm:$0xf]
      %v261 = vld [vmem:[%s1 + $0xc] sm:$0xf]
      %v262 = vld [vmem:[%s1 + $0x10] sm:$0xf]
      %v263 = vld [vmem:[%s1 + $0x14] sm:$0xf]
      %v264 = vld [vmem:[%s1 + $0x18] sm:$0xf]
      %v265 = vld [vmem:[%s1 + $0x1c] sm:$0xf]
      %v266 = vld [vmem:[%s1 + $0x20] sm:$0xf]
      %v267 = vld [vmem:[%s1 + $0x24] sm:$0xf]
      %v268 = vld [vmem:[%s1 + $0x28] sm:$0xf]
      %v269 = vld [vmem:[%s1 + $0x2c] sm:$0xf]
      %v270 = vld [vmem:[%s1 + $0x30] sm:$0xf]
      %v271 = vld [vmem:[%s1 + $0x34] sm:$0xf]
      %v272 = vld [vmem:[%s1 + $0x38] sm:$0xf]
      %v273 = vld [vmem:[%s1 + $0x3c] sm:$0xf]
      %v274 = vld [vmem:[%s2] sm:$0x1]
      %v276 = vperm.slane %v274, 0
      %v310 = vunpack.c.l.b16 %v226
      %v311 = vunpack.c.l.b16 %v227
      %v312 = vunpack.c.l.b16 %v228
      %v313 = vunpack.c.l.b16 %v229
      %v314 = vunpack.c.l.b16 %v230
      %v315 = vunpack.c.l.b16 %v231
      %v316 = vunpack.c.l.b16 %v232
      %v317 = vunpack.c.l.b16 %v233
      %v318 = vunpack.c.l.b16 %v234
      %v319 = vunpack.c.l.b16 %v235
      %v320 = vunpack.c.l.b16 %v236
      %v321 = vunpack.c.l.b16 %v237
      %v322 = vunpack.c.l.b16 %v238
      %v323 = vunpack.c.l.b16 %v239
      %v324 = vunpack.c.l.b16 %v240
      %v325 = vunpack.c.l.b16 %v241
      %v326 = vunpack.c.l.b16 %v242
      %v327 = vunpack.c.l.b16 %v243
      %v328 = vunpack.c.l.b16 %v244
      %v329 = vunpack.c.l.b16 %v245
      %v330 = vunpack.c.l.b16 %v246
      %v331 = vunpack.c.l.b16 %v247
      %v332 = vunpack.c.l.b16 %v248
      %v333 = vunpack.c.l.b16 %v249
      %v334 = vunpack.c.l.b16 %v250
      %v335 = vunpack.c.l.b16 %v251
      %v336 = vunpack.c.l.b16 %v252
      %v337 = vunpack.c.l.b16 %v253
      %v338 = vunpack.c.l.b16 %v254
      %v339 = vunpack.c.l.b16 %v255
      %v340 = vunpack.c.l.b16 %v256
      %v341 = vunpack.c.l.b16 %v257
      %v342 = vpack.c.b16 %v311, %v310
      %v343 = vpack.c.b16 %v313, %v312
      %v344 = vpack.c.b16 %v315, %v314
      %v345 = vpack.c.b16 %v317, %v316
      %v346 = vpack.c.b16 %v319, %v318
      %v347 = vpack.c.b16 %v321, %v320
      %v348 = vpack.c.b16 %v323, %v322
      %v349 = vpack.c.b16 %v325, %v324
      %v350 = vpack.c.b16 %v327, %v326
      %v351 = vpack.c.b16 %v329, %v328
      %v352 = vpack.c.b16 %v331, %v330
      %v353 = vpack.c.b16 %v333, %v332
      %v354 = vpack.c.b16 %v335, %v334
      %v355 = vpack.c.b16 %v337, %v336
      %v356 = vpack.c.b16 %v339, %v338
      %v357 = vpack.c.b16 %v341, %v340
      %v390 = vunpack.c.l.b16 %v258
      %v391 = vunpack.c.l.b16 %v259
      %v392 = vunpack.c.l.b16 %v260
      %v393 = vunpack.c.l.b16 %v261
      %v394 = vunpack.c.l.b16 %v262
      %v395 = vunpack.c.l.b16 %v263
      %v396 = vunpack.c.l.b16 %v264
      %v397 = vunpack.c.l.b16 %v265
      %v398 = vunpack.c.l.b16 %v266
      %v399 = vunpack.c.l.b16 %v267
      %v400 = vunpack.c.l.b16 %v268
      %v401 = vunpack.c.l.b16 %v269
      %v402 = vunpack.c.l.b16 %v270
      %v403 = vunpack.c.l.b16 %v271
      %v404 = vunpack.c.l.b16 %v272
      %v405 = vunpack.c.l.b16 %v273
      %v406 = vpack.c.b16 %v391, %v390
      %v407 = vpack.c.b16 %v393, %v392
      %v408 = vpack.c.b16 %v395, %v394
      %v409 = vpack.c.b16 %v397, %v396
      %v410 = vpack.c.b16 %v399, %v398
      %v411 = vpack.c.b16 %v401, %v400
      %v412 = vpack.c.b16 %v403, %v402
      %v413 = vpack.c.b16 %v405, %v404
      %422 = vmatpush.bf16.msra.mxu0 %v413
      %423 = vmatpush.bf16.msra.mxu0 %v412
      %424 = vmatpush.bf16.msra.mxu0 %v411
      %425 = vmatpush.bf16.msra.mxu0 %v410
      %426 = vmatpush.bf16.msra.mxu0 %v409
      %427 = vmatpush.bf16.msra.mxu0 %v408
      %428 = vmatpush.bf16.msra.mxu0 %v407
      %429 = vmatpush.bf16.msra.mxu0 %v406
      %430 = vmatmul.bf16.gmra.mxu0 %v342
      %v431 = vpop.f32.mrf.mxu0
      %v432 = vadd.f32 %v276, %v431
      %v433 = vpop.f32.mrf.mxu0
      %v434 = vadd.f32 %v276, %v433
      %435 = vmatmul.bf16.gmra.mxu0 %v343
      %v436 = vpop.f32.mrf.mxu0
      %v437 = vadd.f32 %v276, %v436
      %v438 = vpop.f32.mrf.mxu0
      %v439 = vadd.f32 %v276, %v438
      %440 = vmatmul.bf16.gmra.mxu0 %v344
      %v441 = vpop.f32.mrf.mxu0
      %v442 = vadd.f32 %v276, %v441
      %v443 = vpop.f32.mrf.mxu0
      %v444 = vadd.f32 %v276, %v443
      %445 = vmatmul.bf16.gmra.mxu0 %v345
      %v446 = vpop.f32.mrf.mxu0
      %v447 = vadd.f32 %v276, %v446
      %v448 = vpop.f32.mrf.mxu0
      %v449 = vadd.f32 %v276, %v448
      %450 = vmatmul.bf16.gmra.mxu0 %v346
      %v451 = vpop.f32.mrf.mxu0
      %v452 = vadd.f32 %v276, %v451
      %v453 = vpop.f32.mrf.mxu0
      %v454 = vadd.f32 %v276, %v453
      %455 = vmatmul.bf16.gmra.mxu0 %v347
      %v456 = vpop.f32.mrf.mxu0
      %v457 = vadd.f32 %v276, %v456
      %v458 = vpop.f32.mrf.mxu0
      %v459 = vadd.f32 %v276, %v458
      %460 = vmatmul.bf16.gmra.mxu0 %v348
      %v461 = vpop.f32.mrf.mxu0
      %v462 = vadd.f32 %v276, %v461
      %v463 = vpop.f32.mrf.mxu0
      %v464 = vadd.f32 %v276, %v463
      %465 = vmatmul.bf16.gmra.mxu0 %v349
      %v466 = vpop.f32.mrf.mxu0
      %v467 = vadd.f32 %v276, %v466
      %v468 = vpop.f32.mrf.mxu0
      %v469 = vadd.f32 %v276, %v468
      %470 = vmatmul.bf16.gmra.mxu0 %v350
      %v471 = vpop.f32.mrf.mxu0
      %v472 = vadd.f32 %v276, %v471
      %v473 = vpop.f32.mrf.mxu0
      %v474 = vadd.f32 %v276, %v473
      %475 = vmatmul.bf16.gmra.mxu0 %v351
      %v476 = vpop.f32.mrf.mxu0
      %v477 = vadd.f32 %v276, %v476
      %v478 = vpop.f32.mrf.mxu0
      %v479 = vadd.f32 %v276, %v478
      %480 = vmatmul.bf16.gmra.mxu0 %v352
      %v481 = vpop.f32.mrf.mxu0
      %v482 = vadd.f32 %v276, %v481
      %v483 = vpop.f32.mrf.mxu0
      %v484 = vadd.f32 %v276, %v483
      %485 = vmatmul.bf16.gmra.mxu0 %v353
      %v486 = vpop.f32.mrf.mxu0
      %v487 = vadd.f32 %v276, %v486
      %v488 = vpop.f32.mrf.mxu0
      %v489 = vadd.f32 %v276, %v488
      %490 = vmatmul.bf16.gmra.mxu0 %v354
      %v491 = vpop.f32.mrf.mxu0
      %v492 = vadd.f32 %v276, %v491
      %v493 = vpop.f32.mrf.mxu0
      %v494 = vadd.f32 %v276, %v493
      %495 = vmatmul.bf16.gmra.mxu0 %v355
      %v496 = vpop.f32.mrf.mxu0
      %v497 = vadd.f32 %v276, %v496
      %v498 = vpop.f32.mrf.mxu0
      %v499 = vadd.f32 %v276, %v498
      %500 = vmatmul.bf16.gmra.mxu0 %v356
      %v501 = vpop.f32.mrf.mxu0
      %v502 = vadd.f32 %v276, %v501
      %v503 = vpop.f32.mrf.mxu0
      %v504 = vadd.f32 %v276, %v503
      %505 = vmatmul.bf16.gmra.mxu0 %v357
      %v506 = vpop.f32.mrf.mxu0
      %v507 = vadd.f32 %v276, %v506
      %v508 = vpop.f32.mrf.mxu0
      %v509 = vadd.f32 %v276, %v508
      %510 = vdwg.mxu0
      %v511 = vmax.f32 %v432, 0.0
      %v512 = vmax.f32 %v434, 0.0
      %v513 = vmax.f32 %v437, 0.0
      %v514 = vmax.f32 %v439, 0.0
      %v515 = vmax.f32 %v442, 0.0
      %v516 = vmax.f32 %v444, 0.0
      %v517 = vmax.f32 %v447, 0.0
      %v518 = vmax.f32 %v449, 0.0
      %v519 = vmax.f32 %v452, 0.0
      %v520 = vmax.f32 %v454, 0.0
      %v521 = vmax.f32 %v457, 0.0
      %v522 = vmax.f32 %v459, 0.0
      %v523 = vmax.f32 %v462, 0.0
      %v524 = vmax.f32 %v464, 0.0
      %v525 = vmax.f32 %v467, 0.0
      %v526 = vmax.f32 %v469, 0.0
      %v527 = vmax.f32 %v472, 0.0
      %v528 = vmax.f32 %v474, 0.0
      %v529 = vmax.f32 %v477, 0.0
      %v530 = vmax.f32 %v479, 0.0
      %v531 = vmax.f32 %v482, 0.0
      %v532 = vmax.f32 %v484, 0.0
      %v533 = vmax.f32 %v487, 0.0
      %v534 = vmax.f32 %v489, 0.0
      %v535 = vmax.f32 %v492, 0.0
      %v536 = vmax.f32 %v494, 0.0
      %v537 = vmax.f32 %v497, 0.0
      %v538 = vmax.f32 %v499, 0.0
      %v539 = vmax.f32 %v502, 0.0
      %v540 = vmax.f32 %v504, 0.0
      %v541 = vmax.f32 %v507, 0.0
      %v542 = vmax.f32 %v509, 0.0
      %vm543 = vcmask 257024
      %544 = vst.msk [vmem:[#allocation3] sm:$0xf] %vm543, 0
      %545 = vst.msk [vmem:[#allocation3 + $0x4] sm:$0xf] %vm543, 0
      %vm546 = vcmask 253952
      %547 = vst.msk [vmem:[#allocation3 + $0x8] sm:$0x1] %vm546, 0
      %s548 = scalar_lea.vmem [#allocation3], 204
      %549 = vst.msk [vmem:[%s548] sm:$0xf] %vm543, 0
      %550 = vst.msk [vmem:[%s548 + $0x4] sm:$0xf] %vm543, 0
      %551 = vst.msk [vmem:[%s548 + $0x8] sm:$0x1] %vm546, 0
      %vm552 = vcmask 253952
      %vm553 = vsmask.f32 256
      %vm554 = vmand %vm552, %vm553
      %v555 = vld [vmem:[#allocation3] sm:$0x1]
      %v556 = vsel %vm554, 0, %v555
      %557 = vst [vmem:[#allocation3] sm:$0x1] %v556
      %v558 = vld [vmem:[#allocation3 + $0xc] sm:$0x1]
      %v559 = vsel %vm554, 0, %v558
      %560 = vst [vmem:[#allocation3 + $0xc] sm:$0x1] %v559
      %v561 = vld [vmem:[#allocation3 + $0x18] sm:$0x1]
      %v562 = vsel %vm554, 0, %v561
      %563 = vst [vmem:[#allocation3 + $0x18] sm:$0x1] %v562
      %v564 = vld [vmem:[#allocation3 + $0x24] sm:$0x1]
      %v565 = vsel %vm554, 0, %v564
      %566 = vst [vmem:[#allocation3 + $0x24] sm:$0x1] %v565
      %v567 = vld [vmem:[#allocation3 + $0x30] sm:$0x1]
      %v568 = vsel %vm554, 0, %v567
      %569 = vst [vmem:[#allocation3 + $0x30] sm:$0x1] %v568
      %v570 = vld [vmem:[#allocation3 + $0x3c] sm:$0x1]
      %v571 = vsel %vm554, 0, %v570
      %572 = vst [vmem:[#allocation3 + $0x3c] sm:$0x1] %v571
      %v573 = vld [vmem:[#allocation3 + $0x48] sm:$0x1]
      %v574 = vsel %vm554, 0, %v573
      %575 = vst [vmem:[#allocation3 + $0x48] sm:$0x1] %v574
      %v576 = vld [vmem:[#allocation3 + $0x54] sm:$0x1]
      %v577 = vsel %vm554, 0, %v576
      %578 = vst [vmem:[#allocation3 + $0x54] sm:$0x1] %v577
      %v579 = vld [vmem:[#allocation3 + $0x60] sm:$0x1]
      %v580 = vsel %vm554, 0, %v579
      %581 = vst [vmem:[#allocation3 + $0x60] sm:$0x1] %v580
      %v582 = vld [vmem:[#allocation3 + $0x6c] sm:$0x1]
      %v583 = vsel %vm554, 0, %v582
      %584 = vst [vmem:[#allocation3 + $0x6c] sm:$0x1] %v583
      %v585 = vld [vmem:[#allocation3 + $0x78] sm:$0x1]
      %v586 = vsel %vm554, 0, %v585
      %587 = vst [vmem:[#allocation3 + $0x78] sm:$0x1] %v586
      %v588 = vld [vmem:[#allocation3 + $0x84] sm:$0x1]
      %v589 = vsel %vm554, 0, %v588
      %590 = vst [vmem:[#allocation3 + $0x84] sm:$0x1] %v589
      %v591 = vld [vmem:[#allocation3 + $0x90] sm:$0x1]
      %v592 = vsel %vm554, 0, %v591
      %593 = vst [vmem:[#allocation3 + $0x90] sm:$0x1] %v592
      %v594 = vld [vmem:[#allocation3 + $0x9c] sm:$0x1]
      %v595 = vsel %vm554, 0, %v594
      %596 = vst [vmem:[#allocation3 + $0x9c] sm:$0x1] %v595
      %v597 = vld [vmem:[#allocation3 + $0xa8] sm:$0x1]
      %v598 = vsel %vm554, 0, %v597
      %599 = vst [vmem:[#allocation3 + $0xa8] sm:$0x1] %v598
      %v600 = vld [vmem:[#allocation3 + $0xb4] sm:$0x1]
      %v601 = vsel %vm554, 0, %v600
      %602 = vst [vmem:[#allocation3 + $0xb4] sm:$0x1] %v601
      %v603 = vld [vmem:[#allocation3 + $0xc0] sm:$0x1]
      %v604 = vsel %vm554, 0, %v603
      %605 = vst [vmem:[#allocation3 + $0xc0] sm:$0x1] %v604
      %v606 = vld [vmem:[#allocation3 + $0xcc] sm:$0x1]
      %v607 = vsel %vm554, 0, %v606
      %608 = vst [vmem:[#allocation3 + $0xcc] sm:$0x1] %v607
      %vm609 = vsmask.f32 7938
      %vm610 = vmand %vm552, %vm609
      %v611 = vld [vmem:[#allocation3 + $0x8] sm:$0x1]
      %v612 = vsel %vm610, 0, %v611
      %613 = vst [vmem:[#allocation3 + $0x8] sm:$0x1] %v612
      %v614 = vld [vmem:[#allocation3 + $0x14] sm:$0x1]
      %v615 = vsel %vm610, 0, %v614
      %616 = vst [vmem:[#allocation3 + $0x14] sm:$0x1] %v615
      %v617 = vld [vmem:[#allocation3 + $0x20] sm:$0x1]
      %v618 = vsel %vm610, 0, %v617
      %619 = vst [vmem:[#allocation3 + $0x20] sm:$0x1] %v618
      %v620 = vld [vmem:[#allocation3 + $0x2c] sm:$0x1]
      %v621 = vsel %vm610, 0, %v620
      %622 = vst [vmem:[#allocation3 + $0x2c] sm:$0x1] %v621
      %v623 = vld [vmem:[#allocation3 + $0x38] sm:$0x1]
      %v624 = vsel %vm610, 0, %v623
      %625 = vst [vmem:[#allocation3 + $0x38] sm:$0x1] %v624
      %v626 = vld [vmem:[#allocation3 + $0x44] sm:$0x1]
      %v627 = vsel %vm610, 0, %v626
      %628 = vst [vmem:[#allocation3 + $0x44] sm:$0x1] %v627
      %v629 = vld [vmem:[#allocation3 + $0x50] sm:$0x1]
      %v630 = vsel %vm610, 0, %v629
      %631 = vst [vmem:[#allocation3 + $0x50] sm:$0x1] %v630
      %v632 = vld [vmem:[#allocation3 + $0x5c] sm:$0x1]
      %v633 = vsel %vm610, 0, %v632
      %634 = vst [vmem:[#allocation3 + $0x5c] sm:$0x1] %v633
      %v635 = vld [vmem:[#allocation3 + $0x68] sm:$0x1]
      %v636 = vsel %vm610, 0, %v635
      %637 = vst [vmem:[#allocation3 + $0x68] sm:$0x1] %v636
      %v638 = vld [vmem:[#allocation3 + $0x74] sm:$0x1]
      %v639 = vsel %vm610, 0, %v638
      %640 = vst [vmem:[#allocation3 + $0x74] sm:$0x1] %v639
      %v641 = vld [vmem:[#allocation3 + $0x80] sm:$0x1]
      %v642 = vsel %vm610, 0, %v641
      %643 = vst [vmem:[#allocation3 + $0x80] sm:$0x1] %v642
      %v644 = vld [vmem:[#allocation3 + $0x8c] sm:$0x1]
      %v645 = vsel %vm610, 0, %v644
      %646 = vst [vmem:[#allocation3 + $0x8c] sm:$0x1] %v645
      %v647 = vld [vmem:[#allocation3 + $0x98] sm:$0x1]
      %v648 = vsel %vm610, 0, %v647
      %649 = vst [vmem:[#allocation3 + $0x98] sm:$0x1] %v648
      %v650 = vld [vmem:[#allocation3 + $0xa4] sm:$0x1]
      %v651 = vsel %vm610, 0, %v650
      %652 = vst [vmem:[#allocation3 + $0xa4] sm:$0x1] %v651
      %v653 = vld [vmem:[#allocation3 + $0xb0] sm:$0x1]
      %v654 = vsel %vm610, 0, %v653
      %655 = vst [vmem:[#allocation3 + $0xb0] sm:$0x1] %v654
      %v656 = vld [vmem:[#allocation3 + $0xbc] sm:$0x1]
      %v657 = vsel %vm610, 0, %v656
      %658 = vst [vmem:[#allocation3 + $0xbc] sm:$0x1] %v657
      %v659 = vld [vmem:[#allocation3 + $0xc8] sm:$0x1]
      %v660 = vsel %vm610, 0, %v659
      %661 = vst [vmem:[#allocation3 + $0xc8] sm:$0x1] %v660
      %v662 = vld [vmem:[#allocation3 + $0xd4] sm:$0x1]
      %v663 = vsel %vm610, 0, %v662
      %664 = vst [vmem:[#allocation3 + $0xd4] sm:$0x1] %v663
      %v665 = vpack.c.bf16 %v511, %v511
      %v666 = vpack.c.bf16 %v512, %v512
      %v667 = vpack.c.bf16 %v513, %v513
      %v668 = vpack.c.bf16 %v514, %v514
      %v669 = vpack.c.bf16 %v515, %v515
      %v670 = vpack.c.bf16 %v516, %v516
      %v671 = vpack.c.bf16 %v517, %v517
      %v672 = vpack.c.bf16 %v518, %v518
      %v673 = vpack.c.bf16 %v519, %v519
      %v674 = vpack.c.bf16 %v520, %v520
      %v675 = vpack.c.bf16 %v521, %v521
      %v676 = vpack.c.bf16 %v522, %v522
      %v677 = vpack.c.bf16 %v523, %v523
      %v678 = vpack.c.bf16 %v524, %v524
      %v679 = vpack.c.bf16 %v525, %v525
      %v680 = vpack.c.bf16 %v526, %v526
      %v681 = vpack.c.bf16 %v527, %v527
      %v682 = vpack.c.bf16 %v528, %v528
      %v683 = vpack.c.bf16 %v529, %v529
      %v684 = vpack.c.bf16 %v530, %v530
      %v685 = vpack.c.bf16 %v531, %v531
      %v686 = vpack.c.bf16 %v532, %v532
      %v687 = vpack.c.bf16 %v533, %v533
      %v688 = vpack.c.bf16 %v534, %v534
      %v689 = vpack.c.bf16 %v535, %v535
      %v690 = vpack.c.bf16 %v536, %v536
      %v691 = vpack.c.bf16 %v537, %v537
      %v692 = vpack.c.bf16 %v538, %v538
      %v693 = vpack.c.bf16 %v539, %v539
      %v694 = vpack.c.bf16 %v540, %v540
      %v695 = vpack.c.bf16 %v541, %v541
      %v696 = vpack.c.bf16 %v542, %v542
      %vm697 = vsmask.f32 4368
      %vm698 = vmor %vm553, %vm697
      %v700 = vshrl.u32 %v665, 16
      %v702 = vrot.slane %v700, 7
      %v703 = vshll.u32 %v665, 16
      %v705 = vor.u32 %v702, %v703
      %v706 = vrot.slane %v702, 4
      %v708 = vshrl.u32 %v666, 16
      %v710 = vrot.slane %v708, 7
      %v711 = vshll.u32 %v666, 16
      %v713 = vor.u32 %v710, %v711
      %v714 = vsel %vm698, %v706, %v713
      %v715 = vrot.slane %v710, 4
      %v717 = vshrl.u32 %v667, 16
      %v719 = vrot.slane %v717, 7
      %v720 = vshll.u32 %v667, 16
      %v722 = vor.u32 %v719, %v720
      %v723 = vrot.slane %v719, 4
      %v725 = vshrl.u32 %v668, 16
      %v727 = vrot.slane %v725, 7
      %v728 = vshll.u32 %v668, 16
      %v730 = vor.u32 %v727, %v728
      %v731 = vsel %vm698, %v723, %v730
      %v732 = vrot.slane %v727, 4
      %v734 = vshrl.u32 %v669, 16
      %v736 = vrot.slane %v734, 7
      %v737 = vshll.u32 %v669, 16
      %v739 = vor.u32 %v736, %v737
      %v740 = vrot.slane %v736, 4
      %v742 = vshrl.u32 %v670, 16
      %v744 = vrot.slane %v742, 7
      %v745 = vshll.u32 %v670, 16
      %v747 = vor.u32 %v744, %v745
      %v748 = vsel %vm698, %v740, %v747
      %v749 = vrot.slane %v744, 4
      %v751 = vshrl.u32 %v671, 16
      %v753 = vrot.slane %v751, 7
      %v754 = vshll.u32 %v671, 16
      %v756 = vor.u32 %v753, %v754
      %v757 = vrot.slane %v753, 4
      %v759 = vshrl.u32 %v672, 16
      %v761 = vrot.slane %v759, 7
      %v762 = vshll.u32 %v672, 16
      %v764 = vor.u32 %v761, %v762
      %v765 = vsel %vm698, %v757, %v764
      %v766 = vrot.slane %v761, 4
      %v768 = vshrl.u32 %v673, 16
      %v770 = vrot.slane %v768, 7
      %v771 = vshll.u32 %v673, 16
      %v773 = vor.u32 %v770, %v771
      %v774 = vrot.slane %v770, 4
      %v776 = vshrl.u32 %v674, 16
      %v778 = vrot.slane %v776, 7
      %v779 = vshll.u32 %v674, 16
      %v781 = vor.u32 %v778, %v779
      %v782 = vsel %vm698, %v774, %v781
      %v783 = vrot.slane %v778, 4
      %v785 = vshrl.u32 %v675, 16
      %v787 = vrot.slane %v785, 7
      %v788 = vshll.u32 %v675, 16
      %v790 = vor.u32 %v787, %v788
      %v791 = vrot.slane %v787, 4
      %v793 = vshrl.u32 %v676, 16
      %v795 = vrot.slane %v793, 7
      %v796 = vshll.u32 %v676, 16
      %v798 = vor.u32 %v795, %v796
      %v799 = vsel %vm698, %v791, %v798
      %v800 = vrot.slane %v795, 4
      %v802 = vshrl.u32 %v677, 16
      %v804 = vrot.slane %v802, 7
      %v805 = vshll.u32 %v677, 16
      %v807 = vor.u32 %v804, %v805
      %v808 = vrot.slane %v804, 4
      %v810 = vshrl.u32 %v678, 16
      %v812 = vrot.slane %v810, 7
      %v813 = vshll.u32 %v678, 16
      %v815 = vor.u32 %v812, %v813
      %v816 = vsel %vm698, %v808, %v815
      %v817 = vrot.slane %v812, 4
      %v819 = vshrl.u32 %v679, 16
      %v821 = vrot.slane %v819, 7
      %v822 = vshll.u32 %v679, 16
      %v824 = vor.u32 %v821, %v822
      %v825 = vrot.slane %v821, 4
      %v827 = vshrl.u32 %v680, 16
      %v829 = vrot.slane %v827, 7
      %v830 = vshll.u32 %v680, 16
      %v832 = vor.u32 %v829, %v830
      %v833 = vsel %vm698, %v825, %v832
      %v834 = vrot.slane %v829, 4
      %v836 = vshrl.u32 %v681, 16
      %v838 = vrot.slane %v836, 7
      %v839 = vshll.u32 %v681, 16
      %v841 = vor.u32 %v838, %v839
      %v842 = vrot.slane %v838, 4
      %v844 = vshrl.u32 %v682, 16
      %v846 = vrot.slane %v844, 7
      %v847 = vshll.u32 %v682, 16
      %v849 = vor.u32 %v846, %v847
      %v850 = vsel %vm698, %v842, %v849
      %v851 = vrot.slane %v846, 4
      %v853 = vshrl.u32 %v683, 16
      %v855 = vrot.slane %v853, 7
      %v856 = vshll.u32 %v683, 16
      %v858 = vor.u32 %v855, %v856
      %v859 = vrot.slane %v855, 4
      %v861 = vshrl.u32 %v684, 16
      %v863 = vrot.slane %v861, 7
      %v864 = vshll.u32 %v684, 16
      %v866 = vor.u32 %v863, %v864
      %v867 = vsel %vm698, %v859, %v866
      %v868 = vrot.slane %v863, 4
      %v870 = vshrl.u32 %v685, 16
      %v872 = vrot.slane %v870, 7
      %v873 = vshll.u32 %v685, 16
      %v875 = vor.u32 %v872, %v873
      %v876 = vrot.slane %v872, 4
      %v878 = vshrl.u32 %v686, 16
      %v880 = vrot.slane %v878, 7
      %v881 = vshll.u32 %v686, 16
      %v883 = vor.u32 %v880, %v881
      %v884 = vsel %vm698, %v876, %v883
      %v885 = vrot.slane %v880, 4
      %v887 = vshrl.u32 %v687, 16
      %v889 = vrot.slane %v887, 7
      %v890 = vshll.u32 %v687, 16
      %v892 = vor.u32 %v889, %v890
      %v893 = vrot.slane %v889, 4
      %v895 = vshrl.u32 %v688, 16
      %v897 = vrot.slane %v895, 7
      %v898 = vshll.u32 %v688, 16
      %v900 = vor.u32 %v897, %v898
      %v901 = vsel %vm698, %v893, %v900
      %v902 = vrot.slane %v897, 4
      %v904 = vshrl.u32 %v689, 16
      %v906 = vrot.slane %v904, 7
      %v907 = vshll.u32 %v689, 16
      %v909 = vor.u32 %v906, %v907
      %v910 = vrot.slane %v906, 4
      %v912 = vshrl.u32 %v690, 16
      %v914 = vrot.slane %v912, 7
      %v915 = vshll.u32 %v690, 16
      %v917 = vor.u32 %v914, %v915
      %v918 = vsel %vm698, %v910, %v917
      %v919 = vrot.slane %v914, 4
      %v921 = vshrl.u32 %v691, 16
      %v923 = vrot.slane %v921, 7
      %v924 = vshll.u32 %v691, 16
      %v926 = vor.u32 %v923, %v924
      %v927 = vrot.slane %v923, 4
      %v929 = vshrl.u32 %v692, 16
      %v931 = vrot.slane %v929, 7
      %v932 = vshll.u32 %v692, 16
      %v934 = vor.u32 %v931, %v932
      %v935 = vsel %vm698, %v927, %v934
      %v936 = vrot.slane %v931, 4
      %v938 = vshrl.u32 %v693, 16
      %v940 = vrot.slane %v938, 7
      %v941 = vshll.u32 %v693, 16
      %v943 = vor.u32 %v940, %v941
      %v944 = vrot.slane %v940, 4
      %v946 = vshrl.u32 %v694, 16
      %v948 = vrot.slane %v946, 7
      %v949 = vshll.u32 %v694, 16
      %v951 = vor.u32 %v948, %v949
      %v952 = vsel %vm698, %v944, %v951
      %v953 = vrot.slane %v948, 4
      %v955 = vshrl.u32 %v695, 16
      %v957 = vrot.slane %v955, 7
      %v958 = vshll.u32 %v695, 16
      %v960 = vor.u32 %v957, %v958
      %v961 = vrot.slane %v957, 4
      %v963 = vshrl.u32 %v696, 16
      %v965 = vrot.slane %v963, 7
      %v966 = vshll.u32 %v696, 16
      %v968 = vor.u32 %v965, %v966
      %v969 = vsel %vm698, %v961, %v968
      %v970 = vrot.slane %v965, 4
      %s1019 = scalar_lea.vmem [#allocation3], 12
      %vm1020 = vcmask 257024
      %vm1021 = vmand %vm1020, %vm609
      %v1022 = vld [vmem:[%s1019] sm:$0xf]
      %v1023 = vsel %vm1021, %v705, %v1022
      %1024 = vst [vmem:[%s1019] sm:$0xf] %v1023
      %1025 = vst.msk [vmem:[%s1019 + $0x4] sm:$0xf] %vm543, %v714
      %v1026 = vld [vmem:[%s1019 + $0x8] sm:$0x1]
      %v1027 = vsel %vm554, %v715, %v1026
      %1028 = vst [vmem:[%s1019 + $0x8] sm:$0x1] %v1027
      %v1029 = vld [vmem:[%s1019 + $0xc] sm:$0xf]
      %v1030 = vsel %vm1021, %v722, %v1029
      %1031 = vst [vmem:[%s1019 + $0xc] sm:$0xf] %v1030
      %1032 = vst.msk [vmem:[%s1019 + $0x10] sm:$0xf] %vm543, %v731
      %v1033 = vld [vmem:[%s1019 + $0x14] sm:$0x1]
      %v1034 = vsel %vm554, %v732, %v1033
      %1035 = vst [vmem:[%s1019 + $0x14] sm:$0x1] %v1034
      %v1036 = vld [vmem:[%s1019 + $0x18] sm:$0xf]
      %v1037 = vsel %vm1021, %v739, %v1036
      %1038 = vst [vmem:[%s1019 + $0x18] sm:$0xf] %v1037
      %1039 = vst.msk [vmem:[%s1019 + $0x1c] sm:$0xf] %vm543, %v748
      %v1040 = vld [vmem:[%s1019 + $0x20] sm:$0x1]
      %v1041 = vsel %vm554, %v749, %v1040
      %1042 = vst [vmem:[%s1019 + $0x20] sm:$0x1] %v1041
      %v1043 = vld [vmem:[%s1019 + $0x24] sm:$0xf]
      %v1044 = vsel %vm1021, %v756, %v1043
      %1045 = vst [vmem:[%s1019 + $0x24] sm:$0xf] %v1044
      %1046 = vst.msk [vmem:[%s1019 + $0x28] sm:$0xf] %vm543, %v765
      %v1047 = vld [vmem:[%s1019 + $0x2c] sm:$0x1]
      %v1048 = vsel %vm554, %v766, %v1047
      %1049 = vst [vmem:[%s1019 + $0x2c] sm:$0x1] %v1048
      %v1050 = vld [vmem:[%s1019 + $0x30] sm:$0xf]
      %v1051 = vsel %vm1021, %v773, %v1050
      %1052 = vst [vmem:[%s1019 + $0x30] sm:$0xf] %v1051
      %1053 = vst.msk [vmem:[%s1019 + $0x34] sm:$0xf] %vm543, %v782
      %v1054 = vld [vmem:[%s1019 + $0x38] sm:$0x1]
      %v1055 = vsel %vm554, %v783, %v1054
      %1056 = vst [vmem:[%s1019 + $0x38] sm:$0x1] %v1055
      %v1057 = vld [vmem:[%s1019 + $0x3c] sm:$0xf]
      %v1058 = vsel %vm1021, %v790, %v1057
      %1059 = vst [vmem:[%s1019 + $0x3c] sm:$0xf] %v1058
      %1060 = vst.msk [vmem:[%s1019 + $0x40] sm:$0xf] %vm543, %v799
      %v1061 = vld [vmem:[%s1019 + $0x44] sm:$0x1]
      %v1062 = vsel %vm554, %v800, %v1061
      %1063 = vst [vmem:[%s1019 + $0x44] sm:$0x1] %v1062
      %v1064 = vld [vmem:[%s1019 + $0x48] sm:$0xf]
      %v1065 = vsel %vm1021, %v807, %v1064
      %1066 = vst [vmem:[%s1019 + $0x48] sm:$0xf] %v1065
      %1067 = vst.msk [vmem:[%s1019 + $0x4c] sm:$0xf] %vm543, %v816
      %v1068 = vld [vmem:[%s1019 + $0x50] sm:$0x1]
      %v1069 = vsel %vm554, %v817, %v1068
      %1070 = vst [vmem:[%s1019 + $0x50] sm:$0x1] %v1069
      %v1071 = vld [vmem:[%s1019 + $0x54] sm:$0xf]
      %v1072 = vsel %vm1021, %v824, %v1071
      %1073 = vst [vmem:[%s1019 + $0x54] sm:$0xf] %v1072
      %1074 = vst.msk [vmem:[%s1019 + $0x58] sm:$0xf] %vm543, %v833
      %v1075 = vld [vmem:[%s1019 + $0x5c] sm:$0x1]
      %v1076 = vsel %vm554, %v834, %v1075
      %1077 = vst [vmem:[%s1019 + $0x5c] sm:$0x1] %v1076
      %v1078 = vld [vmem:[%s1019 + $0x60] sm:$0xf]
      %v1079 = vsel %vm1021, %v841, %v1078
      %1080 = vst [vmem:[%s1019 + $0x60] sm:$0xf] %v1079
      %1081 = vst.msk [vmem:[%s1019 + $0x64] sm:$0xf] %vm543, %v850
      %v1082 = vld [vmem:[%s1019 + $0x68] sm:$0x1]
      %v1083 = vsel %vm554, %v851, %v1082
      %1084 = vst [vmem:[%s1019 + $0x68] sm:$0x1] %v1083
      %v1085 = vld [vmem:[%s1019 + $0x6c] sm:$0xf]
      %v1086 = vsel %vm1021, %v858, %v1085
      %1087 = vst [vmem:[%s1019 + $0x6c] sm:$0xf] %v1086
      %1088 = vst.msk [vmem:[%s1019 + $0x70] sm:$0xf] %vm543, %v867
      %v1089 = vld [vmem:[%s1019 + $0x74] sm:$0x1]
      %v1090 = vsel %vm554, %v868, %v1089
      %1091 = vst [vmem:[%s1019 + $0x74] sm:$0x1] %v1090
      %v1092 = vld [vmem:[%s1019 + $0x78] sm:$0xf]
      %v1093 = vsel %vm1021, %v875, %v1092
      %1094 = vst [vmem:[%s1019 + $0x78] sm:$0xf] %v1093
      %1095 = vst.msk [vmem:[%s1019 + $0x7c] sm:$0xf] %vm543, %v884
      %v1096 = vld [vmem:[%s1019 + $0x80] sm:$0x1]
      %v1097 = vsel %vm554, %v885, %v1096
      %1098 = vst [vmem:[%s1019 + $0x80] sm:$0x1] %v1097
      %v1099 = vld [vmem:[%s1019 + $0x84] sm:$0xf]
      %v1100 = vsel %vm1021, %v892, %v1099
      %1101 = vst [vmem:[%s1019 + $0x84] sm:$0xf] %v1100
      %1102 = vst.msk [vmem:[%s1019 + $0x88] sm:$0xf] %vm543, %v901
      %v1103 = vld [vmem:[%s1019 + $0x8c] sm:$0x1]
      %v1104 = vsel %vm554, %v902, %v1103
      %1105 = vst [vmem:[%s1019 + $0x8c] sm:$0x1] %v1104
      %v1106 = vld [vmem:[%s1019 + $0x90] sm:$0xf]
      %v1107 = vsel %vm1021, %v909, %v1106
      %1108 = vst [vmem:[%s1019 + $0x90] sm:$0xf] %v1107
      %1109 = vst.msk [vmem:[%s1019 + $0x94] sm:$0xf] %vm543, %v918
      %v1110 = vld [vmem:[%s1019 + $0x98] sm:$0x1]
      %v1111 = vsel %vm554, %v919, %v1110
      %1112 = vst [vmem:[%s1019 + $0x98] sm:$0x1] %v1111
      %v1113 = vld [vmem:[%s1019 + $0x9c] sm:$0xf]
      %v1114 = vsel %vm1021, %v926, %v1113
      %1115 = vst [vmem:[%s1019 + $0x9c] sm:$0xf] %v1114
      %1116 = vst.msk [vmem:[%s1019 + $0xa0] sm:$0xf] %vm543, %v935
      %v1117 = vld [vmem:[%s1019 + $0xa4] sm:$0x1]
      %v1118 = vsel %vm554, %v936, %v1117
      %1119 = vst [vmem:[%s1019 + $0xa4] sm:$0x1] %v1118
      %v1120 = vld [vmem:[%s1019 + $0xa8] sm:$0xf]
      %v1121 = vsel %vm1021, %v943, %v1120
      %1122 = vst [vmem:[%s1019 + $0xa8] sm:$0xf] %v1121
      %1123 = vst.msk [vmem:[%s1019 + $0xac] sm:$0xf] %vm543, %v952
      %v1124 = vld [vmem:[%s1019 + $0xb0] sm:$0x1]
      %v1125 = vsel %vm554, %v953, %v1124
      %1126 = vst [vmem:[%s1019 + $0xb0] sm:$0x1] %v1125
      %v1127 = vld [vmem:[%s1019 + $0xb4] sm:$0xf]
      %v1128 = vsel %vm1021, %v960, %v1127
      %1129 = vst [vmem:[%s1019 + $0xb4] sm:$0xf] %v1128
      %1130 = vst.msk [vmem:[%s1019 + $0xb8] sm:$0xf] %vm543, %v969
      %v1131 = vld [vmem:[%s1019 + $0xbc] sm:$0x1]
      %v1132 = vsel %vm554, %v970, %v1131
      %1133 = vst [vmem:[%s1019 + $0xbc] sm:$0x1] %v1132
      %v1134 = vld [vmem:[#allocation3] sm:$0xf]
      %v1135 = vld [vmem:[#allocation3 + $0x4] sm:$0xf]
      %v1136 = vld [vmem:[#allocation3 + $0xc] sm:$0xf]
      %v1137 = vld [vmem:[#allocation3 + $0x10] sm:$0xf]
      %v1138 = vld [vmem:[#allocation3 + $0x18] sm:$0xf]
      %v1139 = vld [vmem:[#allocation3 + $0x1c] sm:$0xf]
      %v1140 = vld [vmem:[#allocation3 + $0x24] sm:$0xf]
      %v1141 = vld [vmem:[#allocation3 + $0x28] sm:$0xf]
      %v1142 = vld [vmem:[#allocation3 + $0x30] sm:$0xf]
      %v1143 = vld [vmem:[#allocation3 + $0x34] sm:$0xf]
      %v1144 = vld [vmem:[#allocation3 + $0x3c] sm:$0xf]
      %v1145 = vld [vmem:[#allocation3 + $0x40] sm:$0xf]
      %v1146 = vld [vmem:[#allocation3 + $0x48] sm:$0xf]
      %v1147 = vld [vmem:[#allocation3 + $0x4c] sm:$0xf]
      %v1148 = vld [vmem:[#allocation3 + $0x54] sm:$0xf]
      %v1149 = vld [vmem:[#allocation3 + $0x58] sm:$0xf]
      %v1150 = vld [vmem:[#allocation3 + $0x60] sm:$0xf]
      %v1151 = vld [vmem:[#allocation3 + $0x64] sm:$0xf]
      %v1152 = vld [vmem:[#allocation3 + $0x6c] sm:$0xf]
      %v1153 = vld [vmem:[#allocation3 + $0x70] sm:$0xf]
      %v1154 = vld [vmem:[#allocation3 + $0x78] sm:$0xf]
      %v1155 = vld [vmem:[#allocation3 + $0x7c] sm:$0xf]
      %v1156 = vld [vmem:[#allocation3 + $0x84] sm:$0xf]
      %v1157 = vld [vmem:[#allocation3 + $0x88] sm:$0xf]
      %v1158 = vld [vmem:[#allocation3 + $0x90] sm:$0xf]
      %v1159 = vld [vmem:[#allocation3 + $0x94] sm:$0xf]
      %v1160 = vld [vmem:[#allocation3 + $0x9c] sm:$0xf]
      %v1161 = vld [vmem:[#allocation3 + $0xa0] sm:$0xf]
      %v1162 = vld [vmem:[#allocation3 + $0xa8] sm:$0xf]
      %v1163 = vld [vmem:[#allocation3 + $0xac] sm:$0xf]
      %v1164 = vld [vmem:[#allocation3 + $0xb4] sm:$0xf]
      %v1165 = vld [vmem:[#allocation3 + $0xb8] sm:$0xf]
      %1166 = vst.msk [vmem:[#allocation2] sm:$0xf] %vm543, %v1134
      %1167 = vst.msk [vmem:[#allocation2 + $0xc] sm:$0xf] %vm543, %v1135
      %1168 = vst.msk [vmem:[#allocation2 + $0x18] sm:$0xf] %vm543, %v1136
      %1169 = vst.msk [vmem:[#allocation2 + $0x24] sm:$0xf] %vm543, %v1137
      %1170 = vst.msk [vmem:[#allocation2 + $0x30] sm:$0xf] %vm543, %v1138
      %1171 = vst.msk [vmem:[#allocation2 + $0x3c] sm:$0xf] %vm543, %v1139
      %1172 = vst.msk [vmem:[#allocation2 + $0x48] sm:$0xf] %vm543, %v1140
      %1173 = vst.msk [vmem:[#allocation2 + $0x54] sm:$0xf] %vm543, %v1141
      %1174 = vst.msk [vmem:[#allocation2 + $0x60] sm:$0xf] %vm543, %v1142
      %1175 = vst.msk [vmem:[#allocation2 + $0x6c] sm:$0xf] %vm543, %v1143
      %1176 = vst.msk [vmem:[#allocation2 + $0x78] sm:$0xf] %vm543, %v1144
      %1177 = vst.msk [vmem:[#allocation2 + $0x84] sm:$0xf] %vm543, %v1145
      %1178 = vst.msk [vmem:[#allocation2 + $0x90] sm:$0xf] %vm543, %v1146
      %1179 = vst.msk [vmem:[#allocation2 + $0x9c] sm:$0xf] %vm543, %v1147
      %1180 = vst.msk [vmem:[#allocation2 + $0xa8] sm:$0xf] %vm543, %v1148
      %1181 = vst.msk [vmem:[#allocation2 + $0xb4] sm:$0xf] %vm543, %v1149
      %1182 = vst.msk [vmem:[#allocation2 + $0xc0] sm:$0xf] %vm543, %v1150
      %1183 = vst.msk [vmem:[#allocation2 + $0xcc] sm:$0xf] %vm543, %v1151
      %1184 = vst.msk [vmem:[#allocation2 + $0xd8] sm:$0xf] %vm543, %v1152
      %1185 = vst.msk [vmem:[#allocation2 + $0xe4] sm:$0xf] %vm543, %v1153
      %1186 = vst.msk [vmem:[#allocation2 + $0xf0] sm:$0xf] %vm543, %v1154
      %1187 = vst.msk [vmem:[#allocation2 + $0xfc] sm:$0xf] %vm543, %v1155
      %1188 = vst.msk [vmem:[#allocation2 + $0x108] sm:$0xf] %vm543, %v1156
      %1189 = vst.msk [vmem:[#allocation2 + $0x114] sm:$0xf] %vm543, %v1157
      %1190 = vst.msk [vmem:[#allocation2 + $0x120] sm:$0xf] %vm543, %v1158
      %1191 = vst.msk [vmem:[#allocation2 + $0x12c] sm:$0xf] %vm543, %v1159
      %1192 = vst.msk [vmem:[#allocation2 + $0x138] sm:$0xf] %vm543, %v1160
      %1193 = vst.msk [vmem:[#allocation2 + $0x144] sm:$0xf] %vm543, %v1161
      %1194 = vst.msk [vmem:[#allocation2 + $0x150] sm:$0xf] %vm543, %v1162
      %1195 = vst.msk [vmem:[#allocation2 + $0x15c] sm:$0xf] %vm543, %v1163
      %1196 = vst.msk [vmem:[#allocation2 + $0x168] sm:$0xf] %vm543, %v1164
      %1197 = vst.msk [vmem:[#allocation2 + $0x174] sm:$0xf] %vm543, %v1165
      %v1198 = vld [vmem:[#allocation3] sm:$0xf]
      %v1199 = vld [vmem:[#allocation3 + $0x4] sm:$0xf]
      %v1200 = vld [vmem:[#allocation3 + $0x8] sm:$0x1]
      %v1201 = vld [vmem:[#allocation3 + $0xc] sm:$0xf]
      %v1202 = vld [vmem:[#allocation3 + $0x10] sm:$0xf]
      %v1203 = vld [vmem:[#allocation3 + $0x14] sm:$0x1]
      %v1204 = vld [vmem:[#allocation3 + $0x18] sm:$0xf]
      %v1205 = vld [vmem:[#allocation3 + $0x1c] sm:$0xf]
      %v1206 = vld [vmem:[#allocation3 + $0x20] sm:$0x1]
      %v1207 = vld [vmem:[#allocation3 + $0x24] sm:$0xf]
      %v1208 = vld [vmem:[#allocation3 + $0x28] sm:$0xf]
      %v1209 = vld [vmem:[#allocation3 + $0x2c] sm:$0x1]
      %v1210 = vld [vmem:[#allocation3 + $0x30] sm:$0xf]
      %v1211 = vld [vmem:[#allocation3 + $0x34] sm:$0xf]
      %v1212 = vld [vmem:[#allocation3 + $0x38] sm:$0x1]
      %v1213 = vld [vmem:[#allocation3 + $0x3c] sm:$0xf]
      %v1214 = vld [vmem:[#allocation3 + $0x40] sm:$0xf]
      %v1215 = vld [vmem:[#allocation3 + $0x44] sm:$0x1]
      %v1216 = vld [vmem:[#allocation3 + $0x48] sm:$0xf]
      %v1217 = vld [vmem:[#allocation3 + $0x4c] sm:$0xf]
      %v1218 = vld [vmem:[#allocation3 + $0x50] sm:$0x1]
      %v1219 = vld [vmem:[#allocation3 + $0x54] sm:$0xf]
      %v1220 = vld [vmem:[#allocation3 + $0x58] sm:$0xf]
      %v1221 = vld [vmem:[#allocation3 + $0x5c] sm:$0x1]
      %v1222 = vld [vmem:[#allocation3 + $0x60] sm:$0xf]
      %v1223 = vld [vmem:[#allocation3 + $0x64] sm:$0xf]
      %v1224 = vld [vmem:[#allocation3 + $0x68] sm:$0x1]
      %v1225 = vld [vmem:[#allocation3 + $0x6c] sm:$0xf]
      %v1226 = vld [vmem:[#allocation3 + $0x70] sm:$0xf]
      %v1227 = vld [vmem:[#allocation3 + $0x74] sm:$0x1]
      %v1228 = vld [vmem:[#allocation3 + $0x78] sm:$0xf]
      %v1229 = vld [vmem:[#allocation3 + $0x7c] sm:$0xf]
      %v1230 = vld [vmem:[#allocation3 + $0x80] sm:$0x1]
      %v1231 = vld [vmem:[#allocation3 + $0x84] sm:$0xf]
      %v1232 = vld [vmem:[#allocation3 + $0x88] sm:$0xf]
      %v1233 = vld [vmem:[#allocation3 + $0x8c] sm:$0x1]
      %v1234 = vld [vmem:[#allocation3 + $0x90] sm:$0xf]
      %v1235 = vld [vmem:[#allocation3 + $0x94] sm:$0xf]
      %v1236 = vld [vmem:[#allocation3 + $0x98] sm:$0x1]
      %v1237 = vld [vmem:[#allocation3 + $0x9c] sm:$0xf]
      %v1238 = vld [vmem:[#allocation3 + $0xa0] sm:$0xf]
      %v1239 = vld [vmem:[#allocation3 + $0xa4] sm:$0x1]
      %v1240 = vld [vmem:[#allocation3 + $0xa8] sm:$0xf]
      %v1241 = vld [vmem:[#allocation3 + $0xac] sm:$0xf]
      %v1242 = vld [vmem:[#allocation3 + $0xb0] sm:$0x1]
      %v1243 = vld [vmem:[#allocation3 + $0xb4] sm:$0xf]
      %v1244 = vld [vmem:[#allocation3 + $0xb8] sm:$0xf]
      %v1245 = vld [vmem:[#allocation3 + $0xbc] sm:$0x1]
      %vm1246 = vsmask.f32 3328
      %vm1247 = vsmask.f32 7440
      %vm1248 = vmor %vm1246, %vm1247
      %v1250 = vshrl.u32 %v1198, 16
      %v1252 = vrot.slane %v1250, 4
      %v1253 = vshll.u32 %v1198, 16
      %v1255 = vrot.slane %v1253, 5
      %v1256 = vor.u32 %v1252, %v1255
      %v1257 = vrot.slane %v1256, 4
      %v1259 = vshll.u32 %v1199, 16
      %v1261 = vrot.slane %v1259, 5
      %v1262 = vsel %vm1248, %v1257, %v1261
      %v1263 = vshrl.u32 %v1199, 16
      %v1265 = vrot.slane %v1263, 4
      %v1266 = vor.u32 %v1265, %v1261
      %v1267 = vrot.slane %v1266, 4
      %v1269 = vshll.u32 %v1200, 16
      %v1271 = vrot.slane %v1269, 5
      %v1272 = vsel %vm1248, %v1267, %v1271
      %v1274 = vshrl.u32 %v1201, 16
      %v1276 = vrot.slane %v1274, 4
      %v1277 = vshll.u32 %v1201, 16
      %v1279 = vrot.slane %v1277, 5
      %v1280 = vor.u32 %v1276, %v1279
      %v1281 = vrot.slane %v1280, 4
      %v1283 = vshll.u32 %v1202, 16
      %v1285 = vrot.slane %v1283, 5
      %v1286 = vsel %vm1248, %v1281, %v1285
      %v1287 = vshrl.u32 %v1202, 16
      %v1289 = vrot.slane %v1287, 4
      %v1290 = vor.u32 %v1289, %v1285
      %v1291 = vrot.slane %v1290, 4
      %v1293 = vshll.u32 %v1203, 16
      %v1295 = vrot.slane %v1293, 5
      %v1296 = vsel %vm1248, %v1291, %v1295
      %v1298 = vshrl.u32 %v1204, 16
      %v1300 = vrot.slane %v1298, 4
      %v1301 = vshll.u32 %v1204, 16
      %v1303 = vrot.slane %v1301, 5
      %v1304 = vor.u32 %v1300, %v1303
      %v1305 = vrot.slane %v1304, 4
      %v1307 = vshll.u32 %v1205, 16
      %v1309 = vrot.slane %v1307, 5
      %v1310 = vsel %vm1248, %v1305, %v1309
      %v1311 = vshrl.u32 %v1205, 16
      %v1313 = vrot.slane %v1311, 4
      %v1314 = vor.u32 %v1313, %v1309
      %v1315 = vrot.slane %v1314, 4
      %v1317 = vshll.u32 %v1206, 16
      %v1319 = vrot.slane %v1317, 5
      %v1320 = vsel %vm1248, %v1315, %v1319
      %v1322 = vshrl.u32 %v1207, 16
      %v1324 = vrot.slane %v1322, 4
      %v1325 = vshll.u32 %v1207, 16
      %v1327 = vrot.slane %v1325, 5
      %v1328 = vor.u32 %v1324, %v1327
      %v1329 = vrot.slane %v1328, 4
      %v1331 = vshll.u32 %v1208, 16
      %v1333 = vrot.slane %v1331, 5
      %v1334 = vsel %vm1248, %v1329, %v1333
      %v1335 = vshrl.u32 %v1208, 16
      %v1337 = vrot.slane %v1335, 4
      %v1338 = vor.u32 %v1337, %v1333
      %v1339 = vrot.slane %v1338, 4
      %v1341 = vshll.u32 %v1209, 16
      %v1343 = vrot.slane %v1341, 5
      %v1344 = vsel %vm1248, %v1339, %v1343
      %v1346 = vshrl.u32 %v1210, 16
      %v1348 = vrot.slane %v1346, 4
      %v1349 = vshll.u32 %v1210, 16
      %v1351 = vrot.slane %v1349, 5
      %v1352 = vor.u32 %v1348, %v1351
      %v1353 = vrot.slane %v1352, 4
      %v1355 = vshll.u32 %v1211, 16
      %v1357 = vrot.slane %v1355, 5
      %v1358 = vsel %vm1248, %v1353, %v1357
      %v1359 = vshrl.u32 %v1211, 16
      %v1361 = vrot.slane %v1359, 4
      %v1362 = vor.u32 %v1361, %v1357
      %v1363 = vrot.slane %v1362, 4
      %v1365 = vshll.u32 %v1212, 16
      %v1367 = vrot.slane %v1365, 5
      %v1368 = vsel %vm1248, %v1363, %v1367
      %v1370 = vshrl.u32 %v1213, 16
      %v1372 = vrot.slane %v1370, 4
      %v1373 = vshll.u32 %v1213, 16
      %v1375 = vrot.slane %v1373, 5
      %v1376 = vor.u32 %v1372, %v1375
      %v1377 = vrot.slane %v1376, 4
      %v1379 = vshll.u32 %v1214, 16
      %v1381 = vrot.slane %v1379, 5
      %v1382 = vsel %vm1248, %v1377, %v1381
      %v1383 = vshrl.u32 %v1214, 16
      %v1385 = vrot.slane %v1383, 4
      %v1386 = vor.u32 %v1385, %v1381
      %v1387 = vrot.slane %v1386, 4
      %v1389 = vshll.u32 %v1215, 16
      %v1391 = vrot.slane %v1389, 5
      %v1392 = vsel %vm1248, %v1387, %v1391
      %v1394 = vshrl.u32 %v1216, 16
      %v1396 = vrot.slane %v1394, 4
      %v1397 = vshll.u32 %v1216, 16
      %v1399 = vrot.slane %v1397, 5
      %v1400 = vor.u32 %v1396, %v1399
      %v1401 = vrot.slane %v1400, 4
      %v1403 = vshll.u32 %v1217, 16
      %v1405 = vrot.slane %v1403, 5
      %v1406 = vsel %vm1248, %v1401, %v1405
      %v1407 = vshrl.u32 %v1217, 16
      %v1409 = vrot.slane %v1407, 4
      %v1410 = vor.u32 %v1409, %v1405
      %v1411 = vrot.slane %v1410, 4
      %v1413 = vshll.u32 %v1218, 16
      %v1415 = vrot.slane %v1413, 5
      %v1416 = vsel %vm1248, %v1411, %v1415
      %v1418 = vshrl.u32 %v1219, 16
      %v1420 = vrot.slane %v1418, 4
      %v1421 = vshll.u32 %v1219, 16
      %v1423 = vrot.slane %v1421, 5
      %v1424 = vor.u32 %v1420, %v1423
      %v1425 = vrot.slane %v1424, 4
      %v1427 = vshll.u32 %v1220, 16
      %v1429 = vrot.slane %v1427, 5
      %v1430 = vsel %vm1248, %v1425, %v1429
      %v1431 = vshrl.u32 %v1220, 16
      %v1433 = vrot.slane %v1431, 4
      %v1434 = vor.u32 %v1433, %v1429
      %v1435 = vrot.slane %v1434, 4
      %v1437 = vshll.u32 %v1221, 16
      %v1439 = vrot.slane %v1437, 5
      %v1440 = vsel %vm1248, %v1435, %v1439
      %v1442 = vshrl.u32 %v1222, 16
      %v1444 = vrot.slane %v1442, 4
      %v1445 = vshll.u32 %v1222, 16
      %v1447 = vrot.slane %v1445, 5
      %v1448 = vor.u32 %v1444, %v1447
      %v1449 = vrot.slane %v1448, 4
      %v1451 = vshll.u32 %v1223, 16
      %v1453 = vrot.slane %v1451, 5
      %v1454 = vsel %vm1248, %v1449, %v1453
      %v1455 = vshrl.u32 %v1223, 16
      %v1457 = vrot.slane %v1455, 4
      %v1458 = vor.u32 %v1457, %v1453
      %v1459 = vrot.slane %v1458, 4
      %v1461 = vshll.u32 %v1224, 16
      %v1463 = vrot.slane %v1461, 5
      %v1464 = vsel %vm1248, %v1459, %v1463
      %v1466 = vshrl.u32 %v1225, 16
      %v1468 = vrot.slane %v1466, 4
      %v1469 = vshll.u32 %v1225, 16
      %v1471 = vrot.slane %v1469, 5
      %v1472 = vor.u32 %v1468, %v1471
      %v1473 = vrot.slane %v1472, 4
      %v1475 = vshll.u32 %v1226, 16
      %v1477 = vrot.slane %v1475, 5
      %v1478 = vsel %vm1248, %v1473, %v1477
      %v1479 = vshrl.u32 %v1226, 16
      %v1481 = vrot.slane %v1479, 4
      %v1482 = vor.u32 %v1481, %v1477
      %v1483 = vrot.slane %v1482, 4
      %v1485 = vshll.u32 %v1227, 16
      %v1487 = vrot.slane %v1485, 5
      %v1488 = vsel %vm1248, %v1483, %v1487
      %v1490 = vshrl.u32 %v1228, 16
      %v1492 = vrot.slane %v1490, 4
      %v1493 = vshll.u32 %v1228, 16
      %v1495 = vrot.slane %v1493, 5
      %v1496 = vor.u32 %v1492, %v1495
      %v1497 = vrot.slane %v1496, 4
      %v1499 = vshll.u32 %v1229, 16
      %v1501 = vrot.slane %v1499, 5
      %v1502 = vsel %vm1248, %v1497, %v1501
      %v1503 = vshrl.u32 %v1229, 16
      %v1505 = vrot.slane %v1503, 4
      %v1506 = vor.u32 %v1505, %v1501
      %v1507 = vrot.slane %v1506, 4
      %v1509 = vshll.u32 %v1230, 16
      %v1511 = vrot.slane %v1509, 5
      %v1512 = vsel %vm1248, %v1507, %v1511
      %v1514 = vshrl.u32 %v1231, 16
      %v1516 = vrot.slane %v1514, 4
      %v1517 = vshll.u32 %v1231, 16
      %v1519 = vrot.slane %v1517, 5
      %v1520 = vor.u32 %v1516, %v1519
      %v1521 = vrot.slane %v1520, 4
      %v1523 = vshll.u32 %v1232, 16
      %v1525 = vrot.slane %v1523, 5
      %v1526 = vsel %vm1248, %v1521, %v1525
      %v1527 = vshrl.u32 %v1232, 16
      %v1529 = vrot.slane %v1527, 4
      %v1530 = vor.u32 %v1529, %v1525
      %v1531 = vrot.slane %v1530, 4
      %v1533 = vshll.u32 %v1233, 16
      %v1535 = vrot.slane %v1533, 5
      %v1536 = vsel %vm1248, %v1531, %v1535
      %v1538 = vshrl.u32 %v1234, 16
      %v1540 = vrot.slane %v1538, 4
      %v1541 = vshll.u32 %v1234, 16
      %v1543 = vrot.slane %v1541, 5
      %v1544 = vor.u32 %v1540, %v1543
      %v1545 = vrot.slane %v1544, 4
      %v1547 = vshll.u32 %v1235, 16
      %v1549 = vrot.slane %v1547, 5
      %v1550 = vsel %vm1248, %v1545, %v1549
      %v1551 = vshrl.u32 %v1235, 16
      %v1553 = vrot.slane %v1551, 4
      %v1554 = vor.u32 %v1553, %v1549
      %v1555 = vrot.slane %v1554, 4
      %v1557 = vshll.u32 %v1236, 16
      %v1559 = vrot.slane %v1557, 5
      %v1560 = vsel %vm1248, %v1555, %v1559
      %v1562 = vshrl.u32 %v1237, 16
      %v1564 = vrot.slane %v1562, 4
      %v1565 = vshll.u32 %v1237, 16
      %v1567 = vrot.slane %v1565, 5
      %v1568 = vor.u32 %v1564, %v1567
      %v1569 = vrot.slane %v1568, 4
      %v1571 = vshll.u32 %v1238, 16
      %v1573 = vrot.slane %v1571, 5
      %v1574 = vsel %vm1248, %v1569, %v1573
      %v1575 = vshrl.u32 %v1238, 16
      %v1577 = vrot.slane %v1575, 4
      %v1578 = vor.u32 %v1577, %v1573
      %v1579 = vrot.slane %v1578, 4
      %v1581 = vshll.u32 %v1239, 16
      %v1583 = vrot.slane %v1581, 5
      %v1584 = vsel %vm1248, %v1579, %v1583
      %v1586 = vshrl.u32 %v1240, 16
      %v1588 = vrot.slane %v1586, 4
      %v1589 = vshll.u32 %v1240, 16
      %v1591 = vrot.slane %v1589, 5
      %v1592 = vor.u32 %v1588, %v1591
      %v1593 = vrot.slane %v1592, 4
      %v1595 = vshll.u32 %v1241, 16
      %v1597 = vrot.slane %v1595, 5
      %v1598 = vsel %vm1248, %v1593, %v1597
      %v1599 = vshrl.u32 %v1241, 16
      %v1601 = vrot.slane %v1599, 4
      %v1602 = vor.u32 %v1601, %v1597
      %v1603 = vrot.slane %v1602, 4
      %v1605 = vshll.u32 %v1242, 16
      %v1607 = vrot.slane %v1605, 5
      %v1608 = vsel %vm1248, %v1603, %v1607
      %v1610 = vshrl.u32 %v1243, 16
      %v1612 = vrot.slane %v1610, 4
      %v1613 = vshll.u32 %v1243, 16
      %v1615 = vrot.slane %v1613, 5
      %v1616 = vor.u32 %v1612, %v1615
      %v1617 = vrot.slane %v1616, 4
      %v1619 = vshll.u32 %v1244, 16
      %v1621 = vrot.slane %v1619, 5
      %v1622 = vsel %vm1248, %v1617, %v1621
      %v1623 = vshrl.u32 %v1244, 16
      %v1625 = vrot.slane %v1623, 4
      %v1626 = vor.u32 %v1625, %v1621
      %v1627 = vrot.slane %v1626, 4
      %v1629 = vshll.u32 %v1245, 16
      %v1631 = vrot.slane %v1629, 5
      %v1632 = vsel %vm1248, %v1627, %v1631
      %1633 = vrot.lane.b32.xlu0 %v1262, 32
      %v1634 = vpop.permute.xlu0 %1633
      %1635 = vrot.lane.b32.xlu0 %v1272, 32
      %v1636 = vpop.permute.xlu0 %1635
      %1637 = vrot.lane.b32.xlu0 %v1286, 32
      %v1638 = vpop.permute.xlu0 %1637
      %1639 = vrot.lane.b32.xlu0 %v1296, 32
      %v1640 = vpop.permute.xlu0 %1639
      %1641 = vrot.lane.b32.xlu0 %v1310, 32
      %v1642 = vpop.permute.xlu0 %1641
      %1643 = vrot.lane.b32.xlu0 %v1320, 32
      %v1644 = vpop.permute.xlu0 %1643
      %1645 = vrot.lane.b32.xlu0 %v1334, 32
      %v1646 = vpop.permute.xlu0 %1645
      %1647 = vrot.lane.b32.xlu0 %v1344, 32
      %v1648 = vpop.permute.xlu0 %1647
      %1649 = vrot.lane.b32.xlu0 %v1358, 32
      %v1650 = vpop.permute.xlu0 %1649
      %1651 = vrot.lane.b32.xlu0 %v1368, 32
      %v1652 = vpop.permute.xlu0 %1651
      %1653 = vrot.lane.b32.xlu0 %v1382, 32
      %v1654 = vpop.permute.xlu0 %1653
      %1655 = vrot.lane.b32.xlu0 %v1392, 32
      %v1656 = vpop.permute.xlu0 %1655
      %1657 = vrot.lane.b32.xlu0 %v1406, 32
      %v1658 = vpop.permute.xlu0 %1657
      %1659 = vrot.lane.b32.xlu0 %v1416, 32
      %v1660 = vpop.permute.xlu0 %1659
      %1661 = vrot.lane.b32.xlu0 %v1430, 32
      %v1662 = vpop.permute.xlu0 %1661
      %1663 = vrot.lane.b32.xlu0 %v1440, 32
      %v1664 = vpop.permute.xlu0 %1663
      %1665 = vrot.lane.b32.xlu0 %v1454, 32
      %v1666 = vpop.permute.xlu0 %1665
      %1667 = vrot.lane.b32.xlu0 %v1464, 32
      %v1668 = vpop.permute.xlu0 %1667
      %1669 = vrot.lane.b32.xlu0 %v1478, 32
      %v1670 = vpop.permute.xlu0 %1669
      %1671 = vrot.lane.b32.xlu0 %v1488, 32
      %v1672 = vpop.permute.xlu0 %1671
      %1673 = vrot.lane.b32.xlu0 %v1502, 32
      %v1674 = vpop.permute.xlu0 %1673
      %1675 = vrot.lane.b32.xlu0 %v1512, 32
      %v1676 = vpop.permute.xlu0 %1675
      %1677 = vrot.lane.b32.xlu0 %v1526, 32
      %v1678 = vpop.permute.xlu0 %1677
      %1679 = vrot.lane.b32.xlu0 %v1536, 32
      %v1680 = vpop.permute.xlu0 %1679
      %1681 = vrot.lane.b32.xlu0 %v1550, 32
      %v1682 = vpop.permute.xlu0 %1681
      %1683 = vrot.lane.b32.xlu0 %v1560, 32
      %v1684 = vpop.permute.xlu0 %1683
      %1685 = vrot.lane.b32.xlu0 %v1574, 32
      %v1686 = vpop.permute.xlu0 %1685
      %1687 = vrot.lane.b32.xlu0 %v1584, 32
      %v1688 = vpop.permute.xlu0 %1687
      %1689 = vrot.lane.b32.xlu0 %v1598, 32
      %v1690 = vpop.permute.xlu0 %1689
      %1691 = vrot.lane.b32.xlu0 %v1608, 32
      %v1692 = vpop.permute.xlu0 %1691
      %1693 = vrot.lane.b32.xlu0 %v1622, 32
      %v1694 = vpop.permute.xlu0 %1693
      %1695 = vrot.lane.b32.xlu0 %v1632, 32
      %v1696 = vpop.permute.xlu0 %1695
      %vm1729 = vcmask 519424
      %1730 = vst.msk [vmem:[#allocation2] sm:$0xf] %vm1729, %v1634
      %1731 = vst.msk [vmem:[#allocation2 + $0xc] sm:$0xf] %vm1729, %v1636
      %1732 = vst.msk [vmem:[#allocation2 + $0x18] sm:$0xf] %vm1729, %v1638
      %1733 = vst.msk [vmem:[#allocation2 + $0x24] sm:$0xf] %vm1729, %v1640
      %1734 = vst.msk [vmem:[#allocation2 + $0x30] sm:$0xf] %vm1729, %v1642
      %1735 = vst.msk [vmem:[#allocation2 + $0x3c] sm:$0xf] %vm1729, %v1644
      %1736 = vst.msk [vmem:[#allocation2 + $0x48] sm:$0xf] %vm1729, %v1646
      %1737 = vst.msk [vmem:[#allocation2 + $0x54] sm:$0xf] %vm1729, %v1648
      %1738 = vst.msk [vmem:[#allocation2 + $0x60] sm:$0xf] %vm1729, %v1650
      %1739 = vst.msk [vmem:[#allocation2 + $0x6c] sm:$0xf] %vm1729, %v1652
      %1740 = vst.msk [vmem:[#allocation2 + $0x78] sm:$0xf] %vm1729, %v1654
      %1741 = vst.msk [vmem:[#allocation2 + $0x84] sm:$0xf] %vm1729, %v1656
      %1742 = vst.msk [vmem:[#allocation2 + $0x90] sm:$0xf] %vm1729, %v1658
      %1743 = vst.msk [vmem:[#allocation2 + $0x9c] sm:$0xf] %vm1729, %v1660
      %1744 = vst.msk [vmem:[#allocation2 + $0xa8] sm:$0xf] %vm1729, %v1662
      %1745 = vst.msk [vmem:[#allocation2 + $0xb4] sm:$0xf] %vm1729, %v1664
      %1746 = vst.msk [vmem:[#allocation2 + $0xc0] sm:$0xf] %vm1729, %v1666
      %1747 = vst.msk [vmem:[#allocation2 + $0xcc] sm:$0xf] %vm1729, %v1668
      %1748 = vst.msk [vmem:[#allocation2 + $0xd8] sm:$0xf] %vm1729, %v1670
      %1749 = vst.msk [vmem:[#allocation2 + $0xe4] sm:$0xf] %vm1729, %v1672
      %1750 = vst.msk [vmem:[#allocation2 + $0xf0] sm:$0xf] %vm1729, %v1674
      %1751 = vst.msk [vmem:[#allocation2 + $0xfc] sm:$0xf] %vm1729, %v1676
      %1752 = vst.msk [vmem:[#allocation2 + $0x108] sm:$0xf] %vm1729, %v1678
      %1753 = vst.msk [vmem:[#allocation2 + $0x114] sm:$0xf] %vm1729, %v1680
      %1754 = vst.msk [vmem:[#allocation2 + $0x120] sm:$0xf] %vm1729, %v1682
      %1755 = vst.msk [vmem:[#allocation2 + $0x12c] sm:$0xf] %vm1729, %v1684
      %1756 = vst.msk [vmem:[#allocation2 + $0x138] sm:$0xf] %vm1729, %v1686
      %1757 = vst.msk [vmem:[#allocation2 + $0x144] sm:$0xf] %vm1729, %v1688
      %1758 = vst.msk [vmem:[#allocation2 + $0x150] sm:$0xf] %vm1729, %v1690
      %1759 = vst.msk [vmem:[#allocation2 + $0x15c] sm:$0xf] %vm1729, %v1692
      %1760 = vst.msk [vmem:[#allocation2 + $0x168] sm:$0xf] %vm1729, %v1694
      %1761 = vst.msk [vmem:[#allocation2 + $0x174] sm:$0xf] %vm1729, %v1696
      %v1762 = vld [vmem:[#allocation3] sm:$0xe]
      %v1763 = vld [vmem:[#allocation3 + $0x4] sm:$0xf]
      %v1764 = vld [vmem:[#allocation3 + $0x8] sm:$0x1]
      %v1765 = vld [vmem:[#allocation3 + $0xc] sm:$0xe]
      %v1766 = vld [vmem:[#allocation3 + $0x10] sm:$0xf]
      %v1767 = vld [vmem:[#allocation3 + $0x14] sm:$0x1]
      %v1768 = vld [vmem:[#allocation3 + $0x18] sm:$0xe]
      %v1769 = vld [vmem:[#allocation3 + $0x1c] sm:$0xf]
      %v1770 = vld [vmem:[#allocation3 + $0x20] sm:$0x1]
      %v1771 = vld [vmem:[#allocation3 + $0x24] sm:$0xe]
      %v1772 = vld [vmem:[#allocation3 + $0x28] sm:$0xf]
      %v1773 = vld [vmem:[#allocation3 + $0x2c] sm:$0x1]
      %v1774 = vld [vmem:[#allocation3 + $0x30] sm:$0xe]
      %v1775 = vld [vmem:[#allocation3 + $0x34] sm:$0xf]
      %v1776 = vld [vmem:[#allocation3 + $0x38] sm:$0x1]
      %v1777 = vld [vmem:[#allocation3 + $0x3c] sm:$0xe]
      %v1778 = vld [vmem:[#allocation3 + $0x40] sm:$0xf]
      %v1779 = vld [vmem:[#allocation3 + $0x44] sm:$0x1]
      %v1780 = vld [vmem:[#allocation3 + $0x48] sm:$0xe]
      %v1781 = vld [vmem:[#allocation3 + $0x4c] sm:$0xf]
      %v1782 = vld [vmem:[#allocation3 + $0x50] sm:$0x1]
      %v1783 = vld [vmem:[#allocation3 + $0x54] sm:$0xe]
      %v1784 = vld [vmem:[#allocation3 + $0x58] sm:$0xf]
      %v1785 = vld [vmem:[#allocation3 + $0x5c] sm:$0x1]
      %v1786 = vld [vmem:[#allocation3 + $0x60] sm:$0xe]
      %v1787 = vld [vmem:[#allocation3 + $0x64] sm:$0xf]
      %v1788 = vld [vmem:[#allocation3 + $0x68] sm:$0x1]
      %v1789 = vld [vmem:[#allocation3 + $0x6c] sm:$0xe]
      %v1790 = vld [vmem:[#allocation3 + $0x70] sm:$0xf]
      %v1791 = vld [vmem:[#allocation3 + $0x74] sm:$0x1]
      %v1792 = vld [vmem:[#allocation3 + $0x78] sm:$0xe]
      %v1793 = vld [vmem:[#allocation3 + $0x7c] sm:$0xf]
      %v1794 = vld [vmem:[#allocation3 + $0x80] sm:$0x1]
      %v1795 = vld [vmem:[#allocation3 + $0x84] sm:$0xe]
      %v1796 = vld [vmem:[#allocation3 + $0x88] sm:$0xf]
      %v1797 = vld [vmem:[#allocation3 + $0x8c] sm:$0x1]
      %v1798 = vld [vmem:[#allocation3 + $0x90] sm:$0xe]
      %v1799 = vld [vmem:[#allocation3 + $0x94] sm:$0xf]
      %v1800 = vld [vmem:[#allocation3 + $0x98] sm:$0x1]
      %v1801 = vld [vmem:[#allocation3 + $0x9c] sm:$0xe]
      %v1802 = vld [vmem:[#allocation3 + $0xa0] sm:$0xf]
      %v1803 = vld [vmem:[#allocation3 + $0xa4] sm:$0x1]
      %v1804 = vld [vmem:[#allocation3 + $0xa8] sm:$0xe]
      %v1805 = vld [vmem:[#allocation3 + $0xac] sm:$0xf]
      %v1806 = vld [vmem:[#allocation3 + $0xb0] sm:$0x1]
      %v1807 = vld [vmem:[#allocation3 + $0xb4] sm:$0xe]
      %v1808 = vld [vmem:[#allocation3 + $0xb8] sm:$0xf]
      %v1809 = vld [vmem:[#allocation3 + $0xbc] sm:$0x1]
      %vm1858 = vcmask 1042432
      %vm1859 = vcmask 1046532
      %vm1860 = vmor %vm1858, %vm1859
      %v1861 = vrot.slane %v1762, 5
      %v1862 = vrot.slane %v1861, 4
      %v1863 = vrot.slane %v1763, 5
      %v1864 = vsel %vm1860, %v1862, %v1863
      %v1865 = vrot.slane %v1863, 4
      %v1866 = vrot.slane %v1764, 5
      %v1867 = vsel %vm1860, %v1865, %v1866
      %v1868 = vrot.slane %v1765, 5
      %v1869 = vrot.slane %v1868, 4
      %v1870 = vrot.slane %v1766, 5
      %v1871 = vsel %vm1860, %v1869, %v1870
      %v1872 = vrot.slane %v1870, 4
      %v1873 = vrot.slane %v1767, 5
      %v1874 = vsel %vm1860, %v1872, %v1873
      %v1875 = vrot.slane %v1768, 5
      %v1876 = vrot.slane %v1875, 4
      %v1877 = vrot.slane %v1769, 5
      %v1878 = vsel %vm1860, %v1876, %v1877
      %v1879 = vrot.slane %v1877, 4
      %v1880 = vrot.slane %v1770, 5
      %v1881 = vsel %vm1860, %v1879, %v1880
      %v1882 = vrot.slane %v1771, 5
      %v1883 = vrot.slane %v1882, 4
      %v1884 = vrot.slane %v1772, 5
      %v1885 = vsel %vm1860, %v1883, %v1884
      %v1886 = vrot.slane %v1884, 4
      %v1887 = vrot.slane %v1773, 5
      %v1888 = vsel %vm1860, %v1886, %v1887
      %v1889 = vrot.slane %v1774, 5
      %v1890 = vrot.slane %v1889, 4
      %v1891 = vrot.slane %v1775, 5
      %v1892 = vsel %vm1860, %v1890, %v1891
      %v1893 = vrot.slane %v1891, 4
      %v1894 = vrot.slane %v1776, 5
      %v1895 = vsel %vm1860, %v1893, %v1894
      %v1896 = vrot.slane %v1777, 5
      %v1897 = vrot.slane %v1896, 4
      %v1898 = vrot.slane %v1778, 5
      %v1899 = vsel %vm1860, %v1897, %v1898
      %v1900 = vrot.slane %v1898, 4
      %v1901 = vrot.slane %v1779, 5
      %v1902 = vsel %vm1860, %v1900, %v1901
      %v1903 = vrot.slane %v1780, 5
      %v1904 = vrot.slane %v1903, 4
      %v1905 = vrot.slane %v1781, 5
      %v1906 = vsel %vm1860, %v1904, %v1905
      %v1907 = vrot.slane %v1905, 4
      %v1908 = vrot.slane %v1782, 5
      %v1909 = vsel %vm1860, %v1907, %v1908
      %v1910 = vrot.slane %v1783, 5
      %v1911 = vrot.slane %v1910, 4
      %v1912 = vrot.slane %v1784, 5
      %v1913 = vsel %vm1860, %v1911, %v1912
      %v1914 = vrot.slane %v1912, 4
      %v1915 = vrot.slane %v1785, 5
      %v1916 = vsel %vm1860, %v1914, %v1915
      %v1917 = vrot.slane %v1786, 5
      %v1918 = vrot.slane %v1917, 4
      %v1919 = vrot.slane %v1787, 5
      %v1920 = vsel %vm1860, %v1918, %v1919
      %v1921 = vrot.slane %v1919, 4
      %v1922 = vrot.slane %v1788, 5
      %v1923 = vsel %vm1860, %v1921, %v1922
      %v1924 = vrot.slane %v1789, 5
      %v1925 = vrot.slane %v1924, 4
      %v1926 = vrot.slane %v1790, 5
      %v1927 = vsel %vm1860, %v1925, %v1926
      %v1928 = vrot.slane %v1926, 4
      %v1929 = vrot.slane %v1791, 5
      %v1930 = vsel %vm1860, %v1928, %v1929
      %v1931 = vrot.slane %v1792, 5
      %v1932 = vrot.slane %v1931, 4
      %v1933 = vrot.slane %v1793, 5
      %v1934 = vsel %vm1860, %v1932, %v1933
      %v1935 = vrot.slane %v1933, 4
      %v1936 = vrot.slane %v1794, 5
      %v1937 = vsel %vm1860, %v1935, %v1936
      %v1938 = vrot.slane %v1795, 5
      %v1939 = vrot.slane %v1938, 4
      %v1940 = vrot.slane %v1796, 5
      %v1941 = vsel %vm1860, %v1939, %v1940
      %v1942 = vrot.slane %v1940, 4
      %v1943 = vrot.slane %v1797, 5
      %v1944 = vsel %vm1860, %v1942, %v1943
      %v1945 = vrot.slane %v1798, 5
      %v1946 = vrot.slane %v1945, 4
      %v1947 = vrot.slane %v1799, 5
      %v1948 = vsel %vm1860, %v1946, %v1947
      %v1949 = vrot.slane %v1947, 4
      %v1950 = vrot.slane %v1800, 5
      %v1951 = vsel %vm1860, %v1949, %v1950
      %v1952 = vrot.slane %v1801, 5
      %v1953 = vrot.slane %v1952, 4
      %v1954 = vrot.slane %v1802, 5
      %v1955 = vsel %vm1860, %v1953, %v1954
      %v1956 = vrot.slane %v1954, 4
      %v1957 = vrot.slane %v1803, 5
      %v1958 = vsel %vm1860, %v1956, %v1957
      %v1959 = vrot.slane %v1804, 5
      %v1960 = vrot.slane %v1959, 4
      %v1961 = vrot.slane %v1805, 5
      %v1962 = vsel %vm1860, %v1960, %v1961
      %v1963 = vrot.slane %v1961, 4
      %v1964 = vrot.slane %v1806, 5
      %v1965 = vsel %vm1860, %v1963, %v1964
      %v1966 = vrot.slane %v1807, 5
      %v1967 = vrot.slane %v1966, 4
      %v1968 = vrot.slane %v1808, 5
      %v1969 = vsel %vm1860, %v1967, %v1968
      %v1970 = vrot.slane %v1968, 4
      %v1971 = vrot.slane %v1809, 5
      %v1972 = vsel %vm1860, %v1970, %v1971
      %1973 = vrot.lane.b32.xlu0 %v1864, 64
      %v1974 = vpop.permute.xlu0 %1973
      %1975 = vrot.lane.b32.xlu0 %v1867, 64
      %v1976 = vpop.permute.xlu0 %1975
      %1977 = vrot.lane.b32.xlu0 %v1871, 64
      %v1978 = vpop.permute.xlu0 %1977
      %1979 = vrot.lane.b32.xlu0 %v1874, 64
      %v1980 = vpop.permute.xlu0 %1979
      %1981 = vrot.lane.b32.xlu0 %v1878, 64
      %v1982 = vpop.permute.xlu0 %1981
      %1983 = vrot.lane.b32.xlu0 %v1881, 64
      %v1984 = vpop.permute.xlu0 %1983
      %1985 = vrot.lane.b32.xlu0 %v1885, 64
      %v1986 = vpop.permute.xlu0 %1985
      %1987 = vrot.lane.b32.xlu0 %v1888, 64
      %v1988 = vpop.permute.xlu0 %1987
      %1989 = vrot.lane.b32.xlu0 %v1892, 64
      %v1990 = vpop.permute.xlu0 %1989
      %1991 = vrot.lane.b32.xlu0 %v1895, 64
      %v1992 = vpop.permute.xlu0 %1991
      %1993 = vrot.lane.b32.xlu0 %v1899, 64
      %v1994 = vpop.permute.xlu0 %1993
      %1995 = vrot.lane.b32.xlu0 %v1902, 64
      %v1996 = vpop.permute.xlu0 %1995
      %1997 = vrot.lane.b32.xlu0 %v1906, 64
      %v1998 = vpop.permute.xlu0 %1997
      %1999 = vrot.lane.b32.xlu0 %v1909, 64
      %v2000 = vpop.permute.xlu0 %1999
      %2001 = vrot.lane.b32.xlu0 %v1913, 64
      %v2002 = vpop.permute.xlu0 %2001
      %2003 = vrot.lane.b32.xlu0 %v1916, 64
      %v2004 = vpop.permute.xlu0 %2003
      %2005 = vrot.lane.b32.xlu0 %v1920, 64
      %v2006 = vpop.permute.xlu0 %2005
      %2007 = vrot.lane.b32.xlu0 %v1923, 64
      %v2008 = vpop.permute.xlu0 %2007
      %2009 = vrot.lane.b32.xlu0 %v1927, 64
      %v2010 = vpop.permute.xlu0 %2009
      %2011 = vrot.lane.b32.xlu0 %v1930, 64
      %v2012 = vpop.permute.xlu0 %2011
      %2013 = vrot.lane.b32.xlu0 %v1934, 64
      %v2014 = vpop.permute.xlu0 %2013
      %2015 = vrot.lane.b32.xlu0 %v1937, 64
      %v2016 = vpop.permute.xlu0 %2015
      %2017 = vrot.lane.b32.xlu0 %v1941, 64
      %v2018 = vpop.permute.xlu0 %2017
      %2019 = vrot.lane.b32.xlu0 %v1944, 64
      %v2020 = vpop.permute.xlu0 %2019
      %2021 = vrot.lane.b32.xlu0 %v1948, 64
      %v2022 = vpop.permute.xlu0 %2021
      %2023 = vrot.lane.b32.xlu0 %v1951, 64
      %v2024 = vpop.permute.xlu0 %2023
      %2025 = vrot.lane.b32.xlu0 %v1955, 64
      %v2026 = vpop.permute.xlu0 %2025
      %2027 = vrot.lane.b32.xlu0 %v1958, 64
      %v2028 = vpop.permute.xlu0 %2027
      %2029 = vrot.lane.b32.xlu0 %v1962, 64
      %v2030 = vpop.permute.xlu0 %2029
      %2031 = vrot.lane.b32.xlu0 %v1965, 64
      %v2032 = vpop.permute.xlu0 %2031
      %2033 = vrot.lane.b32.xlu0 %v1969, 64
      %v2034 = vpop.permute.xlu0 %2033
      %2035 = vrot.lane.b32.xlu0 %v1972, 64
      %v2036 = vpop.permute.xlu0 %2035
      %vm2069 = vcmask 781824
      %2070 = vst.msk [vmem:[#allocation2] sm:$0xf] %vm2069, %v1974
      %2071 = vst.msk [vmem:[#allocation2 + $0xc] sm:$0xf] %vm2069, %v1976
      %2072 = vst.msk [vmem:[#allocation2 + $0x18] sm:$0xf] %vm2069, %v1978
      %2073 = vst.msk [vmem:[#allocation2 + $0x24] sm:$0xf] %vm2069, %v1980
      %2074 = vst.msk [vmem:[#allocation2 + $0x30] sm:$0xf] %vm2069, %v1982
      %2075 = vst.msk [vmem:[#allocation2 + $0x3c] sm:$0xf] %vm2069, %v1984
      %2076 = vst.msk [vmem:[#allocation2 + $0x48] sm:$0xf] %vm2069, %v1986
      %2077 = vst.msk [vmem:[#allocation2 + $0x54] sm:$0xf] %vm2069, %v1988
      %2078 = vst.msk [vmem:[#allocation2 + $0x60] sm:$0xf] %vm2069, %v1990
      %2079 = vst.msk [vmem:[#allocation2 + $0x6c] sm:$0xf] %vm2069, %v1992
      %2080 = vst.msk [vmem:[#allocation2 + $0x78] sm:$0xf] %vm2069, %v1994
      %2081 = vst.msk [vmem:[#allocation2 + $0x84] sm:$0xf] %vm2069, %v1996
      %2082 = vst.msk [vmem:[#allocation2 + $0x90] sm:$0xf] %vm2069, %v1998
      %2083 = vst.msk [vmem:[#allocation2 + $0x9c] sm:$0xf] %vm2069, %v2000
      %2084 = vst.msk [vmem:[#allocation2 + $0xa8] sm:$0xf] %vm2069, %v2002
      %2085 = vst.msk [vmem:[#allocation2 + $0xb4] sm:$0xf] %vm2069, %v2004
      %2086 = vst.msk [vmem:[#allocation2 + $0xc0] sm:$0xf] %vm2069, %v2006
      %2087 = vst.msk [vmem:[#allocation2 + $0xcc] sm:$0xf] %vm2069, %v2008
      %2088 = vst.msk [vmem:[#allocation2 + $0xd8] sm:$0xf] %vm2069, %v2010
      %2089 = vst.msk [vmem:[#allocation2 + $0xe4] sm:$0xf] %vm2069, %v2012
      %2090 = vst.msk [vmem:[#allocation2 + $0xf0] sm:$0xf] %vm2069, %v2014
      %2091 = vst.msk [vmem:[#allocation2 + $0xfc] sm:$0xf] %vm2069, %v2016
      %2092 = vst.msk [vmem:[#allocation2 + $0x108] sm:$0xf] %vm2069, %v2018
      %2093 = vst.msk [vmem:[#allocation2 + $0x114] sm:$0xf] %vm2069, %v2020
      %2094 = vst.msk [vmem:[#allocation2 + $0x120] sm:$0xf] %vm2069, %v2022
      %2095 = vst.msk [vmem:[#allocation2 + $0x12c] sm:$0xf] %vm2069, %v2024
      %2096 = vst.msk [vmem:[#allocation2 + $0x138] sm:$0xf] %vm2069, %v2026
      %2097 = vst.msk [vmem:[#allocation2 + $0x144] sm:$0xf] %vm2069, %v2028
      %2098 = vst.msk [vmem:[#allocation2 + $0x150] sm:$0xf] %vm2069, %v2030
      %2099 = vst.msk [vmem:[#allocation2 + $0x15c] sm:$0xf] %vm2069, %v2032
      %2100 = vst.msk [vmem:[#allocation2 + $0x168] sm:$0xf] %vm2069, %v2034
      %2101 = vst.msk [vmem:[#allocation2 + $0x174] sm:$0xf] %vm2069, %v2036
      %v2102 = vld [vmem:[%s1019] sm:$0xf]
      %v2103 = vld [vmem:[%s1019 + $0x4] sm:$0xf]
      %v2104 = vld [vmem:[%s1019 + $0xc] sm:$0xf]
      %v2105 = vld [vmem:[%s1019 + $0x10] sm:$0xf]
      %v2106 = vld [vmem:[%s1019 + $0x18] sm:$0xf]
      %v2107 = vld [vmem:[%s1019 + $0x1c] sm:$0xf]
      %v2108 = vld [vmem:[%s1019 + $0x24] sm:$0xf]
      %v2109 = vld [vmem:[%s1019 + $0x28] sm:$0xf]
      %v2110 = vld [vmem:[%s1019 + $0x30] sm:$0xf]
      %v2111 = vld [vmem:[%s1019 + $0x34] sm:$0xf]
      %v2112 = vld [vmem:[%s1019 + $0x3c] sm:$0xf]
      %v2113 = vld [vmem:[%s1019 + $0x40] sm:$0xf]
      %v2114 = vld [vmem:[%s1019 + $0x48] sm:$0xf]
      %v2115 = vld [vmem:[%s1019 + $0x4c] sm:$0xf]
      %v2116 = vld [vmem:[%s1019 + $0x54] sm:$0xf]
      %v2117 = vld [vmem:[%s1019 + $0x58] sm:$0xf]
      %v2118 = vld [vmem:[%s1019 + $0x60] sm:$0xf]
      %v2119 = vld [vmem:[%s1019 + $0x64] sm:$0xf]
      %v2120 = vld [vmem:[%s1019 + $0x6c] sm:$0xf]
      %v2121 = vld [vmem:[%s1019 + $0x70] sm:$0xf]
      %v2122 = vld [vmem:[%s1019 + $0x78] sm:$0xf]
      %v2123 = vld [vmem:[%s1019 + $0x7c] sm:$0xf]
      %v2124 = vld [vmem:[%s1019 + $0x84] sm:$0xf]
      %v2125 = vld [vmem:[%s1019 + $0x88] sm:$0xf]
      %v2126 = vld [vmem:[%s1019 + $0x90] sm:$0xf]
      %v2127 = vld [vmem:[%s1019 + $0x94] sm:$0xf]
      %v2128 = vld [vmem:[%s1019 + $0x9c] sm:$0xf]
      %v2129 = vld [vmem:[%s1019 + $0xa0] sm:$0xf]
      %v2130 = vld [vmem:[%s1019 + $0xa8] sm:$0xf]
      %v2131 = vld [vmem:[%s1019 + $0xac] sm:$0xf]
      %v2132 = vld [vmem:[%s1019 + $0xb4] sm:$0xf]
      %v2133 = vld [vmem:[%s1019 + $0xb8] sm:$0xf]
      %2166 = vrot.lane.b32.xlu0 %v2102, 96
      %v2167 = vpop.permute.xlu0 %2166
      %2168 = vrot.lane.b32.xlu0 %v2103, 96
      %v2169 = vpop.permute.xlu0 %2168
      %2170 = vrot.lane.b32.xlu0 %v2104, 96
      %v2171 = vpop.permute.xlu0 %2170
      %2172 = vrot.lane.b32.xlu0 %v2105, 96
      %v2173 = vpop.permute.xlu0 %2172
      %2174 = vrot.lane.b32.xlu0 %v2106, 96
      %v2175 = vpop.permute.xlu0 %2174
      %2176 = vrot.lane.b32.xlu0 %v2107, 96
      %v2177 = vpop.permute.xlu0 %2176
      %2178 = vrot.lane.b32.xlu0 %v2108, 96
      %v2179 = vpop.permute.xlu0 %2178
      %2180 = vrot.lane.b32.xlu0 %v2109, 96
      %v2181 = vpop.permute.xlu0 %2180
      %2182 = vrot.lane.b32.xlu0 %v2110, 96
      %v2183 = vpop.permute.xlu0 %2182
      %2184 = vrot.lane.b32.xlu0 %v2111, 96
      %v2185 = vpop.permute.xlu0 %2184
      %2186 = vrot.lane.b32.xlu0 %v2112, 96
      %v2187 = vpop.permute.xlu0 %2186
      %2188 = vrot.lane.b32.xlu0 %v2113, 96
      %v2189 = vpop.permute.xlu0 %2188
      %2190 = vrot.lane.b32.xlu0 %v2114, 96
      %v2191 = vpop.permute.xlu0 %2190
      %2192 = vrot.lane.b32.xlu0 %v2115, 96
      %v2193 = vpop.permute.xlu0 %2192
      %2194 = vrot.lane.b32.xlu0 %v2116, 96
      %v2195 = vpop.permute.xlu0 %2194
      %2196 = vrot.lane.b32.xlu0 %v2117, 96
      %v2197 = vpop.permute.xlu0 %2196
      %2198 = vrot.lane.b32.xlu0 %v2118, 96
      %v2199 = vpop.permute.xlu0 %2198
      %2200 = vrot.lane.b32.xlu0 %v2119, 96
      %v2201 = vpop.permute.xlu0 %2200
      %2202 = vrot.lane.b32.xlu0 %v2120, 96
      %v2203 = vpop.permute.xlu0 %2202
      %2204 = vrot.lane.b32.xlu0 %v2121, 96
      %v2205 = vpop.permute.xlu0 %2204
      %2206 = vrot.lane.b32.xlu0 %v2122, 96
      %v2207 = vpop.permute.xlu0 %2206
      %2208 = vrot.lane.b32.xlu0 %v2123, 96
      %v2209 = vpop.permute.xlu0 %2208
      %2210 = vrot.lane.b32.xlu0 %v2124, 96
      %v2211 = vpop.permute.xlu0 %2210
      %2212 = vrot.lane.b32.xlu0 %v2125, 96
      %v2213 = vpop.permute.xlu0 %2212
      %2214 = vrot.lane.b32.xlu0 %v2126, 96
      %v2215 = vpop.permute.xlu0 %2214
      %2216 = vrot.lane.b32.xlu0 %v2127, 96
      %v2217 = vpop.permute.xlu0 %2216
      %2218 = vrot.lane.b32.xlu0 %v2128, 96
      %v2219 = vpop.permute.xlu0 %2218
      %2220 = vrot.lane.b32.xlu0 %v2129, 96
      %v2221 = vpop.permute.xlu0 %2220
      %2222 = vrot.lane.b32.xlu0 %v2130, 96
      %v2223 = vpop.permute.xlu0 %2222
      %2224 = vrot.lane.b32.xlu0 %v2131, 96
      %v2225 = vpop.permute.xlu0 %2224
      %2226 = vrot.lane.b32.xlu0 %v2132, 96
      %v2227 = vpop.permute.xlu0 %2226
      %2228 = vrot.lane.b32.xlu0 %v2133, 96
      %v2229 = vpop.permute.xlu0 %2228
      %vm2262 = vcmask 1044224
      %2263 = vst.msk [vmem:[#allocation2] sm:$0xf] %vm2262, %v2167
      %2264 = vst.msk [vmem:[#allocation2 + $0xc] sm:$0xf] %vm2262, %v2169
      %2265 = vst.msk [vmem:[#allocation2 + $0x18] sm:$0xf] %vm2262, %v2171
      %2266 = vst.msk [vmem:[#allocation2 + $0x24] sm:$0xf] %vm2262, %v2173
      %2267 = vst.msk [vmem:[#allocation2 + $0x30] sm:$0xf] %vm2262, %v2175
      %2268 = vst.msk [vmem:[#allocation2 + $0x3c] sm:$0xf] %vm2262, %v2177
      %2269 = vst.msk [vmem:[#allocation2 + $0x48] sm:$0xf] %vm2262, %v2179
      %2270 = vst.msk [vmem:[#allocation2 + $0x54] sm:$0xf] %vm2262, %v2181
      %2271 = vst.msk [vmem:[#allocation2 + $0x60] sm:$0xf] %vm2262, %v2183
      %2272 = vst.msk [vmem:[#allocation2 + $0x6c] sm:$0xf] %vm2262, %v2185
      %2273 = vst.msk [vmem:[#allocation2 + $0x78] sm:$0xf] %vm2262, %v2187
      %2274 = vst.msk [vmem:[#allocation2 + $0x84] sm:$0xf] %vm2262, %v2189
      %2275 = vst.msk [vmem:[#allocation2 + $0x90] sm:$0xf] %vm2262, %v2191
      %2276 = vst.msk [vmem:[#allocation2 + $0x9c] sm:$0xf] %vm2262, %v2193
      %2277 = vst.msk [vmem:[#allocation2 + $0xa8] sm:$0xf] %vm2262, %v2195
      %2278 = vst.msk [vmem:[#allocation2 + $0xb4] sm:$0xf] %vm2262, %v2197
      %2279 = vst.msk [vmem:[#allocation2 + $0xc0] sm:$0xf] %vm2262, %v2199
      %2280 = vst.msk [vmem:[#allocation2 + $0xcc] sm:$0xf] %vm2262, %v2201
      %2281 = vst.msk [vmem:[#allocation2 + $0xd8] sm:$0xf] %vm2262, %v2203
      %2282 = vst.msk [vmem:[#allocation2 + $0xe4] sm:$0xf] %vm2262, %v2205
      %2283 = vst.msk [vmem:[#allocation2 + $0xf0] sm:$0xf] %vm2262, %v2207
      %2284 = vst.msk [vmem:[#allocation2 + $0xfc] sm:$0xf] %vm2262, %v2209
      %2285 = vst.msk [vmem:[#allocation2 + $0x108] sm:$0xf] %vm2262, %v2211
      %2286 = vst.msk [vmem:[#allocation2 + $0x114] sm:$0xf] %vm2262, %v2213
      %2287 = vst.msk [vmem:[#allocation2 + $0x120] sm:$0xf] %vm2262, %v2215
      %2288 = vst.msk [vmem:[#allocation2 + $0x12c] sm:$0xf] %vm2262, %v2217
      %2289 = vst.msk [vmem:[#allocation2 + $0x138] sm:$0xf] %vm2262, %v2219
      %2290 = vst.msk [vmem:[#allocation2 + $0x144] sm:$0xf] %vm2262, %v2221
      %2291 = vst.msk [vmem:[#allocation2 + $0x150] sm:$0xf] %vm2262, %v2223
      %2292 = vst.msk [vmem:[#allocation2 + $0x15c] sm:$0xf] %vm2262, %v2225
      %2293 = vst.msk [vmem:[#allocation2 + $0x168] sm:$0xf] %vm2262, %v2227
      %2294 = vst.msk [vmem:[#allocation2 + $0x174] sm:$0xf] %vm2262, %v2229
      %v2295 = vld [vmem:[%s1019] sm:$0xf]
      %v2296 = vld [vmem:[%s1019 + $0x4] sm:$0xf]
      %v2297 = vld [vmem:[%s1019 + $0x8] sm:$0x1]
      %v2298 = vld [vmem:[%s1019 + $0xc] sm:$0xf]
      %v2299 = vld [vmem:[%s1019 + $0x10] sm:$0xf]
      %v2300 = vld [vmem:[%s1019 + $0x14] sm:$0x1]
      %v2301 = vld [vmem:[%s1019 + $0x18] sm:$0xf]
      %v2302 = vld [vmem:[%s1019 + $0x1c] sm:$0xf]
      %v2303 = vld [vmem:[%s1019 + $0x20] sm:$0x1]
      %v2304 = vld [vmem:[%s1019 + $0x24] sm:$0xf]
      %v2305 = vld [vmem:[%s1019 + $0x28] sm:$0xf]
      %v2306 = vld [vmem:[%s1019 + $0x2c] sm:$0x1]
      %v2307 = vld [vmem:[%s1019 + $0x30] sm:$0xf]
      %v2308 = vld [vmem:[%s1019 + $0x34] sm:$0xf]
      %v2309 = vld [vmem:[%s1019 + $0x38] sm:$0x1]
      %v2310 = vld [vmem:[%s1019 + $0x3c] sm:$0xf]
      %v2311 = vld [vmem:[%s1019 + $0x40] sm:$0xf]
      %v2312 = vld [vmem:[%s1019 + $0x44] sm:$0x1]
      %v2313 = vld [vmem:[%s1019 + $0x48] sm:$0xf]
      %v2314 = vld [vmem:[%s1019 + $0x4c] sm:$0xf]
      %v2315 = vld [vmem:[%s1019 + $0x50] sm:$0x1]
      %v2316 = vld [vmem:[%s1019 + $0x54] sm:$0xf]
      %v2317 = vld [vmem:[%s1019 + $0x58] sm:$0xf]
      %v2318 = vld [vmem:[%s1019 + $0x5c] sm:$0x1]
      %v2319 = vld [vmem:[%s1019 + $0x60] sm:$0xf]
      %v2320 = vld [vmem:[%s1019 + $0x64] sm:$0xf]
      %v2321 = vld [vmem:[%s1019 + $0x68] sm:$0x1]
      %v2322 = vld [vmem:[%s1019 + $0x6c] sm:$0xf]
      %v2323 = vld [vmem:[%s1019 + $0x70] sm:$0xf]
      %v2324 = vld [vmem:[%s1019 + $0x74] sm:$0x1]
      %v2325 = vld [vmem:[%s1019 + $0x78] sm:$0xf]
      %v2326 = vld [vmem:[%s1019 + $0x7c] sm:$0xf]
      %v2327 = vld [vmem:[%s1019 + $0x80] sm:$0x1]
      %v2328 = vld [vmem:[%s1019 + $0x84] sm:$0xf]
      %v2329 = vld [vmem:[%s1019 + $0x88] sm:$0xf]
      %v2330 = vld [vmem:[%s1019 + $0x8c] sm:$0x1]
      %v2331 = vld [vmem:[%s1019 + $0x90] sm:$0xf]
      %v2332 = vld [vmem:[%s1019 + $0x94] sm:$0xf]
      %v2333 = vld [vmem:[%s1019 + $0x98] sm:$0x1]
      %v2334 = vld [vmem:[%s1019 + $0x9c] sm:$0xf]
      %v2335 = vld [vmem:[%s1019 + $0xa0] sm:$0xf]
      %v2336 = vld [vmem:[%s1019 + $0xa4] sm:$0x1]
      %v2337 = vld [vmem:[%s1019 + $0xa8] sm:$0xf]
      %v2338 = vld [vmem:[%s1019 + $0xac] sm:$0xf]
      %v2339 = vld [vmem:[%s1019 + $0xb0] sm:$0x1]
      %v2340 = vld [vmem:[%s1019 + $0xb4] sm:$0xf]
      %v2341 = vld [vmem:[%s1019 + $0xb8] sm:$0xf]
      %v2342 = vld [vmem:[%s1019 + $0xbc] sm:$0x1]
      %v2344 = vshrl.u32 %v2295, 16
      %v2346 = vrot.slane %v2344, 4
      %v2347 = vshll.u32 %v2295, 16
      %v2349 = vrot.slane %v2347, 5
      %v2350 = vor.u32 %v2346, %v2349
      %v2351 = vrot.slane %v2350, 4
      %v2353 = vshll.u32 %v2296, 16
      %v2355 = vrot.slane %v2353, 5
      %v2356 = vsel %vm1248, %v2351, %v2355
      %v2357 = vshrl.u32 %v2296, 16
      %v2359 = vrot.slane %v2357, 4
      %v2360 = vor.u32 %v2359, %v2355
      %v2361 = vrot.slane %v2360, 4
      %v2363 = vshll.u32 %v2297, 16
      %v2365 = vrot.slane %v2363, 5
      %v2366 = vsel %vm1248, %v2361, %v2365
      %v2368 = vshrl.u32 %v2298, 16
      %v2370 = vrot.slane %v2368, 4
      %v2371 = vshll.u32 %v2298, 16
      %v2373 = vrot.slane %v2371, 5
      %v2374 = vor.u32 %v2370, %v2373
      %v2375 = vrot.slane %v2374, 4
      %v2377 = vshll.u32 %v2299, 16
      %v2379 = vrot.slane %v2377, 5
      %v2380 = vsel %vm1248, %v2375, %v2379
      %v2381 = vshrl.u32 %v2299, 16
      %v2383 = vrot.slane %v2381, 4
      %v2384 = vor.u32 %v2383, %v2379
      %v2385 = vrot.slane %v2384, 4
      %v2387 = vshll.u32 %v2300, 16
      %v2389 = vrot.slane %v2387, 5
      %v2390 = vsel %vm1248, %v2385, %v2389
      %v2392 = vshrl.u32 %v2301, 16
      %v2394 = vrot.slane %v2392, 4
      %v2395 = vshll.u32 %v2301, 16
      %v2397 = vrot.slane %v2395, 5
      %v2398 = vor.u32 %v2394, %v2397
      %v2399 = vrot.slane %v2398, 4
      %v2401 = vshll.u32 %v2302, 16
      %v2403 = vrot.slane %v2401, 5
      %v2404 = vsel %vm1248, %v2399, %v2403
      %v2405 = vshrl.u32 %v2302, 16
      %v2407 = vrot.slane %v2405, 4
      %v2408 = vor.u32 %v2407, %v2403
      %v2409 = vrot.slane %v2408, 4
      %v2411 = vshll.u32 %v2303, 16
      %v2413 = vrot.slane %v2411, 5
      %v2414 = vsel %vm1248, %v2409, %v2413
      %v2416 = vshrl.u32 %v2304, 16
      %v2418 = vrot.slane %v2416, 4
      %v2419 = vshll.u32 %v2304, 16
      %v2421 = vrot.slane %v2419, 5
      %v2422 = vor.u32 %v2418, %v2421
      %v2423 = vrot.slane %v2422, 4
      %v2425 = vshll.u32 %v2305, 16
      %v2427 = vrot.slane %v2425, 5
      %v2428 = vsel %vm1248, %v2423, %v2427
      %v2429 = vshrl.u32 %v2305, 16
      %v2431 = vrot.slane %v2429, 4
      %v2432 = vor.u32 %v2431, %v2427
      %v2433 = vrot.slane %v2432, 4
      %v2435 = vshll.u32 %v2306, 16
      %v2437 = vrot.slane %v2435, 5
      %v2438 = vsel %vm1248, %v2433, %v2437
      %v2440 = vshrl.u32 %v2307, 16
      %v2442 = vrot.slane %v2440, 4
      %v2443 = vshll.u32 %v2307, 16
      %v2445 = vrot.slane %v2443, 5
      %v2446 = vor.u32 %v2442, %v2445
      %v2447 = vrot.slane %v2446, 4
      %v2449 = vshll.u32 %v2308, 16
      %v2451 = vrot.slane %v2449, 5
      %v2452 = vsel %vm1248, %v2447, %v2451
      %v2453 = vshrl.u32 %v2308, 16
      %v2455 = vrot.slane %v2453, 4
      %v2456 = vor.u32 %v2455, %v2451
      %v2457 = vrot.slane %v2456, 4
      %v2459 = vshll.u32 %v2309, 16
      %v2461 = vrot.slane %v2459, 5
      %v2462 = vsel %vm1248, %v2457, %v2461
      %v2464 = vshrl.u32 %v2310, 16
      %v2466 = vrot.slane %v2464, 4
      %v2467 = vshll.u32 %v2310, 16
      %v2469 = vrot.slane %v2467, 5
      %v2470 = vor.u32 %v2466, %v2469
      %v2471 = vrot.slane %v2470, 4
      %v2473 = vshll.u32 %v2311, 16
      %v2475 = vrot.slane %v2473, 5
      %v2476 = vsel %vm1248, %v2471, %v2475
      %v2477 = vshrl.u32 %v2311, 16
      %v2479 = vrot.slane %v2477, 4
      %v2480 = vor.u32 %v2479, %v2475
      %v2481 = vrot.slane %v2480, 4
      %v2483 = vshll.u32 %v2312, 16
      %v2485 = vrot.slane %v2483, 5
      %v2486 = vsel %vm1248, %v2481, %v2485
      %v2488 = vshrl.u32 %v2313, 16
      %v2490 = vrot.slane %v2488, 4
      %v2491 = vshll.u32 %v2313, 16
      %v2493 = vrot.slane %v2491, 5
      %v2494 = vor.u32 %v2490, %v2493
      %v2495 = vrot.slane %v2494, 4
      %v2497 = vshll.u32 %v2314, 16
      %v2499 = vrot.slane %v2497, 5
      %v2500 = vsel %vm1248, %v2495, %v2499
      %v2501 = vshrl.u32 %v2314, 16
      %v2503 = vrot.slane %v2501, 4
      %v2504 = vor.u32 %v2503, %v2499
      %v2505 = vrot.slane %v2504, 4
      %v2507 = vshll.u32 %v2315, 16
      %v2509 = vrot.slane %v2507, 5
      %v2510 = vsel %vm1248, %v2505, %v2509
      %v2512 = vshrl.u32 %v2316, 16
      %v2514 = vrot.slane %v2512, 4
      %v2515 = vshll.u32 %v2316, 16
      %v2517 = vrot.slane %v2515, 5
      %v2518 = vor.u32 %v2514, %v2517
      %v2519 = vrot.slane %v2518, 4
      %v2521 = vshll.u32 %v2317, 16
      %v2523 = vrot.slane %v2521, 5
      %v2524 = vsel %vm1248, %v2519, %v2523
      %v2525 = vshrl.u32 %v2317, 16
      %v2527 = vrot.slane %v2525, 4
      %v2528 = vor.u32 %v2527, %v2523
      %v2529 = vrot.slane %v2528, 4
      %v2531 = vshll.u32 %v2318, 16
      %v2533 = vrot.slane %v2531, 5
      %v2534 = vsel %vm1248, %v2529, %v2533
      %v2536 = vshrl.u32 %v2319, 16
      %v2538 = vrot.slane %v2536, 4
      %v2539 = vshll.u32 %v2319, 16
      %v2541 = vrot.slane %v2539, 5
      %v2542 = vor.u32 %v2538, %v2541
      %v2543 = vrot.slane %v2542, 4
      %v2545 = vshll.u32 %v2320, 16
      %v2547 = vrot.slane %v2545, 5
      %v2548 = vsel %vm1248, %v2543, %v2547
      %v2549 = vshrl.u32 %v2320, 16
      %v2551 = vrot.slane %v2549, 4
      %v2552 = vor.u32 %v2551, %v2547
      %v2553 = vrot.slane %v2552, 4
      %v2555 = vshll.u32 %v2321, 16
      %v2557 = vrot.slane %v2555, 5
      %v2558 = vsel %vm1248, %v2553, %v2557
      %v2560 = vshrl.u32 %v2322, 16
      %v2562 = vrot.slane %v2560, 4
      %v2563 = vshll.u32 %v2322, 16
      %v2565 = vrot.slane %v2563, 5
      %v2566 = vor.u32 %v2562, %v2565
      %v2567 = vrot.slane %v2566, 4
      %v2569 = vshll.u32 %v2323, 16
      %v2571 = vrot.slane %v2569, 5
      %v2572 = vsel %vm1248, %v2567, %v2571
      %v2573 = vshrl.u32 %v2323, 16
      %v2575 = vrot.slane %v2573, 4
      %v2576 = vor.u32 %v2575, %v2571
      %v2577 = vrot.slane %v2576, 4
      %v2579 = vshll.u32 %v2324, 16
      %v2581 = vrot.slane %v2579, 5
      %v2582 = vsel %vm1248, %v2577, %v2581
      %v2584 = vshrl.u32 %v2325, 16
      %v2586 = vrot.slane %v2584, 4
      %v2587 = vshll.u32 %v2325, 16
      %v2589 = vrot.slane %v2587, 5
      %v2590 = vor.u32 %v2586, %v2589
      %v2591 = vrot.slane %v2590, 4
      %v2593 = vshll.u32 %v2326, 16
      %v2595 = vrot.slane %v2593, 5
      %v2596 = vsel %vm1248, %v2591, %v2595
      %v2597 = vshrl.u32 %v2326, 16
      %v2599 = vrot.slane %v2597, 4
      %v2600 = vor.u32 %v2599, %v2595
      %v2601 = vrot.slane %v2600, 4
      %v2603 = vshll.u32 %v2327, 16
      %v2605 = vrot.slane %v2603, 5
      %v2606 = vsel %vm1248, %v2601, %v2605
      %v2608 = vshrl.u32 %v2328, 16
      %v2610 = vrot.slane %v2608, 4
      %v2611 = vshll.u32 %v2328, 16
      %v2613 = vrot.slane %v2611, 5
      %v2614 = vor.u32 %v2610, %v2613
      %v2615 = vrot.slane %v2614, 4
      %v2617 = vshll.u32 %v2329, 16
      %v2619 = vrot.slane %v2617, 5
      %v2620 = vsel %vm1248, %v2615, %v2619
      %v2621 = vshrl.u32 %v2329, 16
      %v2623 = vrot.slane %v2621, 4
      %v2624 = vor.u32 %v2623, %v2619
      %v2625 = vrot.slane %v2624, 4
      %v2627 = vshll.u32 %v2330, 16
      %v2629 = vrot.slane %v2627, 5
      %v2630 = vsel %vm1248, %v2625, %v2629
      %v2632 = vshrl.u32 %v2331, 16
      %v2634 = vrot.slane %v2632, 4
      %v2635 = vshll.u32 %v2331, 16
      %v2637 = vrot.slane %v2635, 5
      %v2638 = vor.u32 %v2634, %v2637
      %v2639 = vrot.slane %v2638, 4
      %v2641 = vshll.u32 %v2332, 16
      %v2643 = vrot.slane %v2641, 5
      %v2644 = vsel %vm1248, %v2639, %v2643
      %v2645 = vshrl.u32 %v2332, 16
      %v2647 = vrot.slane %v2645, 4
      %v2648 = vor.u32 %v2647, %v2643
      %v2649 = vrot.slane %v2648, 4
      %v2651 = vshll.u32 %v2333, 16
      %v2653 = vrot.slane %v2651, 5
      %v2654 = vsel %vm1248, %v2649, %v2653
      %v2656 = vshrl.u32 %v2334, 16
      %v2658 = vrot.slane %v2656, 4
      %v2659 = vshll.u32 %v2334, 16
      %v2661 = vrot.slane %v2659, 5
      %v2662 = vor.u32 %v2658, %v2661
      %v2663 = vrot.slane %v2662, 4
      %v2665 = vshll.u32 %v2335, 16
      %v2667 = vrot.slane %v2665, 5
      %v2668 = vsel %vm1248, %v2663, %v2667
      %v2669 = vshrl.u32 %v2335, 16
      %v2671 = vrot.slane %v2669, 4
      %v2672 = vor.u32 %v2671, %v2667
      %v2673 = vrot.slane %v2672, 4
      %v2675 = vshll.u32 %v2336, 16
      %v2677 = vrot.slane %v2675, 5
      %v2678 = vsel %vm1248, %v2673, %v2677
      %v2680 = vshrl.u32 %v2337, 16
      %v2682 = vrot.slane %v2680, 4
      %v2683 = vshll.u32 %v2337, 16
      %v2685 = vrot.slane %v2683, 5
      %v2686 = vor.u32 %v2682, %v2685
      %v2687 = vrot.slane %v2686, 4
      %v2689 = vshll.u32 %v2338, 16
      %v2691 = vrot.slane %v2689, 5
      %v2692 = vsel %vm1248, %v2687, %v2691
      %v2693 = vshrl.u32 %v2338, 16
      %v2695 = vrot.slane %v2693, 4
      %v2696 = vor.u32 %v2695, %v2691
      %v2697 = vrot.slane %v2696, 4
      %v2699 = vshll.u32 %v2339, 16
      %v2701 = vrot.slane %v2699, 5
      %v2702 = vsel %vm1248, %v2697, %v2701
      %v2704 = vshrl.u32 %v2340, 16
      %v2706 = vrot.slane %v2704, 4
      %v2707 = vshll.u32 %v2340, 16
      %v2709 = vrot.slane %v2707, 5
      %v2710 = vor.u32 %v2706, %v2709
      %v2711 = vrot.slane %v2710, 4
      %v2713 = vshll.u32 %v2341, 16
      %v2715 = vrot.slane %v2713, 5
      %v2716 = vsel %vm1248, %v2711, %v2715
      %v2717 = vshrl.u32 %v2341, 16
      %v2719 = vrot.slane %v2717, 4
      %v2720 = vor.u32 %v2719, %v2715
      %v2721 = vrot.slane %v2720, 4
      %v2723 = vshll.u32 %v2342, 16
      %v2725 = vrot.slane %v2723, 5
      %v2726 = vsel %vm1248, %v2721, %v2725
      %2759 = vst.msk [vmem:[#allocation2 + $0x4] sm:$0xf] %vm543, %v2356
      %2760 = vst.msk [vmem:[#allocation2 + $0x10] sm:$0xf] %vm543, %v2366
      %2761 = vst.msk [vmem:[#allocation2 + $0x1c] sm:$0xf] %vm543, %v2380
      %2762 = vst.msk [vmem:[#allocation2 + $0x28] sm:$0xf] %vm543, %v2390
      %2763 = vst.msk [vmem:[#allocation2 + $0x34] sm:$0xf] %vm543, %v2404
      %2764 = vst.msk [vmem:[#allocation2 + $0x40] sm:$0xf] %vm543, %v2414
      %2765 = vst.msk [vmem:[#allocation2 + $0x4c] sm:$0xf] %vm543, %v2428
      %2766 = vst.msk [vmem:[#allocation2 + $0x58] sm:$0xf] %vm543, %v2438
      %2767 = vst.msk [vmem:[#allocation2 + $0x64] sm:$0xf] %vm543, %v2452
      %2768 = vst.msk [vmem:[#allocation2 + $0x70] sm:$0xf] %vm543, %v2462
      %2769 = vst.msk [vmem:[#allocation2 + $0x7c] sm:$0xf] %vm543, %v2476
      %2770 = vst.msk [vmem:[#allocation2 + $0x88] sm:$0xf] %vm543, %v2486
      %2771 = vst.msk [vmem:[#allocation2 + $0x94] sm:$0xf] %vm543, %v2500
      %2772 = vst.msk [vmem:[#allocation2 + $0xa0] sm:$0xf] %vm543, %v2510
      %2773 = vst.msk [vmem:[#allocation2 + $0xac] sm:$0xf] %vm543, %v2524
      %2774 = vst.msk [vmem:[#allocation2 + $0xb8] sm:$0xf] %vm543, %v2534
      %2775 = vst.msk [vmem:[#allocation2 + $0xc4] sm:$0xf] %vm543, %v2548
      %2776 = vst.msk [vmem:[#allocation2 + $0xd0] sm:$0xf] %vm543, %v2558
      %2777 = vst.msk [vmem:[#allocation2 + $0xdc] sm:$0xf] %vm543, %v2572
      %2778 = vst.msk [vmem:[#allocation2 + $0xe8] sm:$0xf] %vm543, %v2582
      %2779 = vst.msk [vmem:[#allocation2 + $0xf4] sm:$0xf] %vm543, %v2596
      %2780 = vst.msk [vmem:[#allocation2 + $0x100] sm:$0xf] %vm543, %v2606
      %2781 = vst.msk [vmem:[#allocation2 + $0x10c] sm:$0xf] %vm543, %v2620
      %2782 = vst.msk [vmem:[#allocation2 + $0x118] sm:$0xf] %vm543, %v2630
      %2783 = vst.msk [vmem:[#allocation2 + $0x124] sm:$0xf] %vm543, %v2644
      %2784 = vst.msk [vmem:[#allocation2 + $0x130] sm:$0xf] %vm543, %v2654
      %2785 = vst.msk [vmem:[#allocation2 + $0x13c] sm:$0xf] %vm543, %v2668
      %2786 = vst.msk [vmem:[#allocation2 + $0x148] sm:$0xf] %vm543, %v2678
      %2787 = vst.msk [vmem:[#allocation2 + $0x154] sm:$0xf] %vm543, %v2692
      %2788 = vst.msk [vmem:[#allocation2 + $0x160] sm:$0xf] %vm543, %v2702
      %2789 = vst.msk [vmem:[#allocation2 + $0x16c] sm:$0xf] %vm543, %v2716
      %2790 = vst.msk [vmem:[#allocation2 + $0x178] sm:$0xf] %vm543, %v2726
      %v2791 = vld [vmem:[%s1019] sm:$0xe]
      %v2792 = vld [vmem:[%s1019 + $0x4] sm:$0xf]
      %v2793 = vld [vmem:[%s1019 + $0x8] sm:$0x1]
      %v2794 = vld [vmem:[%s1019 + $0xc] sm:$0xe]
      %v2795 = vld [vmem:[%s1019 + $0x10] sm:$0xf]
      %v2796 = vld [vmem:[%s1019 + $0x14] sm:$0x1]
      %v2797 = vld [vmem:[%s1019 + $0x18] sm:$0xe]
      %v2798 = vld [vmem:[%s1019 + $0x1c] sm:$0xf]
      %v2799 = vld [vmem:[%s1019 + $0x20] sm:$0x1]
      %v2800 = vld [vmem:[%s1019 + $0x24] sm:$0xe]
      %v2801 = vld [vmem:[%s1019 + $0x28] sm:$0xf]
      %v2802 = vld [vmem:[%s1019 + $0x2c] sm:$0x1]
      %v2803 = vld [vmem:[%s1019 + $0x30] sm:$0xe]
      %v2804 = vld [vmem:[%s1019 + $0x34] sm:$0xf]
      %v2805 = vld [vmem:[%s1019 + $0x38] sm:$0x1]
      %v2806 = vld [vmem:[%s1019 + $0x3c] sm:$0xe]
      %v2807 = vld [vmem:[%s1019 + $0x40] sm:$0xf]
      %v2808 = vld [vmem:[%s1019 + $0x44] sm:$0x1]
      %v2809 = vld [vmem:[%s1019 + $0x48] sm:$0xe]
      %v2810 = vld [vmem:[%s1019 + $0x4c] sm:$0xf]
      %v2811 = vld [vmem:[%s1019 + $0x50] sm:$0x1]
      %v2812 = vld [vmem:[%s1019 + $0x54] sm:$0xe]
      %v2813 = vld [vmem:[%s1019 + $0x58] sm:$0xf]
      %v2814 = vld [vmem:[%s1019 + $0x5c] sm:$0x1]
      %v2815 = vld [vmem:[%s1019 + $0x60] sm:$0xe]
      %v2816 = vld [vmem:[%s1019 + $0x64] sm:$0xf]
      %v2817 = vld [vmem:[%s1019 + $0x68] sm:$0x1]
      %v2818 = vld [vmem:[%s1019 + $0x6c] sm:$0xe]
      %v2819 = vld [vmem:[%s1019 + $0x70] sm:$0xf]
      %v2820 = vld [vmem:[%s1019 + $0x74] sm:$0x1]
      %v2821 = vld [vmem:[%s1019 + $0x78] sm:$0xe]
      %v2822 = vld [vmem:[%s1019 + $0x7c] sm:$0xf]
      %v2823 = vld [vmem:[%s1019 + $0x80] sm:$0x1]
      %v2824 = vld [vmem:[%s1019 + $0x84] sm:$0xe]
      %v2825 = vld [vmem:[%s1019 + $0x88] sm:$0xf]
      %v2826 = vld [vmem:[%s1019 + $0x8c] sm:$0x1]
      %v2827 = vld [vmem:[%s1019 + $0x90] sm:$0xe]
      %v2828 = vld [vmem:[%s1019 + $0x94] sm:$0xf]
      %v2829 = vld [vmem:[%s1019 + $0x98] sm:$0x1]
      %v2830 = vld [vmem:[%s1019 + $0x9c] sm:$0xe]
      %v2831 = vld [vmem:[%s1019 + $0xa0] sm:$0xf]
      %v2832 = vld [vmem:[%s1019 + $0xa4] sm:$0x1]
      %v2833 = vld [vmem:[%s1019 + $0xa8] sm:$0xe]
      %v2834 = vld [vmem:[%s1019 + $0xac] sm:$0xf]
      %v2835 = vld [vmem:[%s1019 + $0xb0] sm:$0x1]
      %v2836 = vld [vmem:[%s1019 + $0xb4] sm:$0xe]
      %v2837 = vld [vmem:[%s1019 + $0xb8] sm:$0xf]
      %v2838 = vld [vmem:[%s1019 + $0xbc] sm:$0x1]
      %v2887 = vrot.slane %v2791, 5
      %v2888 = vrot.slane %v2887, 4
      %v2889 = vrot.slane %v2792, 5
      %v2890 = vsel %vm1860, %v2888, %v2889
      %v2891 = vrot.slane %v2889, 4
      %v2892 = vrot.slane %v2793, 5
      %v2893 = vsel %vm1860, %v2891, %v2892
      %v2894 = vrot.slane %v2794, 5
      %v2895 = vrot.slane %v2894, 4
      %v2896 = vrot.slane %v2795, 5
      %v2897 = vsel %vm1860, %v2895, %v2896
      %v2898 = vrot.slane %v2896, 4
      %v2899 = vrot.slane %v2796, 5
      %v2900 = vsel %vm1860, %v2898, %v2899
      %v2901 = vrot.slane %v2797, 5
      %v2902 = vrot.slane %v2901, 4
      %v2903 = vrot.slane %v2798, 5
      %v2904 = vsel %vm1860, %v2902, %v2903
      %v2905 = vrot.slane %v2903, 4
      %v2906 = vrot.slane %v2799, 5
      %v2907 = vsel %vm1860, %v2905, %v2906
      %v2908 = vrot.slane %v2800, 5
      %v2909 = vrot.slane %v2908, 4
      %v2910 = vrot.slane %v2801, 5
      %v2911 = vsel %vm1860, %v2909, %v2910
      %v2912 = vrot.slane %v2910, 4
      %v2913 = vrot.slane %v2802, 5
      %v2914 = vsel %vm1860, %v2912, %v2913
      %v2915 = vrot.slane %v2803, 5
      %v2916 = vrot.slane %v2915, 4
      %v2917 = vrot.slane %v2804, 5
      %v2918 = vsel %vm1860, %v2916, %v2917
      %v2919 = vrot.slane %v2917, 4
      %v2920 = vrot.slane %v2805, 5
      %v2921 = vsel %vm1860, %v2919, %v2920
      %v2922 = vrot.slane %v2806, 5
      %v2923 = vrot.slane %v2922, 4
      %v2924 = vrot.slane %v2807, 5
      %v2925 = vsel %vm1860, %v2923, %v2924
      %v2926 = vrot.slane %v2924, 4
      %v2927 = vrot.slane %v2808, 5
      %v2928 = vsel %vm1860, %v2926, %v2927
      %v2929 = vrot.slane %v2809, 5
      %v2930 = vrot.slane %v2929, 4
      %v2931 = vrot.slane %v2810, 5
      %v2932 = vsel %vm1860, %v2930, %v2931
      %v2933 = vrot.slane %v2931, 4
      %v2934 = vrot.slane %v2811, 5
      %v2935 = vsel %vm1860, %v2933, %v2934
      %v2936 = vrot.slane %v2812, 5
      %v2937 = vrot.slane %v2936, 4
      %v2938 = vrot.slane %v2813, 5
      %v2939 = vsel %vm1860, %v2937, %v2938
      %v2940 = vrot.slane %v2938, 4
      %v2941 = vrot.slane %v2814, 5
      %v2942 = vsel %vm1860, %v2940, %v2941
      %v2943 = vrot.slane %v2815, 5
      %v2944 = vrot.slane %v2943, 4
      %v2945 = vrot.slane %v2816, 5
      %v2946 = vsel %vm1860, %v2944, %v2945
      %v2947 = vrot.slane %v2945, 4
      %v2948 = vrot.slane %v2817, 5
      %v2949 = vsel %vm1860, %v2947, %v2948
      %v2950 = vrot.slane %v2818, 5
      %v2951 = vrot.slane %v2950, 4
      %v2952 = vrot.slane %v2819, 5
      %v2953 = vsel %vm1860, %v2951, %v2952
      %v2954 = vrot.slane %v2952, 4
      %v2955 = vrot.slane %v2820, 5
      %v2956 = vsel %vm1860, %v2954, %v2955
      %v2957 = vrot.slane %v2821, 5
      %v2958 = vrot.slane %v2957, 4
      %v2959 = vrot.slane %v2822, 5
      %v2960 = vsel %vm1860, %v2958, %v2959
      %v2961 = vrot.slane %v2959, 4
      %v2962 = vrot.slane %v2823, 5
      %v2963 = vsel %vm1860, %v2961, %v2962
      %v2964 = vrot.slane %v2824, 5
      %v2965 = vrot.slane %v2964, 4
      %v2966 = vrot.slane %v2825, 5
      %v2967 = vsel %vm1860, %v2965, %v2966
      %v2968 = vrot.slane %v2966, 4
      %v2969 = vrot.slane %v2826, 5
      %v2970 = vsel %vm1860, %v2968, %v2969
      %v2971 = vrot.slane %v2827, 5
      %v2972 = vrot.slane %v2971, 4
      %v2973 = vrot.slane %v2828, 5
      %v2974 = vsel %vm1860, %v2972, %v2973
      %v2975 = vrot.slane %v2973, 4
      %v2976 = vrot.slane %v2829, 5
      %v2977 = vsel %vm1860, %v2975, %v2976
      %v2978 = vrot.slane %v2830, 5
      %v2979 = vrot.slane %v2978, 4
      %v2980 = vrot.slane %v2831, 5
      %v2981 = vsel %vm1860, %v2979, %v2980
      %v2982 = vrot.slane %v2980, 4
      %v2983 = vrot.slane %v2832, 5
      %v2984 = vsel %vm1860, %v2982, %v2983
      %v2985 = vrot.slane %v2833, 5
      %v2986 = vrot.slane %v2985, 4
      %v2987 = vrot.slane %v2834, 5
      %v2988 = vsel %vm1860, %v2986, %v2987
      %v2989 = vrot.slane %v2987, 4
      %v2990 = vrot.slane %v2835, 5
      %v2991 = vsel %vm1860, %v2989, %v2990
      %v2992 = vrot.slane %v2836, 5
      %v2993 = vrot.slane %v2992, 4
      %v2994 = vrot.slane %v2837, 5
      %v2995 = vsel %vm1860, %v2993, %v2994
      %v2996 = vrot.slane %v2994, 4
      %v2997 = vrot.slane %v2838, 5
      %v2998 = vsel %vm1860, %v2996, %v2997
      %2999 = vrot.lane.b32.xlu0 %v2890, 32
      %v3000 = vpop.permute.xlu0 %2999
      %3001 = vrot.lane.b32.xlu0 %v2893, 32
      %v3002 = vpop.permute.xlu0 %3001
      %3003 = vrot.lane.b32.xlu0 %v2897, 32
      %v3004 = vpop.permute.xlu0 %3003
      %3005 = vrot.lane.b32.xlu0 %v2900, 32
      %v3006 = vpop.permute.xlu0 %3005
      %3007 = vrot.lane.b32.xlu0 %v2904, 32
      %v3008 = vpop.permute.xlu0 %3007
      %3009 = vrot.lane.b32.xlu0 %v2907, 32
      %v3010 = vpop.permute.xlu0 %3009
      %3011 = vrot.lane.b32.xlu0 %v2911, 32
      %v3012 = vpop.permute.xlu0 %3011
      %3013 = vrot.lane.b32.xlu0 %v2914, 32
      %v3014 = vpop.permute.xlu0 %3013
      %3015 = vrot.lane.b32.xlu0 %v2918, 32
      %v3016 = vpop.permute.xlu0 %3015
      %3017 = vrot.lane.b32.xlu0 %v2921, 32
      %v3018 = vpop.permute.xlu0 %3017
      %3019 = vrot.lane.b32.xlu0 %v2925, 32
      %v3020 = vpop.permute.xlu0 %3019
      %3021 = vrot.lane.b32.xlu0 %v2928, 32
      %v3022 = vpop.permute.xlu0 %3021
      %3023 = vrot.lane.b32.xlu0 %v2932, 32
      %v3024 = vpop.permute.xlu0 %3023
      %3025 = vrot.lane.b32.xlu0 %v2935, 32
      %v3026 = vpop.permute.xlu0 %3025
      %3027 = vrot.lane.b32.xlu0 %v2939, 32
      %v3028 = vpop.permute.xlu0 %3027
      %3029 = vrot.lane.b32.xlu0 %v2942, 32
      %v3030 = vpop.permute.xlu0 %3029
      %3031 = vrot.lane.b32.xlu0 %v2946, 32
      %v3032 = vpop.permute.xlu0 %3031
      %3033 = vrot.lane.b32.xlu0 %v2949, 32
      %v3034 = vpop.permute.xlu0 %3033
      %3035 = vrot.lane.b32.xlu0 %v2953, 32
      %v3036 = vpop.permute.xlu0 %3035
      %3037 = vrot.lane.b32.xlu0 %v2956, 32
      %v3038 = vpop.permute.xlu0 %3037
      %3039 = vrot.lane.b32.xlu0 %v2960, 32
      %v3040 = vpop.permute.xlu0 %3039
      %3041 = vrot.lane.b32.xlu0 %v2963, 32
      %v3042 = vpop.permute.xlu0 %3041
      %3043 = vrot.lane.b32.xlu0 %v2967, 32
      %v3044 = vpop.permute.xlu0 %3043
      %3045 = vrot.lane.b32.xlu0 %v2970, 32
      %v3046 = vpop.permute.xlu0 %3045
      %3047 = vrot.lane.b32.xlu0 %v2974, 32
      %v3048 = vpop.permute.xlu0 %3047
      %3049 = vrot.lane.b32.xlu0 %v2977, 32
      %v3050 = vpop.permute.xlu0 %3049
      %3051 = vrot.lane.b32.xlu0 %v2981, 32
      %v3052 = vpop.permute.xlu0 %3051
      %3053 = vrot.lane.b32.xlu0 %v2984, 32
      %v3054 = vpop.permute.xlu0 %3053
      %3055 = vrot.lane.b32.xlu0 %v2988, 32
      %v3056 = vpop.permute.xlu0 %3055
      %3057 = vrot.lane.b32.xlu0 %v2991, 32
      %v3058 = vpop.permute.xlu0 %3057
      %3059 = vrot.lane.b32.xlu0 %v2995, 32
      %v3060 = vpop.permute.xlu0 %3059
      %3061 = vrot.lane.b32.xlu0 %v2998, 32
      %v3062 = vpop.permute.xlu0 %3061
      %3095 = vst.msk [vmem:[#allocation2 + $0x4] sm:$0xf] %vm1729, %v3000
      %3096 = vst.msk [vmem:[#allocation2 + $0x10] sm:$0xf] %vm1729, %v3002
      %3097 = vst.msk [vmem:[#allocation2 + $0x1c] sm:$0xf] %vm1729, %v3004
      %3098 = vst.msk [vmem:[#allocation2 + $0x28] sm:$0xf] %vm1729, %v3006
      %3099 = vst.msk [vmem:[#allocation2 + $0x34] sm:$0xf] %vm1729, %v3008
      %3100 = vst.msk [vmem:[#allocation2 + $0x40] sm:$0xf] %vm1729, %v3010
      %3101 = vst.msk [vmem:[#allocation2 + $0x4c] sm:$0xf] %vm1729, %v3012
      %3102 = vst.msk [vmem:[#allocation2 + $0x58] sm:$0xf] %vm1729, %v3014
      %3103 = vst.msk [vmem:[#allocation2 + $0x64] sm:$0xf] %vm1729, %v3016
      %3104 = vst.msk [vmem:[#allocation2 + $0x70] sm:$0xf] %vm1729, %v3018
      %3105 = vst.msk [vmem:[#allocation2 + $0x7c] sm:$0xf] %vm1729, %v3020
      %3106 = vst.msk [vmem:[#allocation2 + $0x88] sm:$0xf] %vm1729, %v3022
      %3107 = vst.msk [vmem:[#allocation2 + $0x94] sm:$0xf] %vm1729, %v3024
      %3108 = vst.msk [vmem:[#allocation2 + $0xa0] sm:$0xf] %vm1729, %v3026
      %3109 = vst.msk [vmem:[#allocation2 + $0xac] sm:$0xf] %vm1729, %v3028
      %3110 = vst.msk [vmem:[#allocation2 + $0xb8] sm:$0xf] %vm1729, %v3030
      %3111 = vst.msk [vmem:[#allocation2 + $0xc4] sm:$0xf] %vm1729, %v3032
      %3112 = vst.msk [vmem:[#allocation2 + $0xd0] sm:$0xf] %vm1729, %v3034
      %3113 = vst.msk [vmem:[#allocation2 + $0xdc] sm:$0xf] %vm1729, %v3036
      %3114 = vst.msk [vmem:[#allocation2 + $0xe8] sm:$0xf] %vm1729, %v3038
      %3115 = vst.msk [vmem:[#allocation2 + $0xf4] sm:$0xf] %vm1729, %v3040
      %3116 = vst.msk [vmem:[#allocation2 + $0x100] sm:$0xf] %vm1729, %v3042
      %3117 = vst.msk [vmem:[#allocation2 + $0x10c] sm:$0xf] %vm1729, %v3044
      %3118 = vst.msk [vmem:[#allocation2 + $0x118] sm:$0xf] %vm1729, %v3046
      %3119 = vst.msk [vmem:[#allocation2 + $0x124] sm:$0xf] %vm1729, %v3048
      %3120 = vst.msk [vmem:[#allocation2 + $0x130] sm:$0xf] %vm1729, %v3050
      %3121 = vst.msk [vmem:[#allocation2 + $0x13c] sm:$0xf] %vm1729, %v3052
      %3122 = vst.msk [vmem:[#allocation2 + $0x148] sm:$0xf] %vm1729, %v3054
      %3123 = vst.msk [vmem:[#allocation2 + $0x154] sm:$0xf] %vm1729, %v3056
      %3124 = vst.msk [vmem:[#allocation2 + $0x160] sm:$0xf] %vm1729, %v3058
      %3125 = vst.msk [vmem:[#allocation2 + $0x16c] sm:$0xf] %vm1729, %v3060
      %3126 = vst.msk [vmem:[#allocation2 + $0x178] sm:$0xf] %vm1729, %v3062
      %s3127 = scalar_lea.vmem [#allocation3], 24
      %v3128 = vld [vmem:[%s3127] sm:$0xf]
      %v3129 = vld [vmem:[%s3127 + $0x4] sm:$0xf]
      %v3130 = vld [vmem:[%s3127 + $0xc] sm:$0xf]
      %v3131 = vld [vmem:[%s3127 + $0x10] sm:$0xf]
      %v3132 = vld [vmem:[%s3127 + $0x18] sm:$0xf]
      %v3133 = vld [vmem:[%s3127 + $0x1c] sm:$0xf]
      %v3134 = vld [vmem:[%s3127 + $0x24] sm:$0xf]
      %v3135 = vld [vmem:[%s3127 + $0x28] sm:$0xf]
      %v3136 = vld [vmem:[%s3127 + $0x30] sm:$0xf]
      %v3137 = vld [vmem:[%s3127 + $0x34] sm:$0xf]
      %v3138 = vld [vmem:[%s3127 + $0x3c] sm:$0xf]
      %v3139 = vld [vmem:[%s3127 + $0x40] sm:$0xf]
      %v3140 = vld [vmem:[%s3127 + $0x48] sm:$0xf]
      %v3141 = vld [vmem:[%s3127 + $0x4c] sm:$0xf]
      %v3142 = vld [vmem:[%s3127 + $0x54] sm:$0xf]
      %v3143 = vld [vmem:[%s3127 + $0x58] sm:$0xf]
      %v3144 = vld [vmem:[%s3127 + $0x60] sm:$0xf]
      %v3145 = vld [vmem:[%s3127 + $0x64] sm:$0xf]
      %v3146 = vld [vmem:[%s3127 + $0x6c] sm:$0xf]
      %v3147 = vld [vmem:[%s3127 + $0x70] sm:$0xf]
      %v3148 = vld [vmem:[%s3127 + $0x78] sm:$0xf]
      %v3149 = vld [vmem:[%s3127 + $0x7c] sm:$0xf]
      %v3150 = vld [vmem:[%s3127 + $0x84] sm:$0xf]
      %v3151 = vld [vmem:[%s3127 + $0x88] sm:$0xf]
      %v3152 = vld [vmem:[%s3127 + $0x90] sm:$0xf]
      %v3153 = vld [vmem:[%s3127 + $0x94] sm:$0xf]
      %v3154 = vld [vmem:[%s3127 + $0x9c] sm:$0xf]
      %v3155 = vld [vmem:[%s3127 + $0xa0] sm:$0xf]
      %v3156 = vld [vmem:[%s3127 + $0xa8] sm:$0xf]
      %v3157 = vld [vmem:[%s3127 + $0xac] sm:$0xf]
      %v3158 = vld [vmem:[%s3127 + $0xb4] sm:$0xf]
      %v3159 = vld [vmem:[%s3127 + $0xb8] sm:$0xf]
      %3192 = vrot.lane.b32.xlu0 %v3128, 64
      %v3193 = vpop.permute.xlu0 %3192
      %3194 = vrot.lane.b32.xlu0 %v3129, 64
      %v3195 = vpop.permute.xlu0 %3194
      %3196 = vrot.lane.b32.xlu0 %v3130, 64
      %v3197 = vpop.permute.xlu0 %3196
      %3198 = vrot.lane.b32.xlu0 %v3131, 64
      %v3199 = vpop.permute.xlu0 %3198
      %3200 = vrot.lane.b32.xlu0 %v3132, 64
      %v3201 = vpop.permute.xlu0 %3200
      %3202 = vrot.lane.b32.xlu0 %v3133, 64
      %v3203 = vpop.permute.xlu0 %3202
      %3204 = vrot.lane.b32.xlu0 %v3134, 64
      %v3205 = vpop.permute.xlu0 %3204
      %3206 = vrot.lane.b32.xlu0 %v3135, 64
      %v3207 = vpop.permute.xlu0 %3206
      %3208 = vrot.lane.b32.xlu0 %v3136, 64
      %v3209 = vpop.permute.xlu0 %3208
      %3210 = vrot.lane.b32.xlu0 %v3137, 64
      %v3211 = vpop.permute.xlu0 %3210
      %3212 = vrot.lane.b32.xlu0 %v3138, 64
      %v3213 = vpop.permute.xlu0 %3212
      %3214 = vrot.lane.b32.xlu0 %v3139, 64
      %v3215 = vpop.permute.xlu0 %3214
      %3216 = vrot.lane.b32.xlu0 %v3140, 64
      %v3217 = vpop.permute.xlu0 %3216
      %3218 = vrot.lane.b32.xlu0 %v3141, 64
      %v3219 = vpop.permute.xlu0 %3218
      %3220 = vrot.lane.b32.xlu0 %v3142, 64
      %v3221 = vpop.permute.xlu0 %3220
      %3222 = vrot.lane.b32.xlu0 %v3143, 64
      %v3223 = vpop.permute.xlu0 %3222
      %3224 = vrot.lane.b32.xlu0 %v3144, 64
      %v3225 = vpop.permute.xlu0 %3224
      %3226 = vrot.lane.b32.xlu0 %v3145, 64
      %v3227 = vpop.permute.xlu0 %3226
      %3228 = vrot.lane.b32.xlu0 %v3146, 64
      %v3229 = vpop.permute.xlu0 %3228
      %3230 = vrot.lane.b32.xlu0 %v3147, 64
      %v3231 = vpop.permute.xlu0 %3230
      %3232 = vrot.lane.b32.xlu0 %v3148, 64
      %v3233 = vpop.permute.xlu0 %3232
      %3234 = vrot.lane.b32.xlu0 %v3149, 64
      %v3235 = vpop.permute.xlu0 %3234
      %3236 = vrot.lane.b32.xlu0 %v3150, 64
      %v3237 = vpop.permute.xlu0 %3236
      %3238 = vrot.lane.b32.xlu0 %v3151, 64
      %v3239 = vpop.permute.xlu0 %3238
      %3240 = vrot.lane.b32.xlu0 %v3152, 64
      %v3241 = vpop.permute.xlu0 %3240
      %3242 = vrot.lane.b32.xlu0 %v3153, 64
      %v3243 = vpop.permute.xlu0 %3242
      %3244 = vrot.lane.b32.xlu0 %v3154, 64
      %v3245 = vpop.permute.xlu0 %3244
      %3246 = vrot.lane.b32.xlu0 %v3155, 64
      %v3247 = vpop.permute.xlu0 %3246
      %3248 = vrot.lane.b32.xlu0 %v3156, 64
      %v3249 = vpop.permute.xlu0 %3248
      %3250 = vrot.lane.b32.xlu0 %v3157, 64
      %v3251 = vpop.permute.xlu0 %3250
      %3252 = vrot.lane.b32.xlu0 %v3158, 64
      %v3253 = vpop.permute.xlu0 %3252
      %3254 = vrot.lane.b32.xlu0 %v3159, 64
      %v3255 = vpop.permute.xlu0 %3254
      %3288 = vst.msk [vmem:[#allocation2 + $0x4] sm:$0xf] %vm2069, %v3193
      %3289 = vst.msk [vmem:[#allocation2 + $0x10] sm:$0xf] %vm2069, %v3195
      %3290 = vst.msk [vmem:[#allocation2 + $0x1c] sm:$0xf] %vm2069, %v3197
      %3291 = vst.msk [vmem:[#allocation2 + $0x28] sm:$0xf] %vm2069, %v3199
      %3292 = vst.msk [vmem:[#allocation2 + $0x34] sm:$0xf] %vm2069, %v3201
      %3293 = vst.msk [vmem:[#allocation2 + $0x40] sm:$0xf] %vm2069, %v3203
      %3294 = vst.msk [vmem:[#allocation2 + $0x4c] sm:$0xf] %vm2069, %v3205
      %3295 = vst.msk [vmem:[#allocation2 + $0x58] sm:$0xf] %vm2069, %v3207
      %3296 = vst.msk [vmem:[#allocation2 + $0x64] sm:$0xf] %vm2069, %v3209
      %3297 = vst.msk [vmem:[#allocation2 + $0x70] sm:$0xf] %vm2069, %v3211
      %3298 = vst.msk [vmem:[#allocation2 + $0x7c] sm:$0xf] %vm2069, %v3213
      %3299 = vst.msk [vmem:[#allocation2 + $0x88] sm:$0xf] %vm2069, %v3215
      %3300 = vst.msk [vmem:[#allocation2 + $0x94] sm:$0xf] %vm2069, %v3217
      %3301 = vst.msk [vmem:[#allocation2 + $0xa0] sm:$0xf] %vm2069, %v3219
      %3302 = vst.msk [vmem:[#allocation2 + $0xac] sm:$0xf] %vm2069, %v3221
      %3303 = vst.msk [vmem:[#allocation2 + $0xb8] sm:$0xf] %vm2069, %v3223
      %3304 = vst.msk [vmem:[#allocation2 + $0xc4] sm:$0xf] %vm2069, %v3225
      %3305 = vst.msk [vmem:[#allocation2 + $0xd0] sm:$0xf] %vm2069, %v3227
      %3306 = vst.msk [vmem:[#allocation2 + $0xdc] sm:$0xf] %vm2069, %v3229
      %3307 = vst.msk [vmem:[#allocation2 + $0xe8] sm:$0xf] %vm2069, %v3231
      %3308 = vst.msk [vmem:[#allocation2 + $0xf4] sm:$0xf] %vm2069, %v3233
      %3309 = vst.msk [vmem:[#allocation2 + $0x100] sm:$0xf] %vm2069, %v3235
      %3310 = vst.msk [vmem:[#allocation2 + $0x10c] sm:$0xf] %vm2069, %v3237
      %3311 = vst.msk [vmem:[#allocation2 + $0x118] sm:$0xf] %vm2069, %v3239
      %3312 = vst.msk [vmem:[#allocation2 + $0x124] sm:$0xf] %vm2069, %v3241
      %3313 = vst.msk [vmem:[#allocation2 + $0x130] sm:$0xf] %vm2069, %v3243
      %3314 = vst.msk [vmem:[#allocation2 + $0x13c] sm:$0xf] %vm2069, %v3245
      %3315 = vst.msk [vmem:[#allocation2 + $0x148] sm:$0xf] %vm2069, %v3247
      %3316 = vst.msk [vmem:[#allocation2 + $0x154] sm:$0xf] %vm2069, %v3249
      %3317 = vst.msk [vmem:[#allocation2 + $0x160] sm:$0xf] %vm2069, %v3251
      %3318 = vst.msk [vmem:[#allocation2 + $0x16c] sm:$0xf] %vm2069, %v3253
      %3319 = vst.msk [vmem:[#allocation2 + $0x178] sm:$0xf] %vm2069, %v3255
      %v3320 = vld [vmem:[%s3127] sm:$0xf]
      %v3321 = vld [vmem:[%s3127 + $0x4] sm:$0xf]
      %v3322 = vld [vmem:[%s3127 + $0x8] sm:$0x1]
      %v3323 = vld [vmem:[%s3127 + $0xc] sm:$0xf]
      %v3324 = vld [vmem:[%s3127 + $0x10] sm:$0xf]
      %v3325 = vld [vmem:[%s3127 + $0x14] sm:$0x1]
      %v3326 = vld [vmem:[%s3127 + $0x18] sm:$0xf]
      %v3327 = vld [vmem:[%s3127 + $0x1c] sm:$0xf]
      %v3328 = vld [vmem:[%s3127 + $0x20] sm:$0x1]
      %v3329 = vld [vmem:[%s3127 + $0x24] sm:$0xf]
      %v3330 = vld [vmem:[%s3127 + $0x28] sm:$0xf]
      %v3331 = vld [vmem:[%s3127 + $0x2c] sm:$0x1]
      %v3332 = vld [vmem:[%s3127 + $0x30] sm:$0xf]
      %v3333 = vld [vmem:[%s3127 + $0x34] sm:$0xf]
      %v3334 = vld [vmem:[%s3127 + $0x38] sm:$0x1]
      %v3335 = vld [vmem:[%s3127 + $0x3c] sm:$0xf]
      %v3336 = vld [vmem:[%s3127 + $0x40] sm:$0xf]
      %v3337 = vld [vmem:[%s3127 + $0x44] sm:$0x1]
      %v3338 = vld [vmem:[%s3127 + $0x48] sm:$0xf]
      %v3339 = vld [vmem:[%s3127 + $0x4c] sm:$0xf]
      %v3340 = vld [vmem:[%s3127 + $0x50] sm:$0x1]
      %v3341 = vld [vmem:[%s3127 + $0x54] sm:$0xf]
      %v3342 = vld [vmem:[%s3127 + $0x58] sm:$0xf]
      %v3343 = vld [vmem:[%s3127 + $0x5c] sm:$0x1]
      %v3344 = vld [vmem:[%s3127 + $0x60] sm:$0xf]
      %v3345 = vld [vmem:[%s3127 + $0x64] sm:$0xf]
      %v3346 = vld [vmem:[%s3127 + $0x68] sm:$0x1]
      %v3347 = vld [vmem:[%s3127 + $0x6c] sm:$0xf]
      %v3348 = vld [vmem:[%s3127 + $0x70] sm:$0xf]
      %v3349 = vld [vmem:[%s3127 + $0x74] sm:$0x1]
      %v3350 = vld [vmem:[%s3127 + $0x78] sm:$0xf]
      %v3351 = vld [vmem:[%s3127 + $0x7c] sm:$0xf]
      %v3352 = vld [vmem:[%s3127 + $0x80] sm:$0x1]
      %v3353 = vld [vmem:[%s3127 + $0x84] sm:$0xf]
      %v3354 = vld [vmem:[%s3127 + $0x88] sm:$0xf]
      %v3355 = vld [vmem:[%s3127 + $0x8c] sm:$0x1]
      %v3356 = vld [vmem:[%s3127 + $0x90] sm:$0xf]
      %v3357 = vld [vmem:[%s3127 + $0x94] sm:$0xf]
      %v3358 = vld [vmem:[%s3127 + $0x98] sm:$0x1]
      %v3359 = vld [vmem:[%s3127 + $0x9c] sm:$0xf]
      %v3360 = vld [vmem:[%s3127 + $0xa0] sm:$0xf]
      %v3361 = vld [vmem:[%s3127 + $0xa4] sm:$0x1]
      %v3362 = vld [vmem:[%s3127 + $0xa8] sm:$0xf]
      %v3363 = vld [vmem:[%s3127 + $0xac] sm:$0xf]
      %v3364 = vld [vmem:[%s3127 + $0xb0] sm:$0x1]
      %v3365 = vld [vmem:[%s3127 + $0xb4] sm:$0xf]
      %v3366 = vld [vmem:[%s3127 + $0xb8] sm:$0xf]
      %v3367 = vld [vmem:[%s3127 + $0xbc] sm:$0x1]
      %v3369 = vshrl.u32 %v3320, 16
      %v3371 = vrot.slane %v3369, 4
      %v3372 = vshll.u32 %v3320, 16
      %v3374 = vrot.slane %v3372, 5
      %v3375 = vor.u32 %v3371, %v3374
      %v3376 = vrot.slane %v3375, 4
      %v3378 = vshll.u32 %v3321, 16
      %v3380 = vrot.slane %v3378, 5
      %v3381 = vsel %vm1248, %v3376, %v3380
      %v3382 = vshrl.u32 %v3321, 16
      %v3384 = vrot.slane %v3382, 4
      %v3385 = vor.u32 %v3384, %v3380
      %v3386 = vrot.slane %v3385, 4
      %v3388 = vshll.u32 %v3322, 16
      %v3390 = vrot.slane %v3388, 5
      %v3391 = vsel %vm1248, %v3386, %v3390
      %v3393 = vshrl.u32 %v3323, 16
      %v3395 = vrot.slane %v3393, 4
      %v3396 = vshll.u32 %v3323, 16
      %v3398 = vrot.slane %v3396, 5
      %v3399 = vor.u32 %v3395, %v3398
      %v3400 = vrot.slane %v3399, 4
      %v3402 = vshll.u32 %v3324, 16
      %v3404 = vrot.slane %v3402, 5
      %v3405 = vsel %vm1248, %v3400, %v3404
      %v3406 = vshrl.u32 %v3324, 16
      %v3408 = vrot.slane %v3406, 4
      %v3409 = vor.u32 %v3408, %v3404
      %v3410 = vrot.slane %v3409, 4
      %v3412 = vshll.u32 %v3325, 16
      %v3414 = vrot.slane %v3412, 5
      %v3415 = vsel %vm1248, %v3410, %v3414
      %v3417 = vshrl.u32 %v3326, 16
      %v3419 = vrot.slane %v3417, 4
      %v3420 = vshll.u32 %v3326, 16
      %v3422 = vrot.slane %v3420, 5
      %v3423 = vor.u32 %v3419, %v3422
      %v3424 = vrot.slane %v3423, 4
      %v3426 = vshll.u32 %v3327, 16
      %v3428 = vrot.slane %v3426, 5
      %v3429 = vsel %vm1248, %v3424, %v3428
      %v3430 = vshrl.u32 %v3327, 16
      %v3432 = vrot.slane %v3430, 4
      %v3433 = vor.u32 %v3432, %v3428
      %v3434 = vrot.slane %v3433, 4
      %v3436 = vshll.u32 %v3328, 16
      %v3438 = vrot.slane %v3436, 5
      %v3439 = vsel %vm1248, %v3434, %v3438
      %v3441 = vshrl.u32 %v3329, 16
      %v3443 = vrot.slane %v3441, 4
      %v3444 = vshll.u32 %v3329, 16
      %v3446 = vrot.slane %v3444, 5
      %v3447 = vor.u32 %v3443, %v3446
      %v3448 = vrot.slane %v3447, 4
      %v3450 = vshll.u32 %v3330, 16
      %v3452 = vrot.slane %v3450, 5
      %v3453 = vsel %vm1248, %v3448, %v3452
      %v3454 = vshrl.u32 %v3330, 16
      %v3456 = vrot.slane %v3454, 4
      %v3457 = vor.u32 %v3456, %v3452
      %v3458 = vrot.slane %v3457, 4
      %v3460 = vshll.u32 %v3331, 16
      %v3462 = vrot.slane %v3460, 5
      %v3463 = vsel %vm1248, %v3458, %v3462
      %v3465 = vshrl.u32 %v3332, 16
      %v3467 = vrot.slane %v3465, 4
      %v3468 = vshll.u32 %v3332, 16
      %v3470 = vrot.slane %v3468, 5
      %v3471 = vor.u32 %v3467, %v3470
      %v3472 = vrot.slane %v3471, 4
      %v3474 = vshll.u32 %v3333, 16
      %v3476 = vrot.slane %v3474, 5
      %v3477 = vsel %vm1248, %v3472, %v3476
      %v3478 = vshrl.u32 %v3333, 16
      %v3480 = vrot.slane %v3478, 4
      %v3481 = vor.u32 %v3480, %v3476
      %v3482 = vrot.slane %v3481, 4
      %v3484 = vshll.u32 %v3334, 16
      %v3486 = vrot.slane %v3484, 5
      %v3487 = vsel %vm1248, %v3482, %v3486
      %v3489 = vshrl.u32 %v3335, 16
      %v3491 = vrot.slane %v3489, 4
      %v3492 = vshll.u32 %v3335, 16
      %v3494 = vrot.slane %v3492, 5
      %v3495 = vor.u32 %v3491, %v3494
      %v3496 = vrot.slane %v3495, 4
      %v3498 = vshll.u32 %v3336, 16
      %v3500 = vrot.slane %v3498, 5
      %v3501 = vsel %vm1248, %v3496, %v3500
      %v3502 = vshrl.u32 %v3336, 16
      %v3504 = vrot.slane %v3502, 4
      %v3505 = vor.u32 %v3504, %v3500
      %v3506 = vrot.slane %v3505, 4
      %v3508 = vshll.u32 %v3337, 16
      %v3510 = vrot.slane %v3508, 5
      %v3511 = vsel %vm1248, %v3506, %v3510
      %v3513 = vshrl.u32 %v3338, 16
      %v3515 = vrot.slane %v3513, 4
      %v3516 = vshll.u32 %v3338, 16
      %v3518 = vrot.slane %v3516, 5
      %v3519 = vor.u32 %v3515, %v3518
      %v3520 = vrot.slane %v3519, 4
      %v3522 = vshll.u32 %v3339, 16
      %v3524 = vrot.slane %v3522, 5
      %v3525 = vsel %vm1248, %v3520, %v3524
      %v3526 = vshrl.u32 %v3339, 16
      %v3528 = vrot.slane %v3526, 4
      %v3529 = vor.u32 %v3528, %v3524
      %v3530 = vrot.slane %v3529, 4
      %v3532 = vshll.u32 %v3340, 16
      %v3534 = vrot.slane %v3532, 5
      %v3535 = vsel %vm1248, %v3530, %v3534
      %v3537 = vshrl.u32 %v3341, 16
      %v3539 = vrot.slane %v3537, 4
      %v3540 = vshll.u32 %v3341, 16
      %v3542 = vrot.slane %v3540, 5
      %v3543 = vor.u32 %v3539, %v3542
      %v3544 = vrot.slane %v3543, 4
      %v3546 = vshll.u32 %v3342, 16
      %v3548 = vrot.slane %v3546, 5
      %v3549 = vsel %vm1248, %v3544, %v3548
      %v3550 = vshrl.u32 %v3342, 16
      %v3552 = vrot.slane %v3550, 4
      %v3553 = vor.u32 %v3552, %v3548
      %v3554 = vrot.slane %v3553, 4
      %v3556 = vshll.u32 %v3343, 16
      %v3558 = vrot.slane %v3556, 5
      %v3559 = vsel %vm1248, %v3554, %v3558
      %v3561 = vshrl.u32 %v3344, 16
      %v3563 = vrot.slane %v3561, 4
      %v3564 = vshll.u32 %v3344, 16
      %v3566 = vrot.slane %v3564, 5
      %v3567 = vor.u32 %v3563, %v3566
      %v3568 = vrot.slane %v3567, 4
      %v3570 = vshll.u32 %v3345, 16
      %v3572 = vrot.slane %v3570, 5
      %v3573 = vsel %vm1248, %v3568, %v3572
      %v3574 = vshrl.u32 %v3345, 16
      %v3576 = vrot.slane %v3574, 4
      %v3577 = vor.u32 %v3576, %v3572
      %v3578 = vrot.slane %v3577, 4
      %v3580 = vshll.u32 %v3346, 16
      %v3582 = vrot.slane %v3580, 5
      %v3583 = vsel %vm1248, %v3578, %v3582
      %v3585 = vshrl.u32 %v3347, 16
      %v3587 = vrot.slane %v3585, 4
      %v3588 = vshll.u32 %v3347, 16
      %v3590 = vrot.slane %v3588, 5
      %v3591 = vor.u32 %v3587, %v3590
      %v3592 = vrot.slane %v3591, 4
      %v3594 = vshll.u32 %v3348, 16
      %v3596 = vrot.slane %v3594, 5
      %v3597 = vsel %vm1248, %v3592, %v3596
      %v3598 = vshrl.u32 %v3348, 16
      %v3600 = vrot.slane %v3598, 4
      %v3601 = vor.u32 %v3600, %v3596
      %v3602 = vrot.slane %v3601, 4
      %v3604 = vshll.u32 %v3349, 16
      %v3606 = vrot.slane %v3604, 5
      %v3607 = vsel %vm1248, %v3602, %v3606
      %v3609 = vshrl.u32 %v3350, 16
      %v3611 = vrot.slane %v3609, 4
      %v3612 = vshll.u32 %v3350, 16
      %v3614 = vrot.slane %v3612, 5
      %v3615 = vor.u32 %v3611, %v3614
      %v3616 = vrot.slane %v3615, 4
      %v3618 = vshll.u32 %v3351, 16
      %v3620 = vrot.slane %v3618, 5
      %v3621 = vsel %vm1248, %v3616, %v3620
      %v3622 = vshrl.u32 %v3351, 16
      %v3624 = vrot.slane %v3622, 4
      %v3625 = vor.u32 %v3624, %v3620
      %v3626 = vrot.slane %v3625, 4
      %v3628 = vshll.u32 %v3352, 16
      %v3630 = vrot.slane %v3628, 5
      %v3631 = vsel %vm1248, %v3626, %v3630
      %v3633 = vshrl.u32 %v3353, 16
      %v3635 = vrot.slane %v3633, 4
      %v3636 = vshll.u32 %v3353, 16
      %v3638 = vrot.slane %v3636, 5
      %v3639 = vor.u32 %v3635, %v3638
      %v3640 = vrot.slane %v3639, 4
      %v3642 = vshll.u32 %v3354, 16
      %v3644 = vrot.slane %v3642, 5
      %v3645 = vsel %vm1248, %v3640, %v3644
      %v3646 = vshrl.u32 %v3354, 16
      %v3648 = vrot.slane %v3646, 4
      %v3649 = vor.u32 %v3648, %v3644
      %v3650 = vrot.slane %v3649, 4
      %v3652 = vshll.u32 %v3355, 16
      %v3654 = vrot.slane %v3652, 5
      %v3655 = vsel %vm1248, %v3650, %v3654
      %v3657 = vshrl.u32 %v3356, 16
      %v3659 = vrot.slane %v3657, 4
      %v3660 = vshll.u32 %v3356, 16
      %v3662 = vrot.slane %v3660, 5
      %v3663 = vor.u32 %v3659, %v3662
      %v3664 = vrot.slane %v3663, 4
      %v3666 = vshll.u32 %v3357, 16
      %v3668 = vrot.slane %v3666, 5
      %v3669 = vsel %vm1248, %v3664, %v3668
      %v3670 = vshrl.u32 %v3357, 16
      %v3672 = vrot.slane %v3670, 4
      %v3673 = vor.u32 %v3672, %v3668
      %v3674 = vrot.slane %v3673, 4
      %v3676 = vshll.u32 %v3358, 16
      %v3678 = vrot.slane %v3676, 5
      %v3679 = vsel %vm1248, %v3674, %v3678
      %v3681 = vshrl.u32 %v3359, 16
      %v3683 = vrot.slane %v3681, 4
      %v3684 = vshll.u32 %v3359, 16
      %v3686 = vrot.slane %v3684, 5
      %v3687 = vor.u32 %v3683, %v3686
      %v3688 = vrot.slane %v3687, 4
      %v3690 = vshll.u32 %v3360, 16
      %v3692 = vrot.slane %v3690, 5
      %v3693 = vsel %vm1248, %v3688, %v3692
      %v3694 = vshrl.u32 %v3360, 16
      %v3696 = vrot.slane %v3694, 4
      %v3697 = vor.u32 %v3696, %v3692
      %v3698 = vrot.slane %v3697, 4
      %v3700 = vshll.u32 %v3361, 16
      %v3702 = vrot.slane %v3700, 5
      %v3703 = vsel %vm1248, %v3698, %v3702
      %v3705 = vshrl.u32 %v3362, 16
      %v3707 = vrot.slane %v3705, 4
      %v3708 = vshll.u32 %v3362, 16
      %v3710 = vrot.slane %v3708, 5
      %v3711 = vor.u32 %v3707, %v3710
      %v3712 = vrot.slane %v3711, 4
      %v3714 = vshll.u32 %v3363, 16
      %v3716 = vrot.slane %v3714, 5
      %v3717 = vsel %vm1248, %v3712, %v3716
      %v3718 = vshrl.u32 %v3363, 16
      %v3720 = vrot.slane %v3718, 4
      %v3721 = vor.u32 %v3720, %v3716
      %v3722 = vrot.slane %v3721, 4
      %v3724 = vshll.u32 %v3364, 16
      %v3726 = vrot.slane %v3724, 5
      %v3727 = vsel %vm1248, %v3722, %v3726
      %v3729 = vshrl.u32 %v3365, 16
      %v3731 = vrot.slane %v3729, 4
      %v3732 = vshll.u32 %v3365, 16
      %v3734 = vrot.slane %v3732, 5
      %v3735 = vor.u32 %v3731, %v3734
      %v3736 = vrot.slane %v3735, 4
      %v3738 = vshll.u32 %v3366, 16
      %v3740 = vrot.slane %v3738, 5
      %v3741 = vsel %vm1248, %v3736, %v3740
      %v3742 = vshrl.u32 %v3366, 16
      %v3744 = vrot.slane %v3742, 4
      %v3745 = vor.u32 %v3744, %v3740
      %v3746 = vrot.slane %v3745, 4
      %v3748 = vshll.u32 %v3367, 16
      %v3750 = vrot.slane %v3748, 5
      %v3751 = vsel %vm1248, %v3746, %v3750
      %3752 = vrot.lane.b32.xlu0 %v3381, 96
      %v3753 = vpop.permute.xlu0 %3752
      %3754 = vrot.lane.b32.xlu0 %v3391, 96
      %v3755 = vpop.permute.xlu0 %3754
      %3756 = vrot.lane.b32.xlu0 %v3405, 96
      %v3757 = vpop.permute.xlu0 %3756
      %3758 = vrot.lane.b32.xlu0 %v3415, 96
      %v3759 = vpop.permute.xlu0 %3758
      %3760 = vrot.lane.b32.xlu0 %v3429, 96
      %v3761 = vpop.permute.xlu0 %3760
      %3762 = vrot.lane.b32.xlu0 %v3439, 96
      %v3763 = vpop.permute.xlu0 %3762
      %3764 = vrot.lane.b32.xlu0 %v3453, 96
      %v3765 = vpop.permute.xlu0 %3764
      %3766 = vrot.lane.b32.xlu0 %v3463, 96
      %v3767 = vpop.permute.xlu0 %3766
      %3768 = vrot.lane.b32.xlu0 %v3477, 96
      %v3769 = vpop.permute.xlu0 %3768
      %3770 = vrot.lane.b32.xlu0 %v3487, 96
      %v3771 = vpop.permute.xlu0 %3770
      %3772 = vrot.lane.b32.xlu0 %v3501, 96
      %v3773 = vpop.permute.xlu0 %3772
      %3774 = vrot.lane.b32.xlu0 %v3511, 96
      %v3775 = vpop.permute.xlu0 %3774
      %3776 = vrot.lane.b32.xlu0 %v3525, 96
      %v3777 = vpop.permute.xlu0 %3776
      %3778 = vrot.lane.b32.xlu0 %v3535, 96
      %v3779 = vpop.permute.xlu0 %3778
      %3780 = vrot.lane.b32.xlu0 %v3549, 96
      %v3781 = vpop.permute.xlu0 %3780
      %3782 = vrot.lane.b32.xlu0 %v3559, 96
      %v3783 = vpop.permute.xlu0 %3782
      %3784 = vrot.lane.b32.xlu0 %v3573, 96
      %v3785 = vpop.permute.xlu0 %3784
      %3786 = vrot.lane.b32.xlu0 %v3583, 96
      %v3787 = vpop.permute.xlu0 %3786
      %3788 = vrot.lane.b32.xlu0 %v3597, 96
      %v3789 = vpop.permute.xlu0 %3788
      %3790 = vrot.lane.b32.xlu0 %v3607, 96
      %v3791 = vpop.permute.xlu0 %3790
      %3792 = vrot.lane.b32.xlu0 %v3621, 96
      %v3793 = vpop.permute.xlu0 %3792
      %3794 = vrot.lane.b32.xlu0 %v3631, 96
      %v3795 = vpop.permute.xlu0 %3794
      %3796 = vrot.lane.b32.xlu0 %v3645, 96
      %v3797 = vpop.permute.xlu0 %3796
      %3798 = vrot.lane.b32.xlu0 %v3655, 96
      %v3799 = vpop.permute.xlu0 %3798
      %3800 = vrot.lane.b32.xlu0 %v3669, 96
      %v3801 = vpop.permute.xlu0 %3800
      %3802 = vrot.lane.b32.xlu0 %v3679, 96
      %v3803 = vpop.permute.xlu0 %3802
      %3804 = vrot.lane.b32.xlu0 %v3693, 96
      %v3805 = vpop.permute.xlu0 %3804
      %3806 = vrot.lane.b32.xlu0 %v3703, 96
      %v3807 = vpop.permute.xlu0 %3806
      %3808 = vrot.lane.b32.xlu0 %v3717, 96
      %v3809 = vpop.permute.xlu0 %3808
      %3810 = vrot.lane.b32.xlu0 %v3727, 96
      %v3811 = vpop.permute.xlu0 %3810
      %3812 = vrot.lane.b32.xlu0 %v3741, 96
      %v3813 = vpop.permute.xlu0 %3812
      %3814 = vrot.lane.b32.xlu0 %v3751, 96
      %v3815 = vpop.permute.xlu0 %3814
      %3848 = vst.msk [vmem:[#allocation2 + $0x4] sm:$0xf] %vm2262, %v3753
      %3849 = vst.msk [vmem:[#allocation2 + $0x10] sm:$0xf] %vm2262, %v3755
      %3850 = vst.msk [vmem:[#allocation2 + $0x1c] sm:$0xf] %vm2262, %v3757
      %3851 = vst.msk [vmem:[#allocation2 + $0x28] sm:$0xf] %vm2262, %v3759
      %3852 = vst.msk [vmem:[#allocation2 + $0x34] sm:$0xf] %vm2262, %v3761
      %3853 = vst.msk [vmem:[#allocation2 + $0x40] sm:$0xf] %vm2262, %v3763
      %3854 = vst.msk [vmem:[#allocation2 + $0x4c] sm:$0xf] %vm2262, %v3765
      %3855 = vst.msk [vmem:[#allocation2 + $0x58] sm:$0xf] %vm2262, %v3767
      %3856 = vst.msk [vmem:[#allocation2 + $0x64] sm:$0xf] %vm2262, %v3769
      %3857 = vst.msk [vmem:[#allocation2 + $0x70] sm:$0xf] %vm2262, %v3771
      %3858 = vst.msk [vmem:[#allocation2 + $0x7c] sm:$0xf] %vm2262, %v3773
      %3859 = vst.msk [vmem:[#allocation2 + $0x88] sm:$0xf] %vm2262, %v3775
      %3860 = vst.msk [vmem:[#allocation2 + $0x94] sm:$0xf] %vm2262, %v3777
      %3861 = vst.msk [vmem:[#allocation2 + $0xa0] sm:$0xf] %vm2262, %v3779
      %3862 = vst.msk [vmem:[#allocation2 + $0xac] sm:$0xf] %vm2262, %v3781
      %3863 = vst.msk [vmem:[#allocation2 + $0xb8] sm:$0xf] %vm2262, %v3783
      %3864 = vst.msk [vmem:[#allocation2 + $0xc4] sm:$0xf] %vm2262, %v3785
      %3865 = vst.msk [vmem:[#allocation2 + $0xd0] sm:$0xf] %vm2262, %v3787
      %3866 = vst.msk [vmem:[#allocation2 + $0xdc] sm:$0xf] %vm2262, %v3789
      %3867 = vst.msk [vmem:[#allocation2 + $0xe8] sm:$0xf] %vm2262, %v3791
      %3868 = vst.msk [vmem:[#allocation2 + $0xf4] sm:$0xf] %vm2262, %v3793
      %3869 = vst.msk [vmem:[#allocation2 + $0x100] sm:$0xf] %vm2262, %v3795
      %3870 = vst.msk [vmem:[#allocation2 + $0x10c] sm:$0xf] %vm2262, %v3797
      %3871 = vst.msk [vmem:[#allocation2 + $0x118] sm:$0xf] %vm2262, %v3799
      %3872 = vst.msk [vmem:[#allocation2 + $0x124] sm:$0xf] %vm2262, %v3801
      %3873 = vst.msk [vmem:[#allocation2 + $0x130] sm:$0xf] %vm2262, %v3803
      %3874 = vst.msk [vmem:[#allocation2 + $0x13c] sm:$0xf] %vm2262, %v3805
      %3875 = vst.msk [vmem:[#allocation2 + $0x148] sm:$0xf] %vm2262, %v3807
      %3876 = vst.msk [vmem:[#allocation2 + $0x154] sm:$0xf] %vm2262, %v3809
      %3877 = vst.msk [vmem:[#allocation2 + $0x160] sm:$0xf] %vm2262, %v3811
      %3878 = vst.msk [vmem:[#allocation2 + $0x16c] sm:$0xf] %vm2262, %v3813
      %3879 = vst.msk [vmem:[#allocation2 + $0x178] sm:$0xf] %vm2262, %v3815
      %v3880 = vld [vmem:[%s3127] sm:$0xe]
      %v3881 = vld [vmem:[%s3127 + $0x4] sm:$0xf]
      %v3882 = vld [vmem:[%s3127 + $0x8] sm:$0x1]
      %v3883 = vld [vmem:[%s3127 + $0xc] sm:$0xe]
      %v3884 = vld [vmem:[%s3127 + $0x10] sm:$0xf]
      %v3885 = vld [vmem:[%s3127 + $0x14] sm:$0x1]
      %v3886 = vld [vmem:[%s3127 + $0x18] sm:$0xe]
      %v3887 = vld [vmem:[%s3127 + $0x1c] sm:$0xf]
      %v3888 = vld [vmem:[%s3127 + $0x20] sm:$0x1]
      %v3889 = vld [vmem:[%s3127 + $0x24] sm:$0xe]
      %v3890 = vld [vmem:[%s3127 + $0x28] sm:$0xf]
      %v3891 = vld [vmem:[%s3127 + $0x2c] sm:$0x1]
      %v3892 = vld [vmem:[%s3127 + $0x30] sm:$0xe]
      %v3893 = vld [vmem:[%s3127 + $0x34] sm:$0xf]
      %v3894 = vld [vmem:[%s3127 + $0x38] sm:$0x1]
      %v3895 = vld [vmem:[%s3127 + $0x3c] sm:$0xe]
      %v3896 = vld [vmem:[%s3127 + $0x40] sm:$0xf]
      %v3897 = vld [vmem:[%s3127 + $0x44] sm:$0x1]
      %v3898 = vld [vmem:[%s3127 + $0x48] sm:$0xe]
      %v3899 = vld [vmem:[%s3127 + $0x4c] sm:$0xf]
      %v3900 = vld [vmem:[%s3127 + $0x50] sm:$0x1]
      %v3901 = vld [vmem:[%s3127 + $0x54] sm:$0xe]
      %v3902 = vld [vmem:[%s3127 + $0x58] sm:$0xf]
      %v3903 = vld [vmem:[%s3127 + $0x5c] sm:$0x1]
      %v3904 = vld [vmem:[%s3127 + $0x60] sm:$0xe]
      %v3905 = vld [vmem:[%s3127 + $0x64] sm:$0xf]
      %v3906 = vld [vmem:[%s3127 + $0x68] sm:$0x1]
      %v3907 = vld [vmem:[%s3127 + $0x6c] sm:$0xe]
      %v3908 = vld [vmem:[%s3127 + $0x70] sm:$0xf]
      %v3909 = vld [vmem:[%s3127 + $0x74] sm:$0x1]
      %v3910 = vld [vmem:[%s3127 + $0x78] sm:$0xe]
      %v3911 = vld [vmem:[%s3127 + $0x7c] sm:$0xf]
      %v3912 = vld [vmem:[%s3127 + $0x80] sm:$0x1]
      %v3913 = vld [vmem:[%s3127 + $0x84] sm:$0xe]
      %v3914 = vld [vmem:[%s3127 + $0x88] sm:$0xf]
      %v3915 = vld [vmem:[%s3127 + $0x8c] sm:$0x1]
      %v3916 = vld [vmem:[%s3127 + $0x90] sm:$0xe]
      %v3917 = vld [vmem:[%s3127 + $0x94] sm:$0xf]
      %v3918 = vld [vmem:[%s3127 + $0x98] sm:$0x1]
      %v3919 = vld [vmem:[%s3127 + $0x9c] sm:$0xe]
      %v3920 = vld [vmem:[%s3127 + $0xa0] sm:$0xf]
      %v3921 = vld [vmem:[%s3127 + $0xa4] sm:$0x1]
      %v3922 = vld [vmem:[%s3127 + $0xa8] sm:$0xe]
      %v3923 = vld [vmem:[%s3127 + $0xac] sm:$0xf]
      %v3924 = vld [vmem:[%s3127 + $0xb0] sm:$0x1]
      %v3925 = vld [vmem:[%s3127 + $0xb4] sm:$0xe]
      %v3926 = vld [vmem:[%s3127 + $0xb8] sm:$0xf]
      %v3927 = vld [vmem:[%s3127 + $0xbc] sm:$0x1]
      %v3976 = vrot.slane %v3880, 5
      %v3977 = vrot.slane %v3976, 4
      %v3978 = vrot.slane %v3881, 5
      %v3979 = vsel %vm1860, %v3977, %v3978
      %v3980 = vrot.slane %v3978, 4
      %v3981 = vrot.slane %v3882, 5
      %v3982 = vsel %vm1860, %v3980, %v3981
      %v3983 = vrot.slane %v3883, 5
      %v3984 = vrot.slane %v3983, 4
      %v3985 = vrot.slane %v3884, 5
      %v3986 = vsel %vm1860, %v3984, %v3985
      %v3987 = vrot.slane %v3985, 4
      %v3988 = vrot.slane %v3885, 5
      %v3989 = vsel %vm1860, %v3987, %v3988
      %v3990 = vrot.slane %v3886, 5
      %v3991 = vrot.slane %v3990, 4
      %v3992 = vrot.slane %v3887, 5
      %v3993 = vsel %vm1860, %v3991, %v3992
      %v3994 = vrot.slane %v3992, 4
      %v3995 = vrot.slane %v3888, 5
      %v3996 = vsel %vm1860, %v3994, %v3995
      %v3997 = vrot.slane %v3889, 5
      %v3998 = vrot.slane %v3997, 4
      %v3999 = vrot.slane %v3890, 5
      %v4000 = vsel %vm1860, %v3998, %v3999
      %v4001 = vrot.slane %v3999, 4
      %v4002 = vrot.slane %v3891, 5
      %v4003 = vsel %vm1860, %v4001, %v4002
      %v4004 = vrot.slane %v3892, 5
      %v4005 = vrot.slane %v4004, 4
      %v4006 = vrot.slane %v3893, 5
      %v4007 = vsel %vm1860, %v4005, %v4006
      %v4008 = vrot.slane %v4006, 4
      %v4009 = vrot.slane %v3894, 5
      %v4010 = vsel %vm1860, %v4008, %v4009
      %v4011 = vrot.slane %v3895, 5
      %v4012 = vrot.slane %v4011, 4
      %v4013 = vrot.slane %v3896, 5
      %v4014 = vsel %vm1860, %v4012, %v4013
      %v4015 = vrot.slane %v4013, 4
      %v4016 = vrot.slane %v3897, 5
      %v4017 = vsel %vm1860, %v4015, %v4016
      %v4018 = vrot.slane %v3898, 5
      %v4019 = vrot.slane %v4018, 4
      %v4020 = vrot.slane %v3899, 5
      %v4021 = vsel %vm1860, %v4019, %v4020
      %v4022 = vrot.slane %v4020, 4
      %v4023 = vrot.slane %v3900, 5
      %v4024 = vsel %vm1860, %v4022, %v4023
      %v4025 = vrot.slane %v3901, 5
      %v4026 = vrot.slane %v4025, 4
      %v4027 = vrot.slane %v3902, 5
      %v4028 = vsel %vm1860, %v4026, %v4027
      %v4029 = vrot.slane %v4027, 4
      %v4030 = vrot.slane %v3903, 5
      %v4031 = vsel %vm1860, %v4029, %v4030
      %v4032 = vrot.slane %v3904, 5
      %v4033 = vrot.slane %v4032, 4
      %v4034 = vrot.slane %v3905, 5
      %v4035 = vsel %vm1860, %v4033, %v4034
      %v4036 = vrot.slane %v4034, 4
      %v4037 = vrot.slane %v3906, 5
      %v4038 = vsel %vm1860, %v4036, %v4037
      %v4039 = vrot.slane %v3907, 5
      %v4040 = vrot.slane %v4039, 4
      %v4041 = vrot.slane %v3908, 5
      %v4042 = vsel %vm1860, %v4040, %v4041
      %v4043 = vrot.slane %v4041, 4
      %v4044 = vrot.slane %v3909, 5
      %v4045 = vsel %vm1860, %v4043, %v4044
      %v4046 = vrot.slane %v3910, 5
      %v4047 = vrot.slane %v4046, 4
      %v4048 = vrot.slane %v3911, 5
      %v4049 = vsel %vm1860, %v4047, %v4048
      %v4050 = vrot.slane %v4048, 4
      %v4051 = vrot.slane %v3912, 5
      %v4052 = vsel %vm1860, %v4050, %v4051
      %v4053 = vrot.slane %v3913, 5
      %v4054 = vrot.slane %v4053, 4
      %v4055 = vrot.slane %v3914, 5
      %v4056 = vsel %vm1860, %v4054, %v4055
      %v4057 = vrot.slane %v4055, 4
      %v4058 = vrot.slane %v3915, 5
      %v4059 = vsel %vm1860, %v4057, %v4058
      %v4060 = vrot.slane %v3916, 5
      %v4061 = vrot.slane %v4060, 4
      %v4062 = vrot.slane %v3917, 5
      %v4063 = vsel %vm1860, %v4061, %v4062
      %v4064 = vrot.slane %v4062, 4
      %v4065 = vrot.slane %v3918, 5
      %v4066 = vsel %vm1860, %v4064, %v4065
      %v4067 = vrot.slane %v3919, 5
      %v4068 = vrot.slane %v4067, 4
      %v4069 = vrot.slane %v3920, 5
      %v4070 = vsel %vm1860, %v4068, %v4069
      %v4071 = vrot.slane %v4069, 4
      %v4072 = vrot.slane %v3921, 5
      %v4073 = vsel %vm1860, %v4071, %v4072
      %v4074 = vrot.slane %v3922, 5
      %v4075 = vrot.slane %v4074, 4
      %v4076 = vrot.slane %v3923, 5
      %v4077 = vsel %vm1860, %v4075, %v4076
      %v4078 = vrot.slane %v4076, 4
      %v4079 = vrot.slane %v3924, 5
      %v4080 = vsel %vm1860, %v4078, %v4079
      %v4081 = vrot.slane %v3925, 5
      %v4082 = vrot.slane %v4081, 4
      %v4083 = vrot.slane %v3926, 5
      %v4084 = vsel %vm1860, %v4082, %v4083
      %v4085 = vrot.slane %v4083, 4
      %v4086 = vrot.slane %v3927, 5
      %v4087 = vsel %vm1860, %v4085, %v4086
      %4120 = vst.msk [vmem:[#allocation2 + $0x8] sm:$0xf] %vm543, %v3979
      %4121 = vst.msk [vmem:[#allocation2 + $0x14] sm:$0xf] %vm543, %v3982
      %4122 = vst.msk [vmem:[#allocation2 + $0x20] sm:$0xf] %vm543, %v3986
      %4123 = vst.msk [vmem:[#allocation2 + $0x2c] sm:$0xf] %vm543, %v3989
      %4124 = vst.msk [vmem:[#allocation2 + $0x38] sm:$0xf] %vm543, %v3993
      %4125 = vst.msk [vmem:[#allocation2 + $0x44] sm:$0xf] %vm543, %v3996
      %4126 = vst.msk [vmem:[#allocation2 + $0x50] sm:$0xf] %vm543, %v4000
      %4127 = vst.msk [vmem:[#allocation2 + $0x5c] sm:$0xf] %vm543, %v4003
      %4128 = vst.msk [vmem:[#allocation2 + $0x68] sm:$0xf] %vm543, %v4007
      %4129 = vst.msk [vmem:[#allocation2 + $0x74] sm:$0xf] %vm543, %v4010
      %4130 = vst.msk [vmem:[#allocation2 + $0x80] sm:$0xf] %vm543, %v4014
      %4131 = vst.msk [vmem:[#allocation2 + $0x8c] sm:$0xf] %vm543, %v4017
      %4132 = vst.msk [vmem:[#allocation2 + $0x98] sm:$0xf] %vm543, %v4021
      %4133 = vst.msk [vmem:[#allocation2 + $0xa4] sm:$0xf] %vm543, %v4024
      %4134 = vst.msk [vmem:[#allocation2 + $0xb0] sm:$0xf] %vm543, %v4028
      %4135 = vst.msk [vmem:[#allocation2 + $0xbc] sm:$0xf] %vm543, %v4031
      %4136 = vst.msk [vmem:[#allocation2 + $0xc8] sm:$0xf] %vm543, %v4035
      %4137 = vst.msk [vmem:[#allocation2 + $0xd4] sm:$0xf] %vm543, %v4038
      %4138 = vst.msk [vmem:[#allocation2 + $0xe0] sm:$0xf] %vm543, %v4042
      %4139 = vst.msk [vmem:[#allocation2 + $0xec] sm:$0xf] %vm543, %v4045
      %4140 = vst.msk [vmem:[#allocation2 + $0xf8] sm:$0xf] %vm543, %v4049
      %4141 = vst.msk [vmem:[#allocation2 + $0x104] sm:$0xf] %vm543, %v4052
      %4142 = vst.msk [vmem:[#allocation2 + $0x110] sm:$0xf] %vm543, %v4056
      %4143 = vst.msk [vmem:[#allocation2 + $0x11c] sm:$0xf] %vm543, %v4059
      %4144 = vst.msk [vmem:[#allocation2 + $0x128] sm:$0xf] %vm543, %v4063
      %4145 = vst.msk [vmem:[#allocation2 + $0x134] sm:$0xf] %vm543, %v4066
      %4146 = vst.msk [vmem:[#allocation2 + $0x140] sm:$0xf] %vm543, %v4070
      %4147 = vst.msk [vmem:[#allocation2 + $0x14c] sm:$0xf] %vm543, %v4073
      %4148 = vst.msk [vmem:[#allocation2 + $0x158] sm:$0xf] %vm543, %v4077
      %4149 = vst.msk [vmem:[#allocation2 + $0x164] sm:$0xf] %vm543, %v4080
      %4150 = vst.msk [vmem:[#allocation2 + $0x170] sm:$0xf] %vm543, %v4084
      %4151 = vst.msk [vmem:[#allocation2 + $0x17c] sm:$0xf] %vm543, %v4087
      %vm4152 = vcmask 1043712
      %4153 = vst.msk [vmem:[#allocation2 + $0x8] sm:$0xf] %vm4152, 0
      %4154 = vst.msk [vmem:[#allocation2 + $0x14] sm:$0xf] %vm4152, 0
      %4155 = vst.msk [vmem:[#allocation2 + $0x20] sm:$0xf] %vm4152, 0
      %4156 = vst.msk [vmem:[#allocation2 + $0x2c] sm:$0xf] %vm4152, 0
      %4157 = vst.msk [vmem:[#allocation2 + $0x38] sm:$0xf] %vm4152, 0
      %4158 = vst.msk [vmem:[#allocation2 + $0x44] sm:$0xf] %vm4152, 0
      %4159 = vst.msk [vmem:[#allocation2 + $0x50] sm:$0xf] %vm4152, 0
      %4160 = vst.msk [vmem:[#allocation2 + $0x5c] sm:$0xf] %vm4152, 0
      %4161 = vst.msk [vmem:[#allocation2 + $0x68] sm:$0xf] %vm4152, 0
      %4162 = vst.msk [vmem:[#allocation2 + $0x74] sm:$0xf] %vm4152, 0
      %4163 = vst.msk [vmem:[#allocation2 + $0x80] sm:$0xf] %vm4152, 0
      %4164 = vst.msk [vmem:[#allocation2 + $0x8c] sm:$0xf] %vm4152, 0
      %4165 = vst.msk [vmem:[#allocation2 + $0x98] sm:$0xf] %vm4152, 0
      %4166 = vst.msk [vmem:[#allocation2 + $0xa4] sm:$0xf] %vm4152, 0
      %4167 = vst.msk [vmem:[#allocation2 + $0xb0] sm:$0xf] %vm4152, 0
      %4168 = vst.msk [vmem:[#allocation2 + $0xbc] sm:$0xf] %vm4152, 0
      %4169 = vst.msk [vmem:[#allocation2 + $0xc8] sm:$0xf] %vm4152, 0
      %4170 = vst.msk [vmem:[#allocation2 + $0xd4] sm:$0xf] %vm4152, 0
      %4171 = vst.msk [vmem:[#allocation2 + $0xe0] sm:$0xf] %vm4152, 0
      %4172 = vst.msk [vmem:[#allocation2 + $0xec] sm:$0xf] %vm4152, 0
      %4173 = vst.msk [vmem:[#allocation2 + $0xf8] sm:$0xf] %vm4152, 0
      %4174 = vst.msk [vmem:[#allocation2 + $0x104] sm:$0xf] %vm4152, 0
      %4175 = vst.msk [vmem:[#allocation2 + $0x110] sm:$0xf] %vm4152, 0
      %4176 = vst.msk [vmem:[#allocation2 + $0x11c] sm:$0xf] %vm4152, 0
      %4177 = vst.msk [vmem:[#allocation2 + $0x128] sm:$0xf] %vm4152, 0
      %4178 = vst.msk [vmem:[#allocation2 + $0x134] sm:$0xf] %vm4152, 0
      %4179 = vst.msk [vmem:[#allocation2 + $0x140] sm:$0xf] %vm4152, 0
      %4180 = vst.msk [vmem:[#allocation2 + $0x14c] sm:$0xf] %vm4152, 0
      %4181 = vst.msk [vmem:[#allocation2 + $0x158] sm:$0xf] %vm4152, 0
      %4182 = vst.msk [vmem:[#allocation2 + $0x164] sm:$0xf] %vm4152, 0
      %4183 = vst.msk [vmem:[#allocation2 + $0x170] sm:$0xf] %vm4152, 0
      %4184 = vst.msk [vmem:[#allocation2 + $0x17c] sm:$0xf] %vm4152, 0
      %v4185 = vld [vmem:[#allocation2] sm:$0xff]
      %v4186 = vld [vmem:[#allocation2 + $0x8] sm:$0xf]
      %v4187 = vld [vmem:[#allocation2 + $0xc] sm:$0xff]
      %v4188 = vld [vmem:[#allocation2 + $0x14] sm:$0xf]
      %v4189 = vld [vmem:[#allocation2 + $0x18] sm:$0xff]
      %v4190 = vld [vmem:[#allocation2 + $0x20] sm:$0xf]
      %v4191 = vld [vmem:[#allocation2 + $0x24] sm:$0xff]
      %v4192 = vld [vmem:[#allocation2 + $0x2c] sm:$0xf]
      %v4193 = vld [vmem:[#allocation2 + $0x30] sm:$0xff]
      %v4194 = vld [vmem:[#allocation2 + $0x38] sm:$0xf]
      %v4195 = vld [vmem:[#allocation2 + $0x3c] sm:$0xff]
      %v4196 = vld [vmem:[#allocation2 + $0x44] sm:$0xf]
      %v4197 = vld [vmem:[#allocation2 + $0x48] sm:$0xff]
      %v4198 = vld [vmem:[#allocation2 + $0x50] sm:$0xf]
      %v4199 = vld [vmem:[#allocation2 + $0x54] sm:$0xff]
      %v4200 = vld [vmem:[#allocation2 + $0x5c] sm:$0xf]
      %v4201 = vld [vmem:[#allocation2 + $0x60] sm:$0xff]
      %v4202 = vld [vmem:[#allocation2 + $0x68] sm:$0xf]
      %v4203 = vld [vmem:[#allocation2 + $0x6c] sm:$0xff]
      %v4204 = vld [vmem:[#allocation2 + $0x74] sm:$0xf]
      %v4205 = vld [vmem:[#allocation2 + $0x78] sm:$0xff]
      %v4206 = vld [vmem:[#allocation2 + $0x80] sm:$0xf]
      %v4207 = vld [vmem:[#allocation2 + $0x84] sm:$0xff]
      %v4208 = vld [vmem:[#allocation2 + $0x8c] sm:$0xf]
      %v4209 = vld [vmem:[#allocation2 + $0x90] sm:$0xff]
      %v4210 = vld [vmem:[#allocation2 + $0x98] sm:$0xf]
      %v4211 = vld [vmem:[#allocation2 + $0x9c] sm:$0xff]
      %v4212 = vld [vmem:[#allocation2 + $0xa4] sm:$0xf]
      %v4213 = vld [vmem:[#allocation2 + $0xa8] sm:$0xff]
      %v4214 = vld [vmem:[#allocation2 + $0xb0] sm:$0xf]
      %v4215 = vld [vmem:[#allocation2 + $0xb4] sm:$0xff]
      %v4216 = vld [vmem:[#allocation2 + $0xbc] sm:$0xf]
      %v4217 = vld [vmem:[#allocation2 + $0xc0] sm:$0xff]
      %v4218 = vld [vmem:[#allocation2 + $0xc8] sm:$0xf]
      %v4219 = vld [vmem:[#allocation2 + $0xcc] sm:$0xff]
      %v4220 = vld [vmem:[#allocation2 + $0xd4] sm:$0xf]
      %v4221 = vld [vmem:[#allocation2 + $0xd8] sm:$0xff]
      %v4222 = vld [vmem:[#allocation2 + $0xe0] sm:$0xf]
      %v4223 = vld [vmem:[#allocation2 + $0xe4] sm:$0xff]
      %v4224 = vld [vmem:[#allocation2 + $0xec] sm:$0xf]
      %v4225 = vld [vmem:[#allocation2 + $0xf0] sm:$0xff]
      %v4226 = vld [vmem:[#allocation2 + $0xf8] sm:$0xf]
      %v4227 = vld [vmem:[#allocation2 + $0xfc] sm:$0xff]
      %v4228 = vld [vmem:[#allocation2 + $0x104] sm:$0xf]
      %v4229 = vld [vmem:[#allocation2 + $0x108] sm:$0xff]
      %v4230 = vld [vmem:[#allocation2 + $0x110] sm:$0xf]
      %v4231 = vld [vmem:[#allocation2 + $0x114] sm:$0xff]
      %v4232 = vld [vmem:[#allocation2 + $0x11c] sm:$0xf]
      %v4233 = vld [vmem:[#allocation2 + $0x120] sm:$0xff]
      %v4234 = vld [vmem:[#allocation2 + $0x128] sm:$0xf]
      %v4235 = vld [vmem:[#allocation2 + $0x12c] sm:$0xff]
      %v4236 = vld [vmem:[#allocation2 + $0x134] sm:$0xf]
      %v4237 = vld [vmem:[#allocation2 + $0x138] sm:$0xff]
      %v4238 = vld [vmem:[#allocation2 + $0x140] sm:$0xf]
      %v4239 = vld [vmem:[#allocation2 + $0x144] sm:$0xff]
      %v4240 = vld [vmem:[#allocation2 + $0x14c] sm:$0xf]
      %v4241 = vld [vmem:[#allocation2 + $0x150] sm:$0xff]
      %v4242 = vld [vmem:[#allocation2 + $0x158] sm:$0xf]
      %v4243 = vld [vmem:[#allocation2 + $0x15c] sm:$0xff]
      %v4244 = vld [vmem:[#allocation2 + $0x164] sm:$0xf]
      %v4245 = vld [vmem:[#allocation2 + $0x168] sm:$0xff]
      %v4246 = vld [vmem:[#allocation2 + $0x170] sm:$0xf]
      %v4247 = vld [vmem:[#allocation2 + $0x174] sm:$0xff]
      %v4248 = vld [vmem:[#allocation2 + $0x17c] sm:$0xf]
      %v4249 = vld [vmem:[%s3] sm:$0xf]
      %v4250 = vld [vmem:[%s3 + $0x4] sm:$0xf]
      %v4251 = vld [vmem:[%s3 + $0x8] sm:$0xf]
      %v4252 = vld [vmem:[%s3 + $0xc] sm:$0xf]
      %v4253 = vld [vmem:[%s3 + $0x10] sm:$0xf]
      %v4254 = vld [vmem:[%s3 + $0x14] sm:$0xf]
      %v4255 = vld [vmem:[%s3 + $0x18] sm:$0xf]
      %v4256 = vld [vmem:[%s3 + $0x1c] sm:$0xf]
      %v4257 = vld [vmem:[%s3 + $0x20] sm:$0xf]
      %v4258 = vld [vmem:[%s3 + $0x24] sm:$0xf]
      %v4259 = vld [vmem:[%s3 + $0x28] sm:$0xf]
      %v4260 = vld [vmem:[%s3 + $0x2c] sm:$0xf]
      %v4261 = vld [vmem:[%s3 + $0x30] sm:$0xf]
      %v4262 = vld [vmem:[%s3 + $0x34] sm:$0xf]
      %v4263 = vld [vmem:[%s3 + $0x38] sm:$0xf]
      %v4264 = vld [vmem:[%s3 + $0x3c] sm:$0xf]
      %v4265 = vld [vmem:[%s3 + $0x40] sm:$0xf]
      %v4266 = vld [vmem:[%s3 + $0x44] sm:$0xf]
      %v4267 = vld [vmem:[%s3 + $0x48] sm:$0xf]
      %v4268 = vld [vmem:[%s3 + $0x4c] sm:$0xf]
      %v4269 = vld [vmem:[%s3 + $0x50] sm:$0xf]
      %v4270 = vld [vmem:[%s3 + $0x54] sm:$0xf]
      %v4271 = vld [vmem:[%s3 + $0x58] sm:$0xf]
      %v4272 = vld [vmem:[%s3 + $0x5c] sm:$0xf]
      %v4273 = vld [vmem:[%s3 + $0x60] sm:$0xf]
      %v4274 = vld [vmem:[%s3 + $0x64] sm:$0xf]
      %v4275 = vld [vmem:[%s3 + $0x68] sm:$0xf]
      %v4276 = vld [vmem:[%s3 + $0x6c] sm:$0xf]
      %v4277 = vld [vmem:[%s3 + $0x70] sm:$0xf]
      %v4278 = vld [vmem:[%s3 + $0x74] sm:$0xf]
      %v4279 = vld [vmem:[%s3 + $0x78] sm:$0xf]
      %v4280 = vld [vmem:[%s3 + $0x7c] sm:$0xf]
      %v4281 = vld [vmem:[%s3 + $0x80] sm:$0xf]
      %v4282 = vld [vmem:[%s3 + $0x84] sm:$0xf]
      %v4283 = vld [vmem:[%s3 + $0x88] sm:$0xf]
      %v4284 = vld [vmem:[%s3 + $0x8c] sm:$0xf]
      %v4285 = vld [vmem:[%s3 + $0x90] sm:$0xf]
      %v4286 = vld [vmem:[%s3 + $0x94] sm:$0xf]
      %v4287 = vld [vmem:[%s3 + $0x98] sm:$0xf]
      %v4288 = vld [vmem:[%s3 + $0x9c] sm:$0xf]
      %v4289 = vld [vmem:[%s3 + $0xa0] sm:$0xf]
      %v4290 = vld [vmem:[%s3 + $0xa4] sm:$0xf]
      %v4291 = vld [vmem:[%s3 + $0xa8] sm:$0xf]
      %v4292 = vld [vmem:[%s3 + $0xac] sm:$0xf]
      %v4293 = vld [vmem:[%s3 + $0xb0] sm:$0xf]
      %v4294 = vld [vmem:[%s3 + $0xb4] sm:$0xf]
      %v4295 = vld [vmem:[%s3 + $0xb8] sm:$0xf]
      %v4296 = vld [vmem:[%s3 + $0xbc] sm:$0xf]
      %v4297 = vld [vmem:[%s4] sm:$0x1]
      %v4299 = vperm.slane %v4297, 0
      %v4365 = vunpack.c.l.b16 %v4185
      %v4366 = vunpack.c.h.b16 %v4185
      %v4367 = vunpack.c.l.b16 %v4186
      %v4368 = vunpack.c.l.b16 %v4187
      %v4369 = vunpack.c.h.b16 %v4187
      %v4370 = vunpack.c.l.b16 %v4188
      %v4371 = vunpack.c.l.b16 %v4189
      %v4372 = vunpack.c.h.b16 %v4189
      %v4373 = vunpack.c.l.b16 %v4190
      %v4374 = vunpack.c.l.b16 %v4191
      %v4375 = vunpack.c.h.b16 %v4191
      %v4376 = vunpack.c.l.b16 %v4192
      %v4377 = vunpack.c.l.b16 %v4193
      %v4378 = vunpack.c.h.b16 %v4193
      %v4379 = vunpack.c.l.b16 %v4194
      %v4380 = vunpack.c.l.b16 %v4195
      %v4381 = vunpack.c.h.b16 %v4195
      %v4382 = vunpack.c.l.b16 %v4196
      %v4383 = vunpack.c.l.b16 %v4197
      %v4384 = vunpack.c.h.b16 %v4197
      %v4385 = vunpack.c.l.b16 %v4198
      %v4386 = vunpack.c.l.b16 %v4199
      %v4387 = vunpack.c.h.b16 %v4199
      %v4388 = vunpack.c.l.b16 %v4200
      %v4389 = vunpack.c.l.b16 %v4201
      %v4390 = vunpack.c.h.b16 %v4201
      %v4391 = vunpack.c.l.b16 %v4202
      %v4392 = vunpack.c.l.b16 %v4203
      %v4393 = vunpack.c.h.b16 %v4203
      %v4394 = vunpack.c.l.b16 %v4204
      %v4395 = vunpack.c.l.b16 %v4205
      %v4396 = vunpack.c.h.b16 %v4205
      %v4397 = vunpack.c.l.b16 %v4206
      %v4398 = vunpack.c.l.b16 %v4207
      %v4399 = vunpack.c.h.b16 %v4207
      %v4400 = vunpack.c.l.b16 %v4208
      %v4401 = vunpack.c.l.b16 %v4209
      %v4402 = vunpack.c.h.b16 %v4209
      %v4403 = vunpack.c.l.b16 %v4210
      %v4404 = vunpack.c.l.b16 %v4211
      %v4405 = vunpack.c.h.b16 %v4211
      %v4406 = vunpack.c.l.b16 %v4212
      %v4407 = vunpack.c.l.b16 %v4213
      %v4408 = vunpack.c.h.b16 %v4213
      %v4409 = vunpack.c.l.b16 %v4214
      %v4410 = vunpack.c.l.b16 %v4215
      %v4411 = vunpack.c.h.b16 %v4215
      %v4412 = vunpack.c.l.b16 %v4216
      %v4413 = vunpack.c.l.b16 %v4217
      %v4414 = vunpack.c.h.b16 %v4217
      %v4415 = vunpack.c.l.b16 %v4218
      %v4416 = vunpack.c.l.b16 %v4219
      %v4417 = vunpack.c.h.b16 %v4219
      %v4418 = vunpack.c.l.b16 %v4220
      %v4419 = vunpack.c.l.b16 %v4221
      %v4420 = vunpack.c.h.b16 %v4221
      %v4421 = vunpack.c.l.b16 %v4222
      %v4422 = vunpack.c.l.b16 %v4223
      %v4423 = vunpack.c.h.b16 %v4223
      %v4424 = vunpack.c.l.b16 %v4224
      %v4425 = vunpack.c.l.b16 %v4225
      %v4426 = vunpack.c.h.b16 %v4225
      %v4427 = vunpack.c.l.b16 %v4226
      %v4428 = vunpack.c.l.b16 %v4227
      %v4429 = vunpack.c.h.b16 %v4227
      %v4430 = vunpack.c.l.b16 %v4228
      %v4431 = vunpack.c.l.b16 %v4229
      %v4432 = vunpack.c.h.b16 %v4229
      %v4433 = vunpack.c.l.b16 %v4230
      %v4434 = vunpack.c.l.b16 %v4231
      %v4435 = vunpack.c.h.b16 %v4231
      %v4436 = vunpack.c.l.b16 %v4232
      %v4437 = vunpack.c.l.b16 %v4233
      %v4438 = vunpack.c.h.b16 %v4233
      %v4439 = vunpack.c.l.b16 %v4234
      %v4440 = vunpack.c.l.b16 %v4235
      %v4441 = vunpack.c.h.b16 %v4235
      %v4442 = vunpack.c.l.b16 %v4236
      %v4443 = vunpack.c.l.b16 %v4237
      %v4444 = vunpack.c.h.b16 %v4237
      %v4445 = vunpack.c.l.b16 %v4238
      %v4446 = vunpack.c.l.b16 %v4239
      %v4447 = vunpack.c.h.b16 %v4239
      %v4448 = vunpack.c.l.b16 %v4240
      %v4449 = vunpack.c.l.b16 %v4241
      %v4450 = vunpack.c.h.b16 %v4241
      %v4451 = vunpack.c.l.b16 %v4242
      %v4452 = vunpack.c.l.b16 %v4243
      %v4453 = vunpack.c.h.b16 %v4243
      %v4454 = vunpack.c.l.b16 %v4244
      %v4455 = vunpack.c.l.b16 %v4245
      %v4456 = vunpack.c.h.b16 %v4245
      %v4457 = vunpack.c.l.b16 %v4246
      %v4458 = vunpack.c.l.b16 %v4247
      %v4459 = vunpack.c.h.b16 %v4247
      %v4460 = vunpack.c.l.b16 %v4248
      %v4461 = vpack.c.b16 %v4368, %v4365
      %v4462 = vpack.c.b16 %v4369, %v4366
      %v4463 = vpack.c.b16 %v4370, %v4367
      %v4464 = vpack.c.b16 %v4374, %v4371
      %v4465 = vpack.c.b16 %v4375, %v4372
      %v4466 = vpack.c.b16 %v4376, %v4373
      %v4467 = vpack.c.b16 %v4380, %v4377
      %v4468 = vpack.c.b16 %v4381, %v4378
      %v4469 = vpack.c.b16 %v4382, %v4379
      %v4470 = vpack.c.b16 %v4386, %v4383
      %v4471 = vpack.c.b16 %v4387, %v4384
      %v4472 = vpack.c.b16 %v4388, %v4385
      %v4473 = vpack.c.b16 %v4392, %v4389
      %v4474 = vpack.c.b16 %v4393, %v4390
      %v4475 = vpack.c.b16 %v4394, %v4391
      %v4476 = vpack.c.b16 %v4398, %v4395
      %v4477 = vpack.c.b16 %v4399, %v4396
      %v4478 = vpack.c.b16 %v4400, %v4397
      %v4479 = vpack.c.b16 %v4404, %v4401
      %v4480 = vpack.c.b16 %v4405, %v4402
      %v4481 = vpack.c.b16 %v4406, %v4403
      %v4482 = vpack.c.b16 %v4410, %v4407
      %v4483 = vpack.c.b16 %v4411, %v4408
      %v4484 = vpack.c.b16 %v4412, %v4409
      %v4485 = vpack.c.b16 %v4416, %v4413
      %v4486 = vpack.c.b16 %v4417, %v4414
      %v4487 = vpack.c.b16 %v4418, %v4415
      %v4488 = vpack.c.b16 %v4422, %v4419
      %v4489 = vpack.c.b16 %v4423, %v4420
      %v4490 = vpack.c.b16 %v4424, %v4421
      %v4491 = vpack.c.b16 %v4428, %v4425
      %v4492 = vpack.c.b16 %v4429, %v4426
      %v4493 = vpack.c.b16 %v4430, %v4427
      %v4494 = vpack.c.b16 %v4434, %v4431
      %v4495 = vpack.c.b16 %v4435, %v4432
      %v4496 = vpack.c.b16 %v4436, %v4433
      %v4497 = vpack.c.b16 %v4440, %v4437
      %v4498 = vpack.c.b16 %v4441, %v4438
      %v4499 = vpack.c.b16 %v4442, %v4439
      %v4500 = vpack.c.b16 %v4446, %v4443
      %v4501 = vpack.c.b16 %v4447, %v4444
      %v4502 = vpack.c.b16 %v4448, %v4445
      %v4503 = vpack.c.b16 %v4452, %v4449
      %v4504 = vpack.c.b16 %v4453, %v4450
      %v4505 = vpack.c.b16 %v4454, %v4451
      %v4506 = vpack.c.b16 %v4458, %v4455
      %v4507 = vpack.c.b16 %v4459, %v4456
      %v4508 = vpack.c.b16 %v4460, %v4457
      %v4605 = vunpack.c.l.b16 %v4249
      %v4606 = vunpack.c.l.b16 %v4250
      %v4607 = vunpack.c.l.b16 %v4251
      %v4608 = vunpack.c.l.b16 %v4252
      %v4609 = vunpack.c.l.b16 %v4253
      %v4610 = vunpack.c.l.b16 %v4254
      %v4611 = vunpack.c.l.b16 %v4255
      %v4612 = vunpack.c.l.b16 %v4256
      %v4613 = vunpack.c.l.b16 %v4257
      %v4614 = vunpack.c.l.b16 %v4258
      %v4615 = vunpack.c.l.b16 %v4259
      %v4616 = vunpack.c.l.b16 %v4260
      %v4617 = vunpack.c.l.b16 %v4261
      %v4618 = vunpack.c.l.b16 %v4262
      %v4619 = vunpack.c.l.b16 %v4263
      %v4620 = vunpack.c.l.b16 %v4264
      %v4621 = vunpack.c.l.b16 %v4265
      %v4622 = vunpack.c.l.b16 %v4266
      %v4623 = vunpack.c.l.b16 %v4267
      %v4624 = vunpack.c.l.b16 %v4268
      %v4625 = vunpack.c.l.b16 %v4269
      %v4626 = vunpack.c.l.b16 %v4270
      %v4627 = vunpack.c.l.b16 %v4271
      %v4628 = vunpack.c.l.b16 %v4272
      %v4629 = vunpack.c.l.b16 %v4273
      %v4630 = vunpack.c.l.b16 %v4274
      %v4631 = vunpack.c.l.b16 %v4275
      %v4632 = vunpack.c.l.b16 %v4276
      %v4633 = vunpack.c.l.b16 %v4277
      %v4634 = vunpack.c.l.b16 %v4278
      %v4635 = vunpack.c.l.b16 %v4279
      %v4636 = vunpack.c.l.b16 %v4280
      %v4637 = vunpack.c.l.b16 %v4281
      %v4638 = vunpack.c.l.b16 %v4282
      %v4639 = vunpack.c.l.b16 %v4283
      %v4640 = vunpack.c.l.b16 %v4284
      %v4641 = vunpack.c.l.b16 %v4285
      %v4642 = vunpack.c.l.b16 %v4286
      %v4643 = vunpack.c.l.b16 %v4287
      %v4644 = vunpack.c.l.b16 %v4288
      %v4645 = vunpack.c.l.b16 %v4289
      %v4646 = vunpack.c.l.b16 %v4290
      %v4647 = vunpack.c.l.b16 %v4291
      %v4648 = vunpack.c.l.b16 %v4292
      %v4649 = vunpack.c.l.b16 %v4293
      %v4650 = vunpack.c.l.b16 %v4294
      %v4651 = vunpack.c.l.b16 %v4295
      %v4652 = vunpack.c.l.b16 %v4296
      %v4653 = vpack.c.b16 %v4606, %v4605
      %v4654 = vpack.c.b16 %v4608, %v4607
      %v4655 = vpack.c.b16 %v4610, %v4609
      %v4656 = vpack.c.b16 %v4612, %v4611
      %v4657 = vpack.c.b16 %v4614, %v4613
      %v4658 = vpack.c.b16 %v4616, %v4615
      %v4659 = vpack.c.b16 %v4618, %v4617
      %v4660 = vpack.c.b16 %v4620, %v4619
      %v4661 = vpack.c.b16 %v4622, %v4621
      %v4662 = vpack.c.b16 %v4624, %v4623
      %v4663 = vpack.c.b16 %v4626, %v4625
      %v4664 = vpack.c.b16 %v4628, %v4627
      %v4665 = vpack.c.b16 %v4630, %v4629
      %v4666 = vpack.c.b16 %v4632, %v4631
      %v4667 = vpack.c.b16 %v4634, %v4633
      %v4668 = vpack.c.b16 %v4636, %v4635
      %v4669 = vpack.c.b16 %v4638, %v4637
      %v4670 = vpack.c.b16 %v4640, %v4639
      %v4671 = vpack.c.b16 %v4642, %v4641
      %v4672 = vpack.c.b16 %v4644, %v4643
      %v4673 = vpack.c.b16 %v4646, %v4645
      %v4674 = vpack.c.b16 %v4648, %v4647
      %v4675 = vpack.c.b16 %v4650, %v4649
      %v4676 = vpack.c.b16 %v4652, %v4651
      %4701 = vmatpush.bf16.msra.mxu0 %v4660
      %4702 = vmatpush.bf16.msra.mxu0 %v4659
      %4703 = vmatpush.bf16.msra.mxu0 %v4658
      %4704 = vmatpush.bf16.msra.mxu0 %v4657
      %4705 = vmatpush.bf16.msra.mxu0 %v4656
      %4706 = vmatpush.bf16.msra.mxu0 %v4655
      %4707 = vmatpush.bf16.msra.mxu0 %v4654
      %4708 = vmatpush.bf16.msra.mxu0 %v4653
      %4709 = vmatmul.bf16.gmra.mxu0 %v4461
      %v4710 = vpop.f32.mrf.mxu0
      %v4711 = vadd.f32 %v4299, %v4710
      %v4712 = vpop.f32.mrf.mxu0
      %v4713 = vadd.f32 %v4299, %v4712
      %4714 = vmatmul.bf16.gmra.mxu0 %v4464
      %v4715 = vpop.f32.mrf.mxu0
      %v4716 = vadd.f32 %v4299, %v4715
      %v4717 = vpop.f32.mrf.mxu0
      %v4718 = vadd.f32 %v4299, %v4717
      %4719 = vmatmul.bf16.gmra.mxu0 %v4467
      %v4720 = vpop.f32.mrf.mxu0
      %v4721 = vadd.f32 %v4299, %v4720
      %v4722 = vpop.f32.mrf.mxu0
      %v4723 = vadd.f32 %v4299, %v4722
      %4724 = vmatmul.bf16.gmra.mxu0 %v4470
      %v4725 = vpop.f32.mrf.mxu0
      %v4726 = vadd.f32 %v4299, %v4725
      %v4727 = vpop.f32.mrf.mxu0
      %v4728 = vadd.f32 %v4299, %v4727
      %4729 = vmatmul.bf16.gmra.mxu0 %v4473
      %v4730 = vpop.f32.mrf.mxu0
      %v4731 = vadd.f32 %v4299, %v4730
      %v4732 = vpop.f32.mrf.mxu0
      %v4733 = vadd.f32 %v4299, %v4732
      %4734 = vmatmul.bf16.gmra.mxu0 %v4476
      %v4735 = vpop.f32.mrf.mxu0
      %v4736 = vadd.f32 %v4299, %v4735
      %v4737 = vpop.f32.mrf.mxu0
      %v4738 = vadd.f32 %v4299, %v4737
      %4739 = vmatmul.bf16.gmra.mxu0 %v4479
      %v4740 = vpop.f32.mrf.mxu0
      %v4741 = vadd.f32 %v4299, %v4740
      %v4742 = vpop.f32.mrf.mxu0
      %v4743 = vadd.f32 %v4299, %v4742
      %4744 = vmatmul.bf16.gmra.mxu0 %v4482
      %v4745 = vpop.f32.mrf.mxu0
      %v4746 = vadd.f32 %v4299, %v4745
      %v4747 = vpop.f32.mrf.mxu0
      %v4748 = vadd.f32 %v4299, %v4747
      %4749 = vmatmul.bf16.gmra.mxu0 %v4485
      %v4750 = vpop.f32.mrf.mxu0
      %v4751 = vadd.f32 %v4299, %v4750
      %v4752 = vpop.f32.mrf.mxu0
      %v4753 = vadd.f32 %v4299, %v4752
      %4754 = vmatmul.bf16.gmra.mxu0 %v4488
      %v4755 = vpop.f32.mrf.mxu0
      %v4756 = vadd.f32 %v4299, %v4755
      %v4757 = vpop.f32.mrf.mxu0
      %v4758 = vadd.f32 %v4299, %v4757
      %4759 = vmatmul.bf16.gmra.mxu0 %v4491
      %v4760 = vpop.f32.mrf.mxu0
      %v4761 = vadd.f32 %v4299, %v4760
      %v4762 = vpop.f32.mrf.mxu0
      %v4763 = vadd.f32 %v4299, %v4762
      %4764 = vmatmul.bf16.gmra.mxu0 %v4494
      %v4765 = vpop.f32.mrf.mxu0
      %v4766 = vadd.f32 %v4299, %v4765
      %v4767 = vpop.f32.mrf.mxu0
      %v4768 = vadd.f32 %v4299, %v4767
      %4769 = vmatmul.bf16.gmra.mxu0 %v4497
      %v4770 = vpop.f32.mrf.mxu0
      %v4771 = vadd.f32 %v4299, %v4770
      %v4772 = vpop.f32.mrf.mxu0
      %v4773 = vadd.f32 %v4299, %v4772
      %4774 = vmatmul.bf16.gmra.mxu0 %v4500
      %v4775 = vpop.f32.mrf.mxu0
      %v4776 = vadd.f32 %v4299, %v4775
      %v4777 = vpop.f32.mrf.mxu0
      %v4778 = vadd.f32 %v4299, %v4777
      %4779 = vmatmul.bf16.gmra.mxu0 %v4503
      %v4780 = vpop.f32.mrf.mxu0
      %v4781 = vadd.f32 %v4299, %v4780
      %v4782 = vpop.f32.mrf.mxu0
      %v4783 = vadd.f32 %v4299, %v4782
      %4784 = vmatmul.bf16.gmra.mxu0 %v4506
      %v4785 = vpop.f32.mrf.mxu0
      %v4786 = vadd.f32 %v4299, %v4785
      %v4787 = vpop.f32.mrf.mxu0
      %v4788 = vadd.f32 %v4299, %v4787
      %4789 = vdwg.mxu0
      %4790 = vmatpush.bf16.msra.mxu0 %v4668
      %4791 = vmatpush.bf16.msra.mxu0 %v4667
      %4792 = vmatpush.bf16.msra.mxu0 %v4666
      %4793 = vmatpush.bf16.msra.mxu0 %v4665
      %4794 = vmatpush.bf16.msra.mxu0 %v4664
      %4795 = vmatpush.bf16.msra.mxu0 %v4663
      %4796 = vmatpush.bf16.msra.mxu0 %v4662
      %4797 = vmatpush.bf16.msra.mxu0 %v4661
      %4798 = vmatmul.bf16.gmra.mxu0 %v4462
      %v4799 = vpop.f32.mrf.mxu0
      %v4800 = vadd.f32 %v4711, %v4799
      %v4801 = vpop.f32.mrf.mxu0
      %v4802 = vadd.f32 %v4713, %v4801
      %4803 = vmatmul.bf16.gmra.mxu0 %v4465
      %v4804 = vpop.f32.mrf.mxu0
      %v4805 = vadd.f32 %v4716, %v4804
      %v4806 = vpop.f32.mrf.mxu0
      %v4807 = vadd.f32 %v4718, %v4806
      %4808 = vmatmul.bf16.gmra.mxu0 %v4468
      %v4809 = vpop.f32.mrf.mxu0
      %v4810 = vadd.f32 %v4721, %v4809
      %v4811 = vpop.f32.mrf.mxu0
      %v4812 = vadd.f32 %v4723, %v4811
      %4813 = vmatmul.bf16.gmra.mxu0 %v4471
      %v4814 = vpop.f32.mrf.mxu0
      %v4815 = vadd.f32 %v4726, %v4814
      %v4816 = vpop.f32.mrf.mxu0
      %v4817 = vadd.f32 %v4728, %v4816
      %4818 = vmatmul.bf16.gmra.mxu0 %v4474
      %v4819 = vpop.f32.mrf.mxu0
      %v4820 = vadd.f32 %v4731, %v4819
      %v4821 = vpop.f32.mrf.mxu0
      %v4822 = vadd.f32 %v4733, %v4821
      %4823 = vmatmul.bf16.gmra.mxu0 %v4477
      %v4824 = vpop.f32.mrf.mxu0
      %v4825 = vadd.f32 %v4736, %v4824
      %v4826 = vpop.f32.mrf.mxu0
      %v4827 = vadd.f32 %v4738, %v4826
      %4828 = vmatmul.bf16.gmra.mxu0 %v4480
      %v4829 = vpop.f32.mrf.mxu0
      %v4830 = vadd.f32 %v4741, %v4829
      %v4831 = vpop.f32.mrf.mxu0
      %v4832 = vadd.f32 %v4743, %v4831
      %4833 = vmatmul.bf16.gmra.mxu0 %v4483
      %v4834 = vpop.f32.mrf.mxu0
      %v4835 = vadd.f32 %v4746, %v4834
      %v4836 = vpop.f32.mrf.mxu0
      %v4837 = vadd.f32 %v4748, %v4836
      %4838 = vmatmul.bf16.gmra.mxu0 %v4486
      %v4839 = vpop.f32.mrf.mxu0
      %v4840 = vadd.f32 %v4751, %v4839
      %v4841 = vpop.f32.mrf.mxu0
      %v4842 = vadd.f32 %v4753, %v4841
      %4843 = vmatmul.bf16.gmra.mxu0 %v4489
      %v4844 = vpop.f32.mrf.mxu0
      %v4845 = vadd.f32 %v4756, %v4844
      %v4846 = vpop.f32.mrf.mxu0
      %v4847 = vadd.f32 %v4758, %v4846
      %4848 = vmatmul.bf16.gmra.mxu0 %v4492
      %v4849 = vpop.f32.mrf.mxu0
      %v4850 = vadd.f32 %v4761, %v4849
      %v4851 = vpop.f32.mrf.mxu0
      %v4852 = vadd.f32 %v4763, %v4851
      %4853 = vmatmul.bf16.gmra.mxu0 %v4495
      %v4854 = vpop.f32.mrf.mxu0
      %v4855 = vadd.f32 %v4766, %v4854
      %v4856 = vpop.f32.mrf.mxu0
      %v4857 = vadd.f32 %v4768, %v4856
      %4858 = vmatmul.bf16.gmra.mxu0 %v4498
      %v4859 = vpop.f32.mrf.mxu0
      %v4860 = vadd.f32 %v4771, %v4859
      %v4861 = vpop.f32.mrf.mxu0
      %v4862 = vadd.f32 %v4773, %v4861
      %4863 = vmatmul.bf16.gmra.mxu0 %v4501
      %v4864 = vpop.f32.mrf.mxu0
      %v4865 = vadd.f32 %v4776, %v4864
      %v4866 = vpop.f32.mrf.mxu0
      %v4867 = vadd.f32 %v4778, %v4866
      %4868 = vmatmul.bf16.gmra.mxu0 %v4504
      %v4869 = vpop.f32.mrf.mxu0
      %v4870 = vadd.f32 %v4781, %v4869
      %v4871 = vpop.f32.mrf.mxu0
      %v4872 = vadd.f32 %v4783, %v4871
      %4873 = vmatmul.bf16.gmra.mxu0 %v4507
      %v4874 = vpop.f32.mrf.mxu0
      %v4875 = vadd.f32 %v4786, %v4874
      %v4876 = vpop.f32.mrf.mxu0
      %v4877 = vadd.f32 %v4788, %v4876
      %4878 = vdwg.mxu0
      %4879 = vmatpush.bf16.msra.mxu0 %v4676
      %4880 = vmatpush.bf16.msra.mxu0 %v4675
      %4881 = vmatpush.bf16.msra.mxu0 %v4674
      %4882 = vmatpush.bf16.msra.mxu0 %v4673
      %4883 = vmatpush.bf16.msra.mxu0 %v4672
      %4884 = vmatpush.bf16.msra.mxu0 %v4671
      %4885 = vmatpush.bf16.msra.mxu0 %v4670
      %4886 = vmatpush.bf16.msra.mxu0 %v4669
      %4887 = vmatmul.bf16.gmra.mxu0 %v4463
      %v4888 = vpop.f32.mrf.mxu0
      %v4889 = vadd.f32 %v4800, %v4888
      %v4890 = vpop.f32.mrf.mxu0
      %v4891 = vadd.f32 %v4802, %v4890
      %4892 = vmatmul.bf16.gmra.mxu0 %v4466
      %v4893 = vpop.f32.mrf.mxu0
      %v4894 = vadd.f32 %v4805, %v4893
      %v4895 = vpop.f32.mrf.mxu0
      %v4896 = vadd.f32 %v4807, %v4895
      %4897 = vmatmul.bf16.gmra.mxu0 %v4469
      %v4898 = vpop.f32.mrf.mxu0
      %v4899 = vadd.f32 %v4810, %v4898
      %v4900 = vpop.f32.mrf.mxu0
      %v4901 = vadd.f32 %v4812, %v4900
      %4902 = vmatmul.bf16.gmra.mxu0 %v4472
      %v4903 = vpop.f32.mrf.mxu0
      %v4904 = vadd.f32 %v4815, %v4903
      %v4905 = vpop.f32.mrf.mxu0
      %v4906 = vadd.f32 %v4817, %v4905
      %4907 = vmatmul.bf16.gmra.mxu0 %v4475
      %v4908 = vpop.f32.mrf.mxu0
      %v4909 = vadd.f32 %v4820, %v4908
      %v4910 = vpop.f32.mrf.mxu0
      %v4911 = vadd.f32 %v4822, %v4910
      %4912 = vmatmul.bf16.gmra.mxu0 %v4478
      %v4913 = vpop.f32.mrf.mxu0
      %v4914 = vadd.f32 %v4825, %v4913
      %v4915 = vpop.f32.mrf.mxu0
      %v4916 = vadd.f32 %v4827, %v4915
      %4917 = vmatmul.bf16.gmra.mxu0 %v4481
      %v4918 = vpop.f32.mrf.mxu0
      %v4919 = vadd.f32 %v4830, %v4918
      %v4920 = vpop.f32.mrf.mxu0
      %v4921 = vadd.f32 %v4832, %v4920
      %4922 = vmatmul.bf16.gmra.mxu0 %v4484
      %v4923 = vpop.f32.mrf.mxu0
      %v4924 = vadd.f32 %v4835, %v4923
      %v4925 = vpop.f32.mrf.mxu0
      %v4926 = vadd.f32 %v4837, %v4925
      %4927 = vmatmul.bf16.gmra.mxu0 %v4487
      %v4928 = vpop.f32.mrf.mxu0
      %v4929 = vadd.f32 %v4840, %v4928
      %v4930 = vpop.f32.mrf.mxu0
      %v4931 = vadd.f32 %v4842, %v4930
      %4932 = vmatmul.bf16.gmra.mxu0 %v4490
      %v4933 = vpop.f32.mrf.mxu0
      %v4934 = vadd.f32 %v4845, %v4933
      %v4935 = vpop.f32.mrf.mxu0
      %v4936 = vadd.f32 %v4847, %v4935
      %4937 = vmatmul.bf16.gmra.mxu0 %v4493
      %v4938 = vpop.f32.mrf.mxu0
      %v4939 = vadd.f32 %v4850, %v4938
      %v4940 = vpop.f32.mrf.mxu0
      %v4941 = vadd.f32 %v4852, %v4940
      %4942 = vmatmul.bf16.gmra.mxu0 %v4496
      %v4943 = vpop.f32.mrf.mxu0
      %v4944 = vadd.f32 %v4855, %v4943
      %v4945 = vpop.f32.mrf.mxu0
      %v4946 = vadd.f32 %v4857, %v4945
      %4947 = vmatmul.bf16.gmra.mxu0 %v4499
      %v4948 = vpop.f32.mrf.mxu0
      %v4949 = vadd.f32 %v4860, %v4948
      %v4950 = vpop.f32.mrf.mxu0
      %v4951 = vadd.f32 %v4862, %v4950
      %4952 = vmatmul.bf16.gmra.mxu0 %v4502
      %v4953 = vpop.f32.mrf.mxu0
      %v4954 = vadd.f32 %v4865, %v4953
      %v4955 = vpop.f32.mrf.mxu0
      %v4956 = vadd.f32 %v4867, %v4955
      %4957 = vmatmul.bf16.gmra.mxu0 %v4505
      %v4958 = vpop.f32.mrf.mxu0
      %v4959 = vadd.f32 %v4870, %v4958
      %v4960 = vpop.f32.mrf.mxu0
      %v4961 = vadd.f32 %v4872, %v4960
      %4962 = vmatmul.bf16.gmra.mxu0 %v4508
      %v4963 = vpop.f32.mrf.mxu0
      %v4964 = vadd.f32 %v4875, %v4963
      %v4965 = vpop.f32.mrf.mxu0
      %v4966 = vadd.f32 %v4877, %v4965
      %4967 = vdwg.mxu0
      %v4968 = vpack.c.bf16 %v4889, %v4889
      %v4969 = vpack.c.bf16 %v4891, %v4891
      %v4970 = vpack.c.bf16 %v4894, %v4894
      %v4971 = vpack.c.bf16 %v4896, %v4896
      %v4972 = vpack.c.bf16 %v4899, %v4899
      %v4973 = vpack.c.bf16 %v4901, %v4901
      %v4974 = vpack.c.bf16 %v4904, %v4904
      %v4975 = vpack.c.bf16 %v4906, %v4906
      %v4976 = vpack.c.bf16 %v4909, %v4909
      %v4977 = vpack.c.bf16 %v4911, %v4911
      %v4978 = vpack.c.bf16 %v4914, %v4914
      %v4979 = vpack.c.bf16 %v4916, %v4916
      %v4980 = vpack.c.bf16 %v4919, %v4919
      %v4981 = vpack.c.bf16 %v4921, %v4921
      %v4982 = vpack.c.bf16 %v4924, %v4924
      %v4983 = vpack.c.bf16 %v4926, %v4926
      %v4984 = vpack.c.bf16 %v4929, %v4929
      %v4985 = vpack.c.bf16 %v4931, %v4931
      %v4986 = vpack.c.bf16 %v4934, %v4934
      %v4987 = vpack.c.bf16 %v4936, %v4936
      %v4988 = vpack.c.bf16 %v4939, %v4939
      %v4989 = vpack.c.bf16 %v4941, %v4941
      %v4990 = vpack.c.bf16 %v4944, %v4944
      %v4991 = vpack.c.bf16 %v4946, %v4946
      %v4992 = vpack.c.bf16 %v4949, %v4949
      %v4993 = vpack.c.bf16 %v4951, %v4951
      %v4994 = vpack.c.bf16 %v4954, %v4954
      %v4995 = vpack.c.bf16 %v4956, %v4956
      %v4996 = vpack.c.bf16 %v4959, %v4959
      %v4997 = vpack.c.bf16 %v4961, %v4961
      %v4998 = vpack.c.bf16 %v4964, %v4964
      %v4999 = vpack.c.bf16 %v4966, %v4966
      %5000 = vst [vmem:[%s224] sm:$0xf] %v4968
      %5001 = vst [vmem:[%s224 + $0x4] sm:$0xf] %v4969
      %5002 = vst [vmem:[%s224 + $0x8] sm:$0xf] %v4970
      %5003 = vst [vmem:[%s224 + $0xc] sm:$0xf] %v4971
      %5004 = vst [vmem:[%s224 + $0x10] sm:$0xf] %v4972
      %5005 = vst [vmem:[%s224 + $0x14] sm:$0xf] %v4973
      %5006 = vst [vmem:[%s224 + $0x18] sm:$0xf] %v4974
      %5007 = vst [vmem:[%s224 + $0x1c] sm:$0xf] %v4975
      %5008 = vst [vmem:[%s224 + $0x20] sm:$0xf] %v4976
      %5009 = vst [vmem:[%s224 + $0x24] sm:$0xf] %v4977
      %5010 = vst [vmem:[%s224 + $0x28] sm:$0xf] %v4978
      %5011 = vst [vmem:[%s224 + $0x2c] sm:$0xf] %v4979
      %5012 = vst [vmem:[%s224 + $0x30] sm:$0xf] %v4980
      %5013 = vst [vmem:[%s224 + $0x34] sm:$0xf] %v4981
      %5014 = vst [vmem:[%s224 + $0x38] sm:$0xf] %v4982
      %5015 = vst [vmem:[%s224 + $0x3c] sm:$0xf] %v4983
      %5016 = vst [vmem:[%s224 + $0x40] sm:$0xf] %v4984
      %5017 = vst [vmem:[%s224 + $0x44] sm:$0xf] %v4985
      %5018 = vst [vmem:[%s224 + $0x48] sm:$0xf] %v4986
      %5019 = vst [vmem:[%s224 + $0x4c] sm:$0xf] %v4987
      %5020 = vst [vmem:[%s224 + $0x50] sm:$0xf] %v4988
      %5021 = vst [vmem:[%s224 + $0x54] sm:$0xf] %v4989
      %5022 = vst [vmem:[%s224 + $0x58] sm:$0xf] %v4990
      %5023 = vst [vmem:[%s224 + $0x5c] sm:$0xf] %v4991
      %5024 = vst [vmem:[%s224 + $0x60] sm:$0xf] %v4992
      %5025 = vst [vmem:[%s224 + $0x64] sm:$0xf] %v4993
      %5026 = vst [vmem:[%s224 + $0x68] sm:$0xf] %v4994
      %5027 = vst [vmem:[%s224 + $0x6c] sm:$0xf] %v4995
      %5028 = vst [vmem:[%s224 + $0x70] sm:$0xf] %v4996
      %5029 = vst [vmem:[%s224 + $0x74] sm:$0xf] %v4997
      %5030 = vst [vmem:[%s224 + $0x78] sm:$0xf] %v4998
      %5031 = vst [vmem:[%s224 + $0x7c] sm:$0xf] %v4999
      %p5032 = scmp.lt.s32.totalorder %s16, 1
      %s5033 = scalar_select %p5032, %s16, 1
      %s5034 = smul.addr %s5033, 32
      %s5035 = smul.addr %s5034, 4
      %s5036 = scalar_lea.vmem %s5, %s5035
      // Predicated region
      $region41: #{bpure_sparse_backbone_geo_forward.1} parent=39 // pred_check
        %p5037 = pneg %p144
      $region42: #{bpure_sparse_backbone_geo_forward.1} parent=39 // pred_check_branch
        %5039 = sbr.rel (%p5037) target = $region44
      $region43: #{bpure_sparse_backbone_geo_forward.1} parent=39 // pred_region
        _
      $region44: #{bpure_sparse_backbone_geo_forward.1} parent=39 // pred_fallthru
        _
    $region40: #{bpure_sparse_backbone_geo_forward.1} parent=5 // pred_fallthru
      _
    %p5040 = scmp.le.s32.totalorder 2, %s11
    // Predicated region
    $region45: #{bpure_sparse_backbone_geo_forward.1} parent=5 // pred_check
      %p5041 = pneg %p5040
    $region46: #{bpure_sparse_backbone_geo_forward.1} parent=5 // pred_check_branch
      %5043 = sbr.rel (%p5041) target = $region48
    $region47: #{bpure_sparse_backbone_geo_forward.1} parent=5 // pred_region
      %s5044 = ssub.s32 %s11, 2
      // Predicated region
      $region49: #{bpure_sparse_backbone_geo_forward.1} parent=47 // pred_check
        %p5045 = pneg %p150
      $region50: #{bpure_sparse_backbone_geo_forward.1} parent=47 // pred_check_branch
        %5047 = sbr.rel (%p5045) target = $region52
      $region51: #{bpure_sparse_backbone_geo_forward.1} parent=47 // pred_region
        %p5048 = scmp.lt.s32.totalorder %s17, 1
        %s5049 = scalar_select %p5048, %s17, 1
        %s5050 = smul.addr %s5049, 32
        %s5051 = smul.addr %s5050, 4
        %s5052 = scalar_lea.vmem %s5, %s5051
      $region52: #{bpure_sparse_backbone_geo_forward.1} parent=47 // pred_fallthru
        _
    $region48: #{bpure_sparse_backbone_geo_forward.1} parent=5 // pred_fallthru
      _
  $region6: #{bpure_sparse_backbone_geo_forward.1} parent=0 // loop_footer
    %s15 = sadd.s32 1, %s11
  $region7: #{bpure_sparse_backbone_geo_forward.1} parent=0 // loop_footer_branch
    %10 = sbr.rel target = $region3
  $region8: #{bpure_sparse_backbone_geo_forward.1} parent=0 // loop_exit
    _

</llo_original>
